<compile_context>
chip_gen: v6e
topology: v6e:2x2x1
jax: 0.10.0
libtpu: 0.0.40
codegen_flags: <defaults>
</compile_context>

<pallas_src>
import jax
import jax.numpy as jnp
from jax.experimental import pallas as pl
from jax.experimental.pallas import tpu as pltpu


def sta2_kernel(pre_ref, cur_ref, cur_t_ref, w1s_ref, w2s_ref, t_ref,
                alpha_ref, out_ref, a_scr):
    # pre_ref:   (C, TQ)    query slice of `pre` (channel-major)
    # cur_ref:   (C, HW)    keys/values, channel-major, full spatial extent
    # cur_t_ref: (HW, C)    same data, spatial-major (for VPU outer products)
    # w1s_ref:   (OUT, C)   bn_scale * W[:, :C]  (feat branch of the 1x1 conv)
    # w2s_ref:   (OUT, C)   bn_scale * W[:, C:]  (cur  branch of the 1x1 conv)
    # t_ref:     (OUT, 1)   bn_shift + folded conv bias
    # alpha_ref: (1,) SMEM  PReLU slope
    # out_ref:   (OUT, TQ)
    # a_scr:     (OUT, HW)  per-batch VMEM scratch: A = (s*W1) @ cur
    c = pre_ref.shape[0]
    tq = pre_ref.shape[1]

    # ---- Per-batch setup: A = W1s @ cur, computed once per batch (j == 0).
    # Contraction length is only C=4, so use 4 unrolled VPU broadcast-FMAs
    # instead of a degenerate (K=4) MXU pass.
    @pl.when(pl.program_id(1) == 0)
    def _():
        cur = cur_ref[...]                               # (C, HW)
        w1s = w1s_ref[...]                               # (OUT, C)
        acc = w1s[:, 0:1] * cur[0:1, :]
        for ci in range(1, c):
            acc = acc + w1s[:, ci:ci + 1] * cur[ci:ci + 1, :]
        a_scr[...] = acc.astype(a_scr.dtype)             # (OUT, HW)

    # ---- Attention scores in (K, Q) orientation (softmax stats land as
    # (1, TQ) rows that broadcast straight onto the (OUT, TQ) output).  Again
    # 4 VPU outer products -- the K=C=4 contraction never touches the MXU.
    pre_s = pre_ref[...] * (c ** -0.5)                   # (C, TQ) scale folded
    cur_t = cur_t_ref[...]                               # (HW, C)
    scores = cur_t[:, 0:1] * pre_s[0:1, :]
    for ci in range(1, c):
        scores = scores + cur_t[:, ci:ci + 1] * pre_s[ci:ci + 1, :]  # (HW, TQ)

    m = jnp.max(scores, axis=0, keepdims=True)           # (1, TQ)
    p = jnp.exp(scores - m)                              # unnormalized (HW, TQ)
    l = jnp.sum(p, axis=0, keepdims=True)                # (1, TQ)

    # ---- The only MXU matmul: (OUT, HW) @ (HW, TQ).  Softmax normalization
    # is deferred to the small (OUT, TQ) result and done with exact f32 math.
    y = jnp.dot(a_scr[...], p.astype(a_scr.dtype),
                preferred_element_type=jnp.float32)      # (OUT, TQ)
    y = y * (1.0 / l)

    # ---- "cur" branch of the fused 1x1 conv + BN shift: W2s @ cur[:, q] + t.
    q0 = pl.multiple_of(pl.program_id(1) * tq, tq)
    cur_q = cur_ref[:, pl.ds(q0, tq)]                    # (C, TQ)
    w2s = w2s_ref[...]
    bt = w2s[:, 0:1] * cur_q[0:1, :]
    for ci in range(1, c):
        bt = bt + w2s[:, ci:ci + 1] * cur_q[ci:ci + 1, :]
    y = y + bt + t_ref[...]

    # ---- PReLU (single shared parameter).
    alpha = alpha_ref[0]
    out_ref[...] = jnp.where(y > 0, y, alpha * y)


def _pick_q_tile(hw):
    # Prefer the MXU-native 256-wide N tile; fall back to 512 / 128, then the
    # full extent for small or unaligned spatial sizes.
    for t in (256, 512, 128):
        if hw % t == 0:
            return t
    # TODO(synk): pad HW to a multiple of 128 (and mask the tail) instead of
    # falling back to a ragged full-extent query tile for unaligned sizes.
    return hw


def sta2_forward(pre, cur, params, *, q_tile=None, matmul_dtype=jnp.float32):
    """STA2_Module forward.  BatchNorm uses inference-mode running stats."""
    b, c, h, w = cur.shape
    hw = h * w
    out_dim = params["w"].shape[0]

    if q_tile is None:
        q_tile = _pick_q_tile(hw)
    assert hw % q_tile == 0, (hw, q_tile)
    n_q = hw // q_tile

    # Channel-major and spatial-major flattened views (both tiny: B*C*HW).
    pre_f = pre.reshape(b, c, hw).astype(jnp.float32)        # (B, C, HW)
    cur_f = cur.reshape(b, c, hw).astype(jnp.float32)        # (B, C, HW)
    cur_t = cur_f.transpose(0, 2, 1)                         # (B, HW, C)

    # Fold conv bias + BatchNorm (inference) into per-channel scale/shift and
    # pre-scale the two halves of the 1x1-conv weight.  Only (OUT, C) weights
    # and an (OUT, 1) shift are passed to the kernel -- no (B, OUT, HW)
    # intermediates are ever materialized in HBM.
    w_full = params["w"].astype(jnp.float32)                 # (OUT, 2C)
    w1, w2 = w_full[:, :c], w_full[:, c:]
    eps = 1e-5
    inv_std = 1.0 / jnp.sqrt(params["bn_var"].astype(jnp.float32) + eps)
    s = params["bn_gamma"].astype(jnp.float32) * inv_std                 # (OUT,)
    shift = (params["bn_beta"].astype(jnp.float32)
             + (params["conv_b"].astype(jnp.float32)
                - params["bn_mean"].astype(jnp.float32)) * s)            # (OUT,)
    w1s = s[:, None] * w1                                    # (OUT, C)
    w2s = s[:, None] * w2                                    # (OUT, C)
    t_col = shift.reshape(out_dim, 1)                        # (OUT, 1)
    alpha = params["prelu_a"].reshape(1).astype(jnp.float32)

    cost = pl.CostEstimate(
        flops=int(2 * b * hw * hw * (c + out_dim)),
        transcendentals=int(b * hw * hw),
        bytes_accessed=int(4 * (pre_f.size + 2 * cur_f.size
                                + b * out_dim * hw + 2 * w_full.size)),
    )

    out = pl.pallas_call(
        sta2_kernel,
        out_shape=jax.ShapeDtypeStruct((b, out_dim, hw), jnp.float32),
        grid=(b, n_q),
        in_specs=[
            pl.BlockSpec((None, c, q_tile), lambda i, j: (i, 0, j)),     # pre
            pl.BlockSpec((None, c, hw), lambda i, j: (i, 0, 0)),         # cur
            pl.BlockSpec((None, hw, c), lambda i, j: (i, 0, 0)),         # cur^T
            pl.BlockSpec((out_dim, c), lambda i, j: (0, 0)),             # W1s
            pl.BlockSpec((out_dim, c), lambda i, j: (0, 0)),             # W2s
            pl.BlockSpec((out_dim, 1), lambda i, j: (0, 0)),             # shift
            pl.BlockSpec(memory_space=pltpu.MemorySpace.SMEM),           # alpha
        ],
        out_specs=pl.BlockSpec((None, out_dim, q_tile), lambda i, j: (i, 0, j)),
        scratch_shapes=[pltpu.VMEM((out_dim, hw), matmul_dtype)],
        compiler_params=pltpu.CompilerParams(
            # Query axis is 'arbitrary': the per-batch A scratch is written at
            # j == 0 and reused by the remaining query tiles of that batch.
            # Batch stays 'parallel' so the two TCs shard over batches.
            dimension_semantics=("parallel", "arbitrary"),
            vmem_limit_bytes=48 * 1024 * 1024),
        cost_estimate=cost,
    )(pre_f, cur_f, cur_t, w1s, w2s, t_col, alpha)

    return out.reshape(b, out_dim, h, w)


def sta2_reference(pre, cur, params):
    """Pure-JAX reference mirroring the torch forward (eval-mode BN)."""
    b, c, h, w = cur.shape
    hw = h * w
    pre_a = pre.reshape(b, c, hw).transpose(0, 2, 1)
    cur_a = cur.reshape(b, c, hw)
    feat = jnp.einsum("bqc,bck->bqk", pre_a, cur_a)
    feat = jax.nn.softmax(c ** (-0.5) * feat, axis=-1)
    feat = jnp.einsum("bqk,bck->bqc", feat, cur_a).transpose(0, 2, 1)  # (b,c,hw)
    fm = jnp.concatenate([feat, cur_a], axis=1)                        # (b,2c,hw)
    y = jnp.einsum("oc,bcs->bos", params["w"], fm) + params["conv_b"][None, :, None]
    eps = 1e-5
    y = (y - params["bn_mean"][None, :, None]) / jnp.sqrt(
        params["bn_var"][None, :, None] + eps)
    y = y * params["bn_gamma"][None, :, None] + params["bn_beta"][None, :, None]
    a = params["prelu_a"][0]
    y = jnp.where(y > 0, y, a * y)
    return y.reshape(b, -1, h, w)


if __name__ == "__main__":
    key = jax.random.PRNGKey(0)
    B, C, H, W = 2, 4, 16, 16
    IN_DIM = 2 * C      # channels of cat([feat, cur_a])
    OUT_DIM = 256       # BatchNorm2d(256) is hard-coded in the torch module

    k = jax.random.split(key, 6)
    pre = jax.random.normal(k[0], (B, C, H, W), jnp.float32)
    cur = jax.random.normal(k[1], (B, C, H, W), jnp.float32)

    params = {
        "w": 0.1 * jax.random.normal(k[2], (OUT_DIM, IN_DIM), jnp.float32),
        "conv_b": 0.1 * jax.random.normal(k[3], (OUT_DIM,), jnp.float32),
        "bn_gamma": 1.0 + 0.1 * jax.random.normal(k[4], (OUT_DIM,), jnp.float32),
        "bn_beta": 0.1 * jax.random.normal(k[5], (OUT_DIM,), jnp.float32),
        "bn_mean": jnp.zeros((OUT_DIM,), jnp.float32),
        "bn_var": jnp.ones((OUT_DIM,), jnp.float32),
        "prelu_a": jnp.full((1,), 0.25, jnp.float32),
    }

    ref = sta2_reference(pre, cur, params)

    # Default path: q_tile = 256 -> single query tile per batch.
    out = sta2_forward(pre, cur, params)
    jax.block_until_ready(out)
    assert out.shape == (B, OUT_DIM, H, W), out.shape
    err = float(jnp.max(jnp.abs(out - ref)))
    assert err < 1e-3, f"f32 path max abs error {err}"

    # Query-tiled path: exercises the per-batch A scratch reuse across j > 0.
    out2 = sta2_forward(pre, cur, params, q_tile=128)
    jax.block_until_ready(out2)
    err2 = float(jnp.max(jnp.abs(out2 - ref)))
    assert err2 < 1e-3, f"tiled path max abs error {err2}"

    # bf16 main-matmul path (A scratch + probs in bf16, f32 accumulation).
    out3 = sta2_forward(pre, cur, params, matmul_dtype=jnp.bfloat16)
    jax.block_until_ready(out3)
    err3 = float(jnp.max(jnp.abs(out3 - ref)))
    assert err3 < 5e-2, f"bf16 path max abs error {err3}"

    print("KERNEL_OK")
</pallas_src>

<mosaic_0001>
module attributes {stable_mosaic.version = 11 : i64} {
  func.func @sta2_kernel(%arg0: i32, %arg1: i32, %arg2: memref<1x4x256xf32, #tpu.memory_space<vmem>>, %arg3: memref<1x4x256xf32, #tpu.memory_space<vmem>>, %arg4: memref<1x256x4xf32, #tpu.memory_space<vmem>>, %arg5: memref<256x4xf32, #tpu.memory_space<vmem>>, %arg6: memref<256x4xf32, #tpu.memory_space<vmem>>, %arg7: memref<256x1xf32, #tpu.memory_space<vmem>>, %arg8: memref<1xf32, #tpu.memory_space<smem>>, %arg9: memref<1x256x256xf32, #tpu.memory_space<vmem>>, %arg10: memref<256x256xf32, #tpu.memory_space<vmem>>) attributes {dimension_semantics = [#tpu.dimension_semantics<parallel>, #tpu.dimension_semantics<arbitrary>], iteration_bounds = array<i64: 2, 1>, scalar_prefetch = 0 : i64, scratch_operands = 1 : i64, tpu.core_type = #tpu.core_type<tc>, window_params = [{transform_indices = @transform_0, window_bounds = array<i64: 1, 4, 256>}, {transform_indices = @transform_1, window_bounds = array<i64: 1, 4, 256>}, {transform_indices = @transform_2, window_bounds = array<i64: 1, 256, 4>}, {pipeline_mode = #tpu.pipeline_mode<synchronous>, transform_indices = @transform_3, window_bounds = array<i64: 256, 4>}, {pipeline_mode = #tpu.pipeline_mode<synchronous>, transform_indices = @transform_4, window_bounds = array<i64: 256, 4>}, {pipeline_mode = #tpu.pipeline_mode<synchronous>, transform_indices = @transform_5, window_bounds = array<i64: 256, 1>}, {transform_indices = @transform_6, window_bounds = array<i64: 1>}, {transform_indices = @transform_7, window_bounds = array<i64: 1, 256, 256>}]} {
    %c0_i32 = arith.constant 0 : i32
    %0 = arith.cmpi eq, %arg1, %c0_i32 : i32
    %1 = arith.extui %0 : i1 to i32
    %c0_i32_0 = arith.constant 0 : i32
    %2 = arith.cmpi ne, %1, %c0_i32_0 : i32
    scf.if %2 {
      %c0_23 = arith.constant 0 : index
      %c0_24 = arith.constant 0 : index
      %c0_25 = arith.constant 0 : index
      %87 = vector.load %arg3[%c0_23, %c0_24, %c0_25] : memref<1x4x256xf32, #tpu.memory_space<vmem>>, vector<1x4x256xf32>
      %88 = vector.shape_cast %87 : vector<1x4x256xf32> to vector<4x256xf32>
      %c0_26 = arith.constant 0 : index
      %c0_27 = arith.constant 0 : index
      %89 = vector.load %arg5[%c0_26, %c0_27] : memref<256x4xf32, #tpu.memory_space<vmem>>, vector<256x4xf32>
      %90 = vector.extract_strided_slice %89 {offsets = [0, 0], sizes = [256, 1], strides = [1, 1]} : vector<256x4xf32> to vector<256x1xf32>
      %91 = vector.extract_strided_slice %88 {offsets = [0, 0], sizes = [1, 256], strides = [1, 1]} : vector<4x256xf32> to vector<1x256xf32>
      %92 = vector.broadcast %90 : vector<256x1xf32> to vector<256x256xf32>
      %93 = vector.broadcast %91 : vector<1x256xf32> to vector<256x256xf32>
      %94 = arith.mulf %92, %93 : vector<256x256xf32>
      %95 = vector.extract_strided_slice %89 {offsets = [0, 1], sizes = [256, 1], strides = [1, 1]} : vector<256x4xf32> to vector<256x1xf32>
      %96 = vector.extract_strided_slice %88 {offsets = [1, 0], sizes = [1, 256], strides = [1, 1]} : vector<4x256xf32> to vector<1x256xf32>
      %97 = vector.broadcast %95 : vector<256x1xf32> to vector<256x256xf32>
      %98 = vector.broadcast %96 : vector<1x256xf32> to vector<256x256xf32>
      %99 = arith.mulf %97, %98 : vector<256x256xf32>
      %100 = arith.addf %94, %99 : vector<256x256xf32>
      %101 = vector.extract_strided_slice %89 {offsets = [0, 2], sizes = [256, 1], strides = [1, 1]} : vector<256x4xf32> to vector<256x1xf32>
      %102 = vector.extract_strided_slice %88 {offsets = [2, 0], sizes = [1, 256], strides = [1, 1]} : vector<4x256xf32> to vector<1x256xf32>
      %103 = vector.broadcast %101 : vector<256x1xf32> to vector<256x256xf32>
      %104 = vector.broadcast %102 : vector<1x256xf32> to vector<256x256xf32>
      %105 = arith.mulf %103, %104 : vector<256x256xf32>
      %106 = arith.addf %100, %105 : vector<256x256xf32>
      %107 = vector.extract_strided_slice %89 {offsets = [0, 3], sizes = [256, 1], strides = [1, 1]} : vector<256x4xf32> to vector<256x1xf32>
      %108 = vector.extract_strided_slice %88 {offsets = [3, 0], sizes = [1, 256], strides = [1, 1]} : vector<4x256xf32> to vector<1x256xf32>
      %109 = vector.broadcast %107 : vector<256x1xf32> to vector<256x256xf32>
      %110 = vector.broadcast %108 : vector<1x256xf32> to vector<256x256xf32>
      %111 = arith.mulf %109, %110 : vector<256x256xf32>
      %112 = arith.addf %106, %111 : vector<256x256xf32>
      %c0_28 = arith.constant 0 : index
      %c0_29 = arith.constant 0 : index
      %113 = vector.load %arg10[%c0_28, %c0_29] : memref<256x256xf32, #tpu.memory_space<vmem>>, vector<256x256xf32>
      tpu.vector_store %arg10[%c0_28, %c0_29], %112 {strides = array<i32>} : memref<256x256xf32, #tpu.memory_space<vmem>>, vector<256x256xf32>,
    } else {
    }
    %c0 = arith.constant 0 : index
    %c0_1 = arith.constant 0 : index
    %c0_2 = arith.constant 0 : index
    %3 = vector.load %arg2[%c0, %c0_1, %c0_2] : memref<1x4x256xf32, #tpu.memory_space<vmem>>, vector<1x4x256xf32>
    %4 = vector.shape_cast %3 : vector<1x4x256xf32> to vector<4x256xf32>
    %cst = arith.constant 5.000000e-01 : f32
    %5 = vector.broadcast %cst : f32 to vector<4x256xf32>
    %6 = arith.mulf %4, %5 : vector<4x256xf32>
    %c0_3 = arith.constant 0 : index
    %c0_4 = arith.constant 0 : index
    %c0_5 = arith.constant 0 : index
    %7 = vector.load %arg4[%c0_3, %c0_4, %c0_5] : memref<1x256x4xf32, #tpu.memory_space<vmem>>, vector<1x256x4xf32>
    %8 = vector.shape_cast %7 : vector<1x256x4xf32> to vector<256x4xf32>
    %9 = vector.extract_strided_slice %8 {offsets = [0, 0], sizes = [256, 1], strides = [1, 1]} : vector<256x4xf32> to vector<256x1xf32>
    %10 = vector.extract_strided_slice %6 {offsets = [0, 0], sizes = [1, 256], strides = [1, 1]} : vector<4x256xf32> to vector<1x256xf32>
    %11 = vector.broadcast %9 : vector<256x1xf32> to vector<256x256xf32>
    %12 = vector.broadcast %10 : vector<1x256xf32> to vector<256x256xf32>
    %13 = arith.mulf %11, %12 : vector<256x256xf32>
    %14 = vector.extract_strided_slice %8 {offsets = [0, 1], sizes = [256, 1], strides = [1, 1]} : vector<256x4xf32> to vector<256x1xf32>
    %15 = vector.extract_strided_slice %6 {offsets = [1, 0], sizes = [1, 256], strides = [1, 1]} : vector<4x256xf32> to vector<1x256xf32>
    %16 = vector.broadcast %14 : vector<256x1xf32> to vector<256x256xf32>
    %17 = vector.broadcast %15 : vector<1x256xf32> to vector<256x256xf32>
    %18 = arith.mulf %16, %17 : vector<256x256xf32>
    %19 = arith.addf %13, %18 : vector<256x256xf32>
    %20 = vector.extract_strided_slice %8 {offsets = [0, 2], sizes = [256, 1], strides = [1, 1]} : vector<256x4xf32> to vector<256x1xf32>
    %21 = vector.extract_strided_slice %6 {offsets = [2, 0], sizes = [1, 256], strides = [1, 1]} : vector<4x256xf32> to vector<1x256xf32>
    %22 = vector.broadcast %20 : vector<256x1xf32> to vector<256x256xf32>
    %23 = vector.broadcast %21 : vector<1x256xf32> to vector<256x256xf32>
    %24 = arith.mulf %22, %23 : vector<256x256xf32>
    %25 = arith.addf %19, %24 : vector<256x256xf32>
    %26 = vector.extract_strided_slice %8 {offsets = [0, 3], sizes = [256, 1], strides = [1, 1]} : vector<256x4xf32> to vector<256x1xf32>
    %27 = vector.extract_strided_slice %6 {offsets = [3, 0], sizes = [1, 256], strides = [1, 1]} : vector<4x256xf32> to vector<1x256xf32>
    %28 = vector.broadcast %26 : vector<256x1xf32> to vector<256x256xf32>
    %29 = vector.broadcast %27 : vector<1x256xf32> to vector<256x256xf32>
    %30 = arith.mulf %28, %29 : vector<256x256xf32>
    %31 = arith.addf %25, %30 : vector<256x256xf32>
    %cst_6 = arith.constant dense<0xFF800000> : vector<256xf32>
    %32 = vector.multi_reduction <maximumf>, %31, %cst_6 [0] : vector<256x256xf32> to vector<256xf32>
    %33 = vector.shape_cast %32 : vector<256xf32> to vector<1x256xf32>
    %34 = vector.broadcast %33 : vector<1x256xf32> to vector<256x256xf32>
    %35 = arith.subf %31, %34 : vector<256x256xf32>
    %36 = math.exp %35 : vector<256x256xf32>
    %cst_7 = arith.constant dense<0.000000e+00> : vector<256xf32>
    %37 = vector.multi_reduction <add>, %36, %cst_7 [0] : vector<256x256xf32> to vector<256xf32>
    %38 = vector.shape_cast %37 : vector<256xf32> to vector<1x256xf32>
    %c0_8 = arith.constant 0 : index
    %c0_9 = arith.constant 0 : index
    %39 = vector.load %arg10[%c0_8, %c0_9] : memref<256x256xf32, #tpu.memory_space<vmem>>, vector<256x256xf32>
    %cst_10 = arith.constant dense<0.000000e+00> : vector<256x256xf32>
    %40 = tpu.matmul %39, %36, %cst_10 {dimension_numbers = #tpu.dot_dimension_numbers<[1], [0], [0], [1], [0, 0, 1, 1], [], []>} : vector<256x256xf32>, vector<256x256xf32>, vector<256x256xf32> -> vector<256x256xf32>
    %cst_11 = arith.constant 1.000000e+00 : f32
    %41 = vector.broadcast %cst_11 : f32 to vector<1x256xf32>
    %42 = arith.divf %41, %38 : vector<1x256xf32>
    %43 = vector.broadcast %42 : vector<1x256xf32> to vector<256x256xf32>
    %44 = arith.mulf %40, %43 : vector<256x256xf32>
    %c256_i32 = arith.constant 256 : i32
    %45 = arith.muli %arg1, %c256_i32 : i32
    %46 = tpu.assume_multiple %45, 256 : i32
    %c0_12 = arith.constant 0 : index
    %c0_13 = arith.constant 0 : index
    %47 = arith.index_cast %46 : i32 to index
    %48 = vector.load %arg3[%c0_12, %c0_13, %47] : memref<1x4x256xf32, #tpu.memory_space<vmem>>, vector<1x4x256xf32>
    %49 = vector.shape_cast %48 : vector<1x4x256xf32> to vector<4x256xf32>
    %c0_14 = arith.constant 0 : index
    %c0_15 = arith.constant 0 : index
    %50 = vector.load %arg6[%c0_14, %c0_15] : memref<256x4xf32, #tpu.memory_space<vmem>>, vector<256x4xf32>
    %51 = vector.extract_strided_slice %50 {offsets = [0, 0], sizes = [256, 1], strides = [1, 1]} : vector<256x4xf32> to vector<256x1xf32>
    %52 = vector.extract_strided_slice %49 {offsets = [0, 0], sizes = [1, 256], strides = [1, 1]} : vector<4x256xf32> to vector<1x256xf32>
    %53 = vector.broadcast %51 : vector<256x1xf32> to vector<256x256xf32>
    %54 = vector.broadcast %52 : vector<1x256xf32> to vector<256x256xf32>
    %55 = arith.mulf %53, %54 : vector<256x256xf32>
    %56 = vector.extract_strided_slice %50 {offsets = [0, 1], sizes = [256, 1], strides = [1, 1]} : vector<256x4xf32> to vector<256x1xf32>
    %57 = vector.extract_strided_slice %49 {offsets = [1, 0], sizes = [1, 256], strides = [1, 1]} : vector<4x256xf32> to vector<1x256xf32>
    %58 = vector.broadcast %56 : vector<256x1xf32> to vector<256x256xf32>
    %59 = vector.broadcast %57 : vector<1x256xf32> to vector<256x256xf32>
    %60 = arith.mulf %58, %59 : vector<256x256xf32>
    %61 = arith.addf %55, %60 : vector<256x256xf32>
    %62 = vector.extract_strided_slice %50 {offsets = [0, 2], sizes = [256, 1], strides = [1, 1]} : vector<256x4xf32> to vector<256x1xf32>
    %63 = vector.extract_strided_slice %49 {offsets = [2, 0], sizes = [1, 256], strides = [1, 1]} : vector<4x256xf32> to vector<1x256xf32>
    %64 = vector.broadcast %62 : vector<256x1xf32> to vector<256x256xf32>
    %65 = vector.broadcast %63 : vector<1x256xf32> to vector<256x256xf32>
    %66 = arith.mulf %64, %65 : vector<256x256xf32>
    %67 = arith.addf %61, %66 : vector<256x256xf32>
    %68 = vector.extract_strided_slice %50 {offsets = [0, 3], sizes = [256, 1], strides = [1, 1]} : vector<256x4xf32> to vector<256x1xf32>
    %69 = vector.extract_strided_slice %49 {offsets = [3, 0], sizes = [1, 256], strides = [1, 1]} : vector<4x256xf32> to vector<1x256xf32>
    %70 = vector.broadcast %68 : vector<256x1xf32> to vector<256x256xf32>
    %71 = vector.broadcast %69 : vector<1x256xf32> to vector<256x256xf32>
    %72 = arith.mulf %70, %71 : vector<256x256xf32>
    %73 = arith.addf %67, %72 : vector<256x256xf32>
    %74 = arith.addf %44, %73 : vector<256x256xf32>
    %c0_16 = arith.constant 0 : index
    %c0_17 = arith.constant 0 : index
    %75 = vector.load %arg7[%c0_16, %c0_17] : memref<256x1xf32, #tpu.memory_space<vmem>>, vector<256x1xf32>
    %76 = vector.broadcast %75 : vector<256x1xf32> to vector<256x256xf32>
    %77 = arith.addf %74, %76 : vector<256x256xf32>
    %c0_18 = arith.constant 0 : index
    %78 = memref.load %arg8[%c0_18] : memref<1xf32, #tpu.memory_space<smem>>
    %cst_19 = arith.constant 0.000000e+00 : f32
    %79 = vector.broadcast %cst_19 : f32 to vector<256x256xf32>
    %80 = arith.cmpf ogt, %77, %79 : vector<256x256xf32>
    %81 = vector.broadcast %78 : f32 to vector<256x256xf32>
    %82 = arith.mulf %81, %77 : vector<256x256xf32>
    %83 = arith.select %80, %77, %82 : vector<256x256xi1>, vector<256x256xf32>
    %c0_20 = arith.constant 0 : index
    %c0_21 = arith.constant 0 : index
    %c0_22 = arith.constant 0 : index
    %84 = vector.load %arg9[%c0_20, %c0_21, %c0_22] : memref<1x256x256xf32, #tpu.memory_space<vmem>>, vector<1x256x256xf32>
    %85 = vector.shape_cast %84 : vector<1x256x256xf32> to vector<256x256xf32>
    %86 = vector.shape_cast %83 : vector<256x256xf32> to vector<1x256x256xf32>
    tpu.vector_store %arg9[%c0_20, %c0_21, %c0_22], %86 {strides = array<i32>} : memref<1x256x256xf32, #tpu.memory_space<vmem>>, vector<1x256x256xf32>,
    return
  }
  func.func @transform_0(%arg0: i32, %arg1: i32) -> (i32, i32, i32) {
    %c0_i32 = arith.constant 0 : i32
    %c0_i32_0 = arith.constant 0 : i32
    return %arg0, %c0_i32, %arg1 : i32, i32, i32
  }
  func.func @transform_1(%arg0: i32, %arg1: i32) -> (i32, i32, i32) {
    %c0_i32 = arith.constant 0 : i32
    %c0_i32_0 = arith.constant 0 : i32
    %c0_i32_1 = arith.constant 0 : i32
    return %arg0, %c0_i32, %c0_i32_0 : i32, i32, i32
  }
  func.func @transform_2(%arg0: i32, %arg1: i32) -> (i32, i32, i32) {
    %c0_i32 = arith.constant 0 : i32
    %c0_i32_0 = arith.constant 0 : i32
    %c0_i32_1 = arith.constant 0 : i32
    return %arg0, %c0_i32, %c0_i32_0 : i32, i32, i32
  }
  func.func @transform_3(%arg0: i32, %arg1: i32) -> (i32, i32) {
    %c0_i32 = arith.constant 0 : i32
    %c0_i32_0 = arith.constant 0 : i32
    %c0_i32_1 = arith.constant 0 : i32
    return %c0_i32, %c0_i32_0 : i32, i32
  }
  func.func @transform_4(%arg0: i32, %arg1: i32) -> (i32, i32) {
    %c0_i32 = arith.constant 0 : i32
    %c0_i32_0 = arith.constant 0 : i32
    %c0_i32_1 = arith.constant 0 : i32
    return %c0_i32, %c0_i32_0 : i32, i32
  }
  func.func @transform_5(%arg0: i32, %arg1: i32) -> (i32, i32) {
    %c0_i32 = arith.constant 0 : i32
    %c0_i32_0 = arith.constant 0 : i32
    %c0_i32_1 = arith.constant 0 : i32
    return %c0_i32, %c0_i32_0 : i32, i32
  }
  func.func @transform_6(%arg0: i32, %arg1: i32) -> i32 {
    %c0_i32 = arith.constant 0 : i32
    %c0_i32_0 = arith.constant 0 : i32
    return %c0_i32 : i32
  }
  func.func @transform_7(%arg0: i32, %arg1: i32) -> (i32, i32, i32) {
    %c0_i32 = arith.constant 0 : i32
    %c0_i32_0 = arith.constant 0 : i32
    return %arg0, %c0_i32, %arg1 : i32, i32, i32
  }
}

</mosaic_0001>

<llo_original>
// kernel: tpu_custom_call.1
$region0: #{tpu_custom_call.1}
  #allocation0 [shape = 'u32[]', space=smem, size = 0x4, offset = 0x4, fixed_abs, tag = 'smem constant byte address 0x4 - core index']
  #allocation1 [shape = 'u32[144,128]{1,0:T(1,128)}', space=vmem, size = 0x12000, scoped, tag = 'internal scratch']
  #allocation2 [shape = 'f32[256,256]{1,0:T(8,128)}', space=vmem, size = 0x40000, scoped, tag = 'scratch operand']
  #allocation3 [shape = 'f32[1]{0:T(128)S(6)}', space=smem, size = 0x200, scoped, tag = 'scoped memory for tpu_custom_call.1']
  %s0 = inlined_call_operand.vmem [shape: f32[2,4,256], index: 0, kind: input, shape index: {}]
  %s1 = inlined_call_operand.vmem [shape: f32[2,4,256], index: 1, kind: input, shape index: {}]
  %s2 = inlined_call_operand.vmem [shape: f32[2,256,4], index: 2, kind: input, shape index: {}]
  %s3 = inlined_call_operand.vmem [shape: f32[256,4], index: 3, kind: input, shape index: {}]
  %s4 = inlined_call_operand.vmem [shape: f32[256,4], index: 4, kind: input, shape index: {}]
  %s5 = inlined_call_operand.vmem [shape: f32[256,1], index: 5, kind: input, shape index: {}]
  %s6 = inlined_call_operand.<no memory space> [shape: f32[1], index: 6, kind: input, shape index: {}]
  %s7 = inlined_call_operand.hbm [shape: f32[2,256,256], index: 7, kind: output, shape index: {}]
  %s8 = sld [smem:[#allocation0]]
  $region65: #{tpu_custom_call.1} parent=0
    _
  %s10 = ssub.s32 1, %s8
  %s11 = scalar_select 0, %s10, %s8
  %12 = sst [smem:[#allocation3]] %s6
  $region1: #{tpu_custom_call.1} parent=0
    #allocation4 [shape = 'u8[524288]{0}', space=vmem, size = 0x80000, scoped, tag = 'output window, operand 0']
    #allocation5 [shape = 's32[2]{0}', space=sflag, size = 0x8, scoped, tag = 'scoped memory for tpu_custom_call.1']
    %13 = vsyncpa [#allocation5], 0
    %s14 = scalar_lea.sflag [#allocation5], 1
    %15 = vsyncpa %s14, 0
    loop: start=0, step=1, limit=4
    $region2: #{tpu_custom_call.1} parent=1 // loop_pre_header
      _
    $region3: #{tpu_custom_call.1} parent=1 // loop_header
      %s17 = sphi 0, %s21
      %p18 = scmp.ge.s32.totalorder %s17, 4
      %s24 = sphi 0, %s36
      %s25 = sphi 0, %s32
      %s26 = sphi 0, %s24
      %s27 = sphi 0, %s25
      %s28 = sphi 0, %s26
      %s29 = sphi 0, %s27
      %s41 = sphi 0, %s43
      %s44 = sphi 0, %s41
      %s45 = sphi 0, %s44
      %s61 = sphi 0, %s45
      %s67 = sphi 0, %s69
      %s70 = sphi 0, %s67
      %s71 = sphi 0, %s70
      %s87 = sphi 0, %s71
      %s93 = sphi 0, %s95
      %s96 = sphi 0, %s93
      %s97 = sphi 0, %s96
      %s113 = sphi 0, %s97
      %s117 = sphi 0, %s117
      %s119 = sphi 0, %s117
      %s120 = sphi 0, %s119
      %s134 = sphi 0, %s120
      %s138 = sphi 0, %s138
      %s140 = sphi 0, %s138
      %s141 = sphi 0, %s140
      %s155 = sphi 0, %s141
      %s159 = sphi 0, %s159
      %s161 = sphi 0, %s159
      %s162 = sphi 0, %s161
      %s176 = sphi 0, %s162
      %s180 = sphi 0, %s180
      %s182 = sphi 0, %s180
      %s183 = sphi 0, %s182
      %s197 = sphi 0, %s183
      %s205 = sphi 0, %s207
      %s208 = sphi 0, %s205
      %s209 = sphi 0, %s208
      %s225 = sphi 0, %s209
    $region4: #{tpu_custom_call.1} parent=1 // loop_header_branch
      %20 = sbr.rel (%p18) target = $region8
    $region5: #{tpu_custom_call.1} parent=1 // loop_body
      %s22 = ssub.s32 %s17, 1
      %s23 = ssub.s32 %s17, 2
      %s30 = sadd.s32 1, %s25
      %p31 = scmp.ge.s32.totalorder %s30, 1
      %s32 = scalar_select %p31, 0, %s30
      %s33 = sadd.s32 1, %s24
      %s34 = scalar_select %p31, %s33, %s24
      %p35 = scmp.ge.s32.totalorder %s34, 2
      %s36 = scalar_select %p35, 0, %s34
      %s37 = ssub.s32 %s24, %s36
      %s38 = ssub.s32 %s25, %s32
      %s39 = sor.u32 %s37, %s38
      %p40 = scmp.eq.s32.totalorder %s39, 0
      %s42 = sadd.s32 %s41, 1
      %s43 = scalar_select %p40, %s41, %s42
      %p46 = pneg %p40
      %p47 = scmp.eq.s32.totalorder %s17, 1
      %p48 = por %p46, %p47
      %p49 = scmp.ne.s32.totalorder %s41, %s44
      %p50 = scmp.eq.s32.totalorder %s17, 0
      %p51 = por %p49, %p50
      %p52 = scmp.ne.s32.totalorder %s41, %s44
      %p53 = scmp.eq.s32.totalorder %s22, 1
      %p54 = por %p52, %p53
      %p55 = scmp.ne.s32.totalorder %s44, %s45
      %p56 = scmp.eq.s32.totalorder %s22, 0
      %p57 = por %p55, %p56
      %p58 = scmp.ne.s32.totalorder %s44, %s45
      %p59 = scmp.eq.s32.totalorder %s23, 1
      %p60 = por %p58, %p59
      %p62 = scmp.ne.s32.totalorder %s45, %s61
      %p63 = scmp.eq.s32.totalorder %s23, 0
      %p64 = por %p62, %p63
      %s65 = ssub.s32 %s24, %s36
      %p66 = scmp.eq.s32.totalorder %s65, 0
      %s68 = sadd.s32 %s67, 1
      %s69 = scalar_select %p66, %s67, %s68
      %p72 = pneg %p66
      %p73 = scmp.eq.s32.totalorder %s17, 1
      %p74 = por %p72, %p73
      %p75 = scmp.ne.s32.totalorder %s67, %s70
      %p76 = scmp.eq.s32.totalorder %s17, 0
      %p77 = por %p75, %p76
      %p78 = scmp.ne.s32.totalorder %s67, %s70
      %p79 = scmp.eq.s32.totalorder %s22, 1
      %p80 = por %p78, %p79
      %p81 = scmp.ne.s32.totalorder %s70, %s71
      %p82 = scmp.eq.s32.totalorder %s22, 0
      %p83 = por %p81, %p82
      %p84 = scmp.ne.s32.totalorder %s70, %s71
      %p85 = scmp.eq.s32.totalorder %s23, 1
      %p86 = por %p84, %p85
      %p88 = scmp.ne.s32.totalorder %s71, %s87
      %p89 = scmp.eq.s32.totalorder %s23, 0
      %p90 = por %p88, %p89
      %s91 = ssub.s32 %s24, %s36
      %p92 = scmp.eq.s32.totalorder %s91, 0
      %s94 = sadd.s32 %s93, 1
      %s95 = scalar_select %p92, %s93, %s94
      %p98 = pneg %p92
      %p99 = scmp.eq.s32.totalorder %s17, 1
      %p100 = por %p98, %p99
      %p101 = scmp.ne.s32.totalorder %s93, %s96
      %p102 = scmp.eq.s32.totalorder %s17, 0
      %p103 = por %p101, %p102
      %p104 = scmp.ne.s32.totalorder %s93, %s96
      %p105 = scmp.eq.s32.totalorder %s22, 1
      %p106 = por %p104, %p105
      %p107 = scmp.ne.s32.totalorder %s96, %s97
      %p108 = scmp.eq.s32.totalorder %s22, 0
      %p109 = por %p107, %p108
      %p110 = scmp.ne.s32.totalorder %s96, %s97
      %p111 = scmp.eq.s32.totalorder %s23, 1
      %p112 = por %p110, %p111
      %p114 = scmp.ne.s32.totalorder %s97, %s113
      %p115 = scmp.eq.s32.totalorder %s23, 0
      %p116 = por %p114, %p115
      %s118 = sadd.s32 %s117, 1
      %p121 = scmp.eq.s32.totalorder %s17, 1
      %p122 = scmp.ne.s32.totalorder %s117, %s119
      %p123 = scmp.eq.s32.totalorder %s17, 0
      %p124 = por %p122, %p123
      %p125 = scmp.ne.s32.totalorder %s117, %s119
      %p126 = scmp.eq.s32.totalorder %s22, 1
      %p127 = por %p125, %p126
      %p128 = scmp.ne.s32.totalorder %s119, %s120
      %p129 = scmp.eq.s32.totalorder %s22, 0
      %p130 = por %p128, %p129
      %p131 = scmp.ne.s32.totalorder %s119, %s120
      %p132 = scmp.eq.s32.totalorder %s23, 1
      %p133 = por %p131, %p132
      %p135 = scmp.ne.s32.totalorder %s120, %s134
      %p136 = scmp.eq.s32.totalorder %s23, 0
      %p137 = por %p135, %p136
      %s139 = sadd.s32 %s138, 1
      %p142 = scmp.eq.s32.totalorder %s17, 1
      %p143 = scmp.ne.s32.totalorder %s138, %s140
      %p144 = scmp.eq.s32.totalorder %s17, 0
      %p145 = por %p143, %p144
      %p146 = scmp.ne.s32.totalorder %s138, %s140
      %p147 = scmp.eq.s32.totalorder %s22, 1
      %p148 = por %p146, %p147
      %p149 = scmp.ne.s32.totalorder %s140, %s141
      %p150 = scmp.eq.s32.totalorder %s22, 0
      %p151 = por %p149, %p150
      %p152 = scmp.ne.s32.totalorder %s140, %s141
      %p153 = scmp.eq.s32.totalorder %s23, 1
      %p154 = por %p152, %p153
      %p156 = scmp.ne.s32.totalorder %s141, %s155
      %p157 = scmp.eq.s32.totalorder %s23, 0
      %p158 = por %p156, %p157
      %s160 = sadd.s32 %s159, 1
      %p163 = scmp.eq.s32.totalorder %s17, 1
      %p164 = scmp.ne.s32.totalorder %s159, %s161
      %p165 = scmp.eq.s32.totalorder %s17, 0
      %p166 = por %p164, %p165
      %p167 = scmp.ne.s32.totalorder %s159, %s161
      %p168 = scmp.eq.s32.totalorder %s22, 1
      %p169 = por %p167, %p168
      %p170 = scmp.ne.s32.totalorder %s161, %s162
      %p171 = scmp.eq.s32.totalorder %s22, 0
      %p172 = por %p170, %p171
      %p173 = scmp.ne.s32.totalorder %s161, %s162
      %p174 = scmp.eq.s32.totalorder %s23, 1
      %p175 = por %p173, %p174
      %p177 = scmp.ne.s32.totalorder %s162, %s176
      %p178 = scmp.eq.s32.totalorder %s23, 0
      %p179 = por %p177, %p178
      %s181 = sadd.s32 %s180, 1
      %p184 = scmp.eq.s32.totalorder %s17, 1
      %p185 = scmp.ne.s32.totalorder %s180, %s182
      %p186 = scmp.eq.s32.totalorder %s17, 0
      %p187 = por %p185, %p186
      %p188 = scmp.ne.s32.totalorder %s180, %s182
      %p189 = scmp.eq.s32.totalorder %s22, 1
      %p190 = por %p188, %p189
      %p191 = scmp.ne.s32.totalorder %s182, %s183
      %p192 = scmp.eq.s32.totalorder %s22, 0
      %p193 = por %p191, %p192
      %p194 = scmp.ne.s32.totalorder %s182, %s183
      %p195 = scmp.eq.s32.totalorder %s23, 1
      %p196 = por %p194, %p195
      %p198 = scmp.ne.s32.totalorder %s183, %s197
      %p199 = scmp.eq.s32.totalorder %s23, 0
      %p200 = por %p198, %p199
      %s201 = ssub.s32 %s24, %s36
      %s202 = ssub.s32 %s25, %s32
      %s203 = sor.u32 %s201, %s202
      %p204 = scmp.eq.s32.totalorder %s203, 0
      %s206 = sadd.s32 %s205, 1
      %s207 = scalar_select %p204, %s205, %s206
      %p210 = pneg %p204
      %p211 = scmp.eq.s32.totalorder %s17, 1
      %p212 = por %p210, %p211
      %p213 = scmp.ne.s32.totalorder %s205, %s208
      %p214 = scmp.eq.s32.totalorder %s17, 0
      %p215 = por %p213, %p214
      %p216 = scmp.ne.s32.totalorder %s205, %s208
      %p217 = scmp.eq.s32.totalorder %s22, 1
      %p218 = por %p216, %p217
      %p219 = scmp.ne.s32.totalorder %s208, %s209
      %p220 = scmp.eq.s32.totalorder %s22, 0
      %p221 = por %p219, %p220
      %p222 = scmp.ne.s32.totalorder %s208, %s209
      %p223 = scmp.eq.s32.totalorder %s23, 1
      %p224 = por %p222, %p223
      %p226 = scmp.ne.s32.totalorder %s209, %s225
      %p227 = scmp.eq.s32.totalorder %s23, 0
      %p228 = por %p226, %p227
      %p229 = scmp.le.s32.totalorder 1, %s17
      %p230 = scmp.lt.s32.totalorder %s17, 3
      %p231 = pnand %p229, %p230
      %p232 = pneg %p231
      // Predicated region
      $region9: #{tpu_custom_call.1} parent=5 // pred_check
        _
      $region10: #{tpu_custom_call.1} parent=5 // pred_check_branch
        %234 = sbr.rel (%p231) target = $region12
      $region11: #{tpu_custom_call.1} parent=5 // pred_region
        %s235 = ssub.s32 %s17, 1
        // Predicated region
        $region13: #{tpu_custom_call.1} parent=11 // pred_check
          %p236 = pneg %p130
        $region14: #{tpu_custom_call.1} parent=11 // pred_check_branch
          %238 = sbr.rel (%p236) target = $region16
        $region15: #{tpu_custom_call.1} parent=11 // pred_region
          _
        $region16: #{tpu_custom_call.1} parent=11 // pred_fallthru
          _
        // Predicated region
        $region17: #{tpu_custom_call.1} parent=11 // pred_check
          %p239 = pneg %p151
        $region18: #{tpu_custom_call.1} parent=11 // pred_check_branch
          %241 = sbr.rel (%p239) target = $region20
        $region19: #{tpu_custom_call.1} parent=11 // pred_region
          _
        $region20: #{tpu_custom_call.1} parent=11 // pred_fallthru
          _
        // Predicated region
        $region21: #{tpu_custom_call.1} parent=11 // pred_check
          %p242 = pneg %p172
        $region22: #{tpu_custom_call.1} parent=11 // pred_check_branch
          %244 = sbr.rel (%p242) target = $region24
        $region23: #{tpu_custom_call.1} parent=11 // pred_region
          _
        $region24: #{tpu_custom_call.1} parent=11 // pred_fallthru
          _
        // Predicated region
        $region25: #{tpu_custom_call.1} parent=11 // pred_check
          %p245 = pneg %p193
        $region26: #{tpu_custom_call.1} parent=11 // pred_check_branch
          %247 = sbr.rel (%p245) target = $region28
        $region27: #{tpu_custom_call.1} parent=11 // pred_region
          _
        $region28: #{tpu_custom_call.1} parent=11 // pred_fallthru
          _
      $region12: #{tpu_custom_call.1} parent=5 // pred_fallthru
        _
      %p248 = scmp.lt.s32.totalorder %s17, 2
      // Predicated region
      $region29: #{tpu_custom_call.1} parent=5 // pred_check
        %p249 = pneg %p248
      $region30: #{tpu_custom_call.1} parent=5 // pred_check_branch
        %251 = sbr.rel (%p249) target = $region32
      $region31: #{tpu_custom_call.1} parent=5 // pred_region
        // Predicated region
        $region33: #{tpu_custom_call.1} parent=31 // pred_check
          %p252 = pneg %p51
        $region34: #{tpu_custom_call.1} parent=31 // pred_check_branch
          %254 = sbr.rel (%p252) target = $region36
        $region35: #{tpu_custom_call.1} parent=31 // pred_region
          %s255 = smul.u32 2, %s25
          %p256 = scmp.lt.s32.totalorder %s24, 1
          %s257 = scalar_select %p256, %s24, 1
          %p258 = scmp.lt.s32.totalorder %s255, 1
          %s259 = scalar_select %p258, %s255, 1
          %s260 = smul.addr %s257, 2
          %s261 = sadd.s32 %s259, %s260
          %s262 = smul.addr %s261, 4
          %s263 = scalar_lea.vmem %s0, %s262
          %s264 = smul.u32 2, %s25
        $region36: #{tpu_custom_call.1} parent=31 // pred_fallthru
          _
        // Predicated region
        $region37: #{tpu_custom_call.1} parent=31 // pred_check
          %p265 = pneg %p77
        $region38: #{tpu_custom_call.1} parent=31 // pred_check_branch
          %267 = sbr.rel (%p265) target = $region40
        $region39: #{tpu_custom_call.1} parent=31 // pred_region
          %p268 = scmp.lt.s32.totalorder %s24, 1
          %s269 = scalar_select %p268, %s24, 1
          %s270 = smul.addr %s269, 2
          %s271 = smul.addr %s270, 4
          %s272 = scalar_lea.vmem %s1, %s271
        $region40: #{tpu_custom_call.1} parent=31 // pred_fallthru
          _
        // Predicated region
        $region41: #{tpu_custom_call.1} parent=31 // pred_check
          %p273 = pneg %p103
        $region42: #{tpu_custom_call.1} parent=31 // pred_check_branch
          %275 = sbr.rel (%p273) target = $region44
        $region43: #{tpu_custom_call.1} parent=31 // pred_region
          %p276 = scmp.lt.s32.totalorder %s24, 1
          %s277 = scalar_select %p276, %s24, 1
          %s278 = smul.addr %s277, 32
          %s279 = smul.addr %s278, 8
          %s280 = scalar_lea.vmem %s2, %s279
        $region44: #{tpu_custom_call.1} parent=31 // pred_fallthru
          _
      $region32: #{tpu_custom_call.1} parent=5 // pred_fallthru
        _
      %p281 = scmp.le.s32.totalorder 1, %s17
      %p282 = scmp.lt.s32.totalorder %s17, 3
      %p283 = pnand %p281, %p282
      %p284 = pneg %p283
      // Predicated region
      $region45: #{tpu_custom_call.1} parent=5 // pred_check
        _
      $region46: #{tpu_custom_call.1} parent=5 // pred_check_branch
        %286 = sbr.rel (%p283) target = $region48
      $region47: #{tpu_custom_call.1} parent=5 // pred_region
        %s287 = ssub.s32 %s17, 1
        %s288 = smul.u32 2, %s27
        %p289 = scmp.lt.s32.totalorder %s26, 1
        %s290 = scalar_select %p289, %s26, 1
        %p291 = scmp.lt.s32.totalorder %s288, 1
        %s292 = scalar_select %p291, %s288, 1
        %s293 = smul.addr %s290, 2
        %s294 = sadd.s32 %s292, %s293
        %s295 = smul.addr %s294, 4
        %s296 = scalar_lea.vmem %s0, %s295
        %p297 = pneg %p57
        %p298 = pneg %p54
        %p299 = scmp.lt.s32.totalorder %s26, 1
        %s300 = scalar_select %p299, %s26, 1
        %s301 = smul.addr %s300, 2
        %s302 = smul.addr %s301, 4
        %s303 = scalar_lea.vmem %s1, %s302
        %p304 = pneg %p83
        %p305 = pneg %p80
        %p306 = scmp.lt.s32.totalorder %s26, 1
        %s307 = scalar_select %p306, %s26, 1
        %s308 = smul.addr %s307, 32
        %s309 = smul.addr %s308, 8
        %s310 = scalar_lea.vmem %s2, %s309
        %p311 = pneg %p109
        %p312 = pneg %p106
        %p313 = pneg %p130
        %p314 = pneg %p127
        %p315 = pneg %p151
        %p316 = pneg %p148
        %p317 = pneg %p172
        %p318 = pneg %p169
        %p319 = pneg %p193
        %p320 = pneg %p190
        %p321 = pneg %p221
        %p322 = pneg %p218
        %s323 = sand.u32 %s208, 1
        %s324 = scalar_lea.sflag [#allocation5], %s323
        %s325 = sand.u32 %s208, 1
        %s326 = smul.addr %s325, 512
        %s327 = scalar_lea.vmem [#allocation4], %s326
        %s328 = smul.u32 2, %s27
        %p329 = scmp.lt.s32.totalorder %s26, 1
        %s330 = scalar_select %p329, %s26, 1
        %p331 = scmp.lt.s32.totalorder %s328, 1
        %s332 = scalar_select %p331, %s328, 1
        %s333 = smul.addr %s330, 2
        %s334 = sadd.s32 %s332, %s333
        %s335 = smul.addr %s334, 4
        %s336 = scalar_lea.vmem %s0, %s335
        %s337 = smul.u32 2, %s27
        %p338 = scmp.lt.s32.totalorder %s26, 1
        %s339 = scalar_select %p338, %s26, 1
        %s340 = smul.addr %s339, 2
        %s341 = smul.addr %s340, 4
        %s342 = scalar_lea.vmem %s1, %s341
        %p343 = scmp.lt.s32.totalorder %s26, 1
        %s344 = scalar_select %p343, %s26, 1
        %s345 = smul.addr %s344, 32
        %s346 = smul.addr %s345, 8
        %s347 = scalar_lea.vmem %s2, %s346
        %s348 = smul.u32 2, %s27
        %p349 = scmp.eq.s32.totalorder %s27, 0
        // Predicated region
        $region49: #{tpu_custom_call.1} parent=47 // pred_check
          %p350 = pneg %p349
        $region50: #{tpu_custom_call.1} parent=47 // pred_check_branch
          %352 = sbr.rel (%p350) target = $region52
        $region51: #{tpu_custom_call.1} parent=47 // pred_region
          %v353 = vld [vmem:[%s342] sm:$0xff]
          %v354 = vld [vmem:[%s3] sm:$0xff]
          %v355 = vld [vmem:[%s3 + $0x8] sm:$0xff]
          %v356 = vld [vmem:[%s3 + $0x10] sm:$0xff]
          %v357 = vld [vmem:[%s3 + $0x18] sm:$0xff]
          %v358 = vld [vmem:[%s3 + $0x20] sm:$0xff]
          %v359 = vld [vmem:[%s3 + $0x28] sm:$0xff]
          %v360 = vld [vmem:[%s3 + $0x30] sm:$0xff]
          %v361 = vld [vmem:[%s3 + $0x38] sm:$0xff]
          %v362 = vld [vmem:[%s3 + $0x40] sm:$0xff]
          %v363 = vld [vmem:[%s3 + $0x48] sm:$0xff]
          %v364 = vld [vmem:[%s3 + $0x50] sm:$0xff]
          %v365 = vld [vmem:[%s3 + $0x58] sm:$0xff]
          %v366 = vld [vmem:[%s3 + $0x60] sm:$0xff]
          %v367 = vld [vmem:[%s3 + $0x68] sm:$0xff]
          %v368 = vld [vmem:[%s3 + $0x70] sm:$0xff]
          %v369 = vld [vmem:[%s3 + $0x78] sm:$0xff]
          %v370 = vld [vmem:[%s3 + $0x80] sm:$0xff]
          %v371 = vld [vmem:[%s3 + $0x88] sm:$0xff]
          %v372 = vld [vmem:[%s3 + $0x90] sm:$0xff]
          %v373 = vld [vmem:[%s3 + $0x98] sm:$0xff]
          %v374 = vld [vmem:[%s3 + $0xa0] sm:$0xff]
          %v375 = vld [vmem:[%s3 + $0xa8] sm:$0xff]
          %v376 = vld [vmem:[%s3 + $0xb0] sm:$0xff]
          %v377 = vld [vmem:[%s3 + $0xb8] sm:$0xff]
          %v378 = vld [vmem:[%s3 + $0xc0] sm:$0xff]
          %v379 = vld [vmem:[%s3 + $0xc8] sm:$0xff]
          %v380 = vld [vmem:[%s3 + $0xd0] sm:$0xff]
          %v381 = vld [vmem:[%s3 + $0xd8] sm:$0xff]
          %v382 = vld [vmem:[%s3 + $0xe0] sm:$0xff]
          %v383 = vld [vmem:[%s3 + $0xe8] sm:$0xff]
          %v384 = vld [vmem:[%s3 + $0xf0] sm:$0xff]
          %v385 = vld [vmem:[%s3 + $0xf8] sm:$0xff]
          %387 = vset.pattern.permute.xlu0 0
          %388 = vperm.xlu0 %387, %v354
          %v389 = vpop.permute.xlu0 %388
          %392 = vset.pattern.permute.xlu0 0
          %393 = vperm.xlu0 %392, %v355
          %v394 = vpop.permute.xlu0 %393
          %397 = vset.pattern.permute.xlu0 0
          %398 = vperm.xlu0 %397, %v356
          %v399 = vpop.permute.xlu0 %398
          %402 = vset.pattern.permute.xlu0 0
          %403 = vperm.xlu0 %402, %v357
          %v404 = vpop.permute.xlu0 %403
          %407 = vset.pattern.permute.xlu0 0
          %408 = vperm.xlu0 %407, %v358
          %v409 = vpop.permute.xlu0 %408
          %412 = vset.pattern.permute.xlu0 0
          %413 = vperm.xlu0 %412, %v359
          %v414 = vpop.permute.xlu0 %413
          %417 = vset.pattern.permute.xlu0 0
          %418 = vperm.xlu0 %417, %v360
          %v419 = vpop.permute.xlu0 %418
          %422 = vset.pattern.permute.xlu0 0
          %423 = vperm.xlu0 %422, %v361
          %v424 = vpop.permute.xlu0 %423
          %427 = vset.pattern.permute.xlu0 0
          %428 = vperm.xlu0 %427, %v362
          %v429 = vpop.permute.xlu0 %428
          %432 = vset.pattern.permute.xlu0 0
          %433 = vperm.xlu0 %432, %v363
          %v434 = vpop.permute.xlu0 %433
          %437 = vset.pattern.permute.xlu0 0
          %438 = vperm.xlu0 %437, %v364
          %v439 = vpop.permute.xlu0 %438
          %442 = vset.pattern.permute.xlu0 0
          %443 = vperm.xlu0 %442, %v365
          %v444 = vpop.permute.xlu0 %443
          %447 = vset.pattern.permute.xlu0 0
          %448 = vperm.xlu0 %447, %v366
          %v449 = vpop.permute.xlu0 %448
          %452 = vset.pattern.permute.xlu0 0
          %453 = vperm.xlu0 %452, %v367
          %v454 = vpop.permute.xlu0 %453
          %457 = vset.pattern.permute.xlu0 0
          %458 = vperm.xlu0 %457, %v368
          %v459 = vpop.permute.xlu0 %458
          %462 = vset.pattern.permute.xlu0 0
          %463 = vperm.xlu0 %462, %v369
          %v464 = vpop.permute.xlu0 %463
          %467 = vset.pattern.permute.xlu0 0
          %468 = vperm.xlu0 %467, %v370
          %v469 = vpop.permute.xlu0 %468
          %472 = vset.pattern.permute.xlu0 0
          %473 = vperm.xlu0 %472, %v371
          %v474 = vpop.permute.xlu0 %473
          %477 = vset.pattern.permute.xlu0 0
          %478 = vperm.xlu0 %477, %v372
          %v479 = vpop.permute.xlu0 %478
          %482 = vset.pattern.permute.xlu0 0
          %483 = vperm.xlu0 %482, %v373
          %v484 = vpop.permute.xlu0 %483
          %487 = vset.pattern.permute.xlu0 0
          %488 = vperm.xlu0 %487, %v374
          %v489 = vpop.permute.xlu0 %488
          %492 = vset.pattern.permute.xlu0 0
          %493 = vperm.xlu0 %492, %v375
          %v494 = vpop.permute.xlu0 %493
          %497 = vset.pattern.permute.xlu0 0
          %498 = vperm.xlu0 %497, %v376
          %v499 = vpop.permute.xlu0 %498
          %502 = vset.pattern.permute.xlu0 0
          %503 = vperm.xlu0 %502, %v377
          %v504 = vpop.permute.xlu0 %503
          %507 = vset.pattern.permute.xlu0 0
          %508 = vperm.xlu0 %507, %v378
          %v509 = vpop.permute.xlu0 %508
          %512 = vset.pattern.permute.xlu0 0
          %513 = vperm.xlu0 %512, %v379
          %v514 = vpop.permute.xlu0 %513
          %517 = vset.pattern.permute.xlu0 0
          %518 = vperm.xlu0 %517, %v380
          %v519 = vpop.permute.xlu0 %518
          %522 = vset.pattern.permute.xlu0 0
          %523 = vperm.xlu0 %522, %v381
          %v524 = vpop.permute.xlu0 %523
          %527 = vset.pattern.permute.xlu0 0
          %528 = vperm.xlu0 %527, %v382
          %v529 = vpop.permute.xlu0 %528
          %532 = vset.pattern.permute.xlu0 0
          %533 = vperm.xlu0 %532, %v383
          %v534 = vpop.permute.xlu0 %533
          %537 = vset.pattern.permute.xlu0 0
          %538 = vperm.xlu0 %537, %v384
          %v539 = vpop.permute.xlu0 %538
          %542 = vset.pattern.permute.xlu0 0
          %543 = vperm.xlu0 %542, %v385
          %v544 = vpop.permute.xlu0 %543
          %v547 = vlaneseq
          %v548 = vshrl.u32 %v547, 7
          %v549 = vsub.s32 0, %v548
          %v550 = vrot.slane %v353, %v549
          %v551 = vlaneseq
          %v552 = vshrl.u32 %v551, 7
          %v553 = vsub.s32 4, %v552
          %v554 = vrot.slane %v353, %v553
          %v557 = vlaneseq
          %v558 = vshrl.u32 %v557, 7
          %v559 = vsub.s32 0, %v558
          %v560 = vrot.slane %v550, %v559
          %v561 = vlaneseq
          %v562 = vshrl.u32 %v561, 7
          %v563 = vsub.s32 0, %v562
          %v564 = vrot.slane %v554, %v563
          %v565 = vmul.f32 %v389, %v560
          %v566 = vmul.f32 %v389, %v564
          %v567 = vmul.f32 %v394, %v560
          %v568 = vmul.f32 %v394, %v564
          %v569 = vmul.f32 %v399, %v560
          %v570 = vmul.f32 %v399, %v564
          %v571 = vmul.f32 %v404, %v560
          %v572 = vmul.f32 %v404, %v564
          %v573 = vmul.f32 %v409, %v560
          %v574 = vmul.f32 %v409, %v564
          %v575 = vmul.f32 %v414, %v560
          %v576 = vmul.f32 %v414, %v564
          %v577 = vmul.f32 %v419, %v560
          %v578 = vmul.f32 %v419, %v564
          %v579 = vmul.f32 %v424, %v560
          %v580 = vmul.f32 %v424, %v564
          %v581 = vmul.f32 %v429, %v560
          %v582 = vmul.f32 %v429, %v564
          %v583 = vmul.f32 %v434, %v560
          %v584 = vmul.f32 %v434, %v564
          %v585 = vmul.f32 %v439, %v560
          %v586 = vmul.f32 %v439, %v564
          %v587 = vmul.f32 %v444, %v560
          %v588 = vmul.f32 %v444, %v564
          %v589 = vmul.f32 %v449, %v560
          %v590 = vmul.f32 %v449, %v564
          %v591 = vmul.f32 %v454, %v560
          %v592 = vmul.f32 %v454, %v564
          %v593 = vmul.f32 %v459, %v560
          %v594 = vmul.f32 %v459, %v564
          %v595 = vmul.f32 %v464, %v560
          %v596 = vmul.f32 %v464, %v564
          %v597 = vmul.f32 %v469, %v560
          %v598 = vmul.f32 %v469, %v564
          %v599 = vmul.f32 %v474, %v560
          %v600 = vmul.f32 %v474, %v564
          %v601 = vmul.f32 %v479, %v560
          %v602 = vmul.f32 %v479, %v564
          %v603 = vmul.f32 %v484, %v560
          %v604 = vmul.f32 %v484, %v564
          %v605 = vmul.f32 %v489, %v560
          %v606 = vmul.f32 %v489, %v564
          %v607 = vmul.f32 %v494, %v560
          %v608 = vmul.f32 %v494, %v564
          %v609 = vmul.f32 %v499, %v560
          %v610 = vmul.f32 %v499, %v564
          %v611 = vmul.f32 %v504, %v560
          %v612 = vmul.f32 %v504, %v564
          %v613 = vmul.f32 %v509, %v560
          %v614 = vmul.f32 %v509, %v564
          %v615 = vmul.f32 %v514, %v560
          %v616 = vmul.f32 %v514, %v564
          %v617 = vmul.f32 %v519, %v560
          %v618 = vmul.f32 %v519, %v564
          %v619 = vmul.f32 %v524, %v560
          %v620 = vmul.f32 %v524, %v564
          %v621 = vmul.f32 %v529, %v560
          %v622 = vmul.f32 %v529, %v564
          %v623 = vmul.f32 %v534, %v560
          %v624 = vmul.f32 %v534, %v564
          %v625 = vmul.f32 %v539, %v560
          %v626 = vmul.f32 %v539, %v564
          %v627 = vmul.f32 %v544, %v560
          %v628 = vmul.f32 %v544, %v564
          %629 = vset.pattern.permute.xlu0 1
          %630 = vperm.xlu0 %629, %v354
          %v631 = vpop.permute.xlu0 %630
          %633 = vset.pattern.permute.xlu0 1
          %634 = vperm.xlu0 %633, %v355
          %v635 = vpop.permute.xlu0 %634
          %637 = vset.pattern.permute.xlu0 1
          %638 = vperm.xlu0 %637, %v356
          %v639 = vpop.permute.xlu0 %638
          %641 = vset.pattern.permute.xlu0 1
          %642 = vperm.xlu0 %641, %v357
          %v643 = vpop.permute.xlu0 %642
          %645 = vset.pattern.permute.xlu0 1
          %646 = vperm.xlu0 %645, %v358
          %v647 = vpop.permute.xlu0 %646
          %649 = vset.pattern.permute.xlu0 1
          %650 = vperm.xlu0 %649, %v359
          %v651 = vpop.permute.xlu0 %650
          %653 = vset.pattern.permute.xlu0 1
          %654 = vperm.xlu0 %653, %v360
          %v655 = vpop.permute.xlu0 %654
          %657 = vset.pattern.permute.xlu0 1
          %658 = vperm.xlu0 %657, %v361
          %v659 = vpop.permute.xlu0 %658
          %661 = vset.pattern.permute.xlu0 1
          %662 = vperm.xlu0 %661, %v362
          %v663 = vpop.permute.xlu0 %662
          %665 = vset.pattern.permute.xlu0 1
          %666 = vperm.xlu0 %665, %v363
          %v667 = vpop.permute.xlu0 %666
          %669 = vset.pattern.permute.xlu0 1
          %670 = vperm.xlu0 %669, %v364
          %v671 = vpop.permute.xlu0 %670
          %673 = vset.pattern.permute.xlu0 1
          %674 = vperm.xlu0 %673, %v365
          %v675 = vpop.permute.xlu0 %674
          %677 = vset.pattern.permute.xlu0 1
          %678 = vperm.xlu0 %677, %v366
          %v679 = vpop.permute.xlu0 %678
          %681 = vset.pattern.permute.xlu0 1
          %682 = vperm.xlu0 %681, %v367
          %v683 = vpop.permute.xlu0 %682
          %685 = vset.pattern.permute.xlu0 1
          %686 = vperm.xlu0 %685, %v368
          %v687 = vpop.permute.xlu0 %686
          %689 = vset.pattern.permute.xlu0 1
          %690 = vperm.xlu0 %689, %v369
          %v691 = vpop.permute.xlu0 %690
          %693 = vset.pattern.permute.xlu0 1
          %694 = vperm.xlu0 %693, %v370
          %v695 = vpop.permute.xlu0 %694
          %697 = vset.pattern.permute.xlu0 1
          %698 = vperm.xlu0 %697, %v371
          %v699 = vpop.permute.xlu0 %698
          %701 = vset.pattern.permute.xlu0 1
          %702 = vperm.xlu0 %701, %v372
          %v703 = vpop.permute.xlu0 %702
          %705 = vset.pattern.permute.xlu0 1
          %706 = vperm.xlu0 %705, %v373
          %v707 = vpop.permute.xlu0 %706
          %709 = vset.pattern.permute.xlu0 1
          %710 = vperm.xlu0 %709, %v374
          %v711 = vpop.permute.xlu0 %710
          %713 = vset.pattern.permute.xlu0 1
          %714 = vperm.xlu0 %713, %v375
          %v715 = vpop.permute.xlu0 %714
          %717 = vset.pattern.permute.xlu0 1
          %718 = vperm.xlu0 %717, %v376
          %v719 = vpop.permute.xlu0 %718
          %721 = vset.pattern.permute.xlu0 1
          %722 = vperm.xlu0 %721, %v377
          %v723 = vpop.permute.xlu0 %722
          %725 = vset.pattern.permute.xlu0 1
          %726 = vperm.xlu0 %725, %v378
          %v727 = vpop.permute.xlu0 %726
          %729 = vset.pattern.permute.xlu0 1
          %730 = vperm.xlu0 %729, %v379
          %v731 = vpop.permute.xlu0 %730
          %733 = vset.pattern.permute.xlu0 1
          %734 = vperm.xlu0 %733, %v380
          %v735 = vpop.permute.xlu0 %734
          %737 = vset.pattern.permute.xlu0 1
          %738 = vperm.xlu0 %737, %v381
          %v739 = vpop.permute.xlu0 %738
          %741 = vset.pattern.permute.xlu0 1
          %742 = vperm.xlu0 %741, %v382
          %v743 = vpop.permute.xlu0 %742
          %745 = vset.pattern.permute.xlu0 1
          %746 = vperm.xlu0 %745, %v383
          %v747 = vpop.permute.xlu0 %746
          %749 = vset.pattern.permute.xlu0 1
          %750 = vperm.xlu0 %749, %v384
          %v751 = vpop.permute.xlu0 %750
          %753 = vset.pattern.permute.xlu0 1
          %754 = vperm.xlu0 %753, %v385
          %v755 = vpop.permute.xlu0 %754
          %v757 = vlaneseq
          %v758 = vshrl.u32 %v757, 7
          %v759 = vsub.s32 1, %v758
          %v760 = vrot.slane %v353, %v759
          %v761 = vlaneseq
          %v762 = vshrl.u32 %v761, 7
          %v763 = vsub.s32 5, %v762
          %v764 = vrot.slane %v353, %v763
          %v767 = vlaneseq
          %v768 = vshrl.u32 %v767, 7
          %v769 = vsub.s32 1, %v768
          %v770 = vrot.slane %v760, %v769
          %v771 = vlaneseq
          %v772 = vshrl.u32 %v771, 7
          %v773 = vsub.s32 1, %v772
          %v774 = vrot.slane %v764, %v773
          %v775 = vmul.f32 %v631, %v770
          %v776 = vmul.f32 %v631, %v774
          %v777 = vmul.f32 %v635, %v770
          %v778 = vmul.f32 %v635, %v774
          %v779 = vmul.f32 %v639, %v770
          %v780 = vmul.f32 %v639, %v774
          %v781 = vmul.f32 %v643, %v770
          %v782 = vmul.f32 %v643, %v774
          %v783 = vmul.f32 %v647, %v770
          %v784 = vmul.f32 %v647, %v774
          %v785 = vmul.f32 %v651, %v770
          %v786 = vmul.f32 %v651, %v774
          %v787 = vmul.f32 %v655, %v770
          %v788 = vmul.f32 %v655, %v774
          %v789 = vmul.f32 %v659, %v770
          %v790 = vmul.f32 %v659, %v774
          %v791 = vmul.f32 %v663, %v770
          %v792 = vmul.f32 %v663, %v774
          %v793 = vmul.f32 %v667, %v770
          %v794 = vmul.f32 %v667, %v774
          %v795 = vmul.f32 %v671, %v770
          %v796 = vmul.f32 %v671, %v774
          %v797 = vmul.f32 %v675, %v770
          %v798 = vmul.f32 %v675, %v774
          %v799 = vmul.f32 %v679, %v770
          %v800 = vmul.f32 %v679, %v774
          %v801 = vmul.f32 %v683, %v770
          %v802 = vmul.f32 %v683, %v774
          %v803 = vmul.f32 %v687, %v770
          %v804 = vmul.f32 %v687, %v774
          %v805 = vmul.f32 %v691, %v770
          %v806 = vmul.f32 %v691, %v774
          %v807 = vmul.f32 %v695, %v770
          %v808 = vmul.f32 %v695, %v774
          %v809 = vmul.f32 %v699, %v770
          %v810 = vmul.f32 %v699, %v774
          %v811 = vmul.f32 %v703, %v770
          %v812 = vmul.f32 %v703, %v774
          %v813 = vmul.f32 %v707, %v770
          %v814 = vmul.f32 %v707, %v774
          %v815 = vmul.f32 %v711, %v770
          %v816 = vmul.f32 %v711, %v774
          %v817 = vmul.f32 %v715, %v770
          %v818 = vmul.f32 %v715, %v774
          %v819 = vmul.f32 %v719, %v770
          %v820 = vmul.f32 %v719, %v774
          %v821 = vmul.f32 %v723, %v770
          %v822 = vmul.f32 %v723, %v774
          %v823 = vmul.f32 %v727, %v770
          %v824 = vmul.f32 %v727, %v774
          %v825 = vmul.f32 %v731, %v770
          %v826 = vmul.f32 %v731, %v774
          %v827 = vmul.f32 %v735, %v770
          %v828 = vmul.f32 %v735, %v774
          %v829 = vmul.f32 %v739, %v770
          %v830 = vmul.f32 %v739, %v774
          %v831 = vmul.f32 %v743, %v770
          %v832 = vmul.f32 %v743, %v774
          %v833 = vmul.f32 %v747, %v770
          %v834 = vmul.f32 %v747, %v774
          %v835 = vmul.f32 %v751, %v770
          %v836 = vmul.f32 %v751, %v774
          %v837 = vmul.f32 %v755, %v770
          %v838 = vmul.f32 %v755, %v774
          %v839 = vadd.f32 %v565, %v775
          %v840 = vadd.f32 %v566, %v776
          %v841 = vadd.f32 %v567, %v777
          %v842 = vadd.f32 %v568, %v778
          %v843 = vadd.f32 %v569, %v779
          %v844 = vadd.f32 %v570, %v780
          %v845 = vadd.f32 %v571, %v781
          %v846 = vadd.f32 %v572, %v782
          %v847 = vadd.f32 %v573, %v783
          %v848 = vadd.f32 %v574, %v784
          %v849 = vadd.f32 %v575, %v785
          %v850 = vadd.f32 %v576, %v786
          %v851 = vadd.f32 %v577, %v787
          %v852 = vadd.f32 %v578, %v788
          %v853 = vadd.f32 %v579, %v789
          %v854 = vadd.f32 %v580, %v790
          %v855 = vadd.f32 %v581, %v791
          %v856 = vadd.f32 %v582, %v792
          %v857 = vadd.f32 %v583, %v793
          %v858 = vadd.f32 %v584, %v794
          %v859 = vadd.f32 %v585, %v795
          %v860 = vadd.f32 %v586, %v796
          %v861 = vadd.f32 %v587, %v797
          %v862 = vadd.f32 %v588, %v798
          %v863 = vadd.f32 %v589, %v799
          %v864 = vadd.f32 %v590, %v800
          %v865 = vadd.f32 %v591, %v801
          %v866 = vadd.f32 %v592, %v802
          %v867 = vadd.f32 %v593, %v803
          %v868 = vadd.f32 %v594, %v804
          %v869 = vadd.f32 %v595, %v805
          %v870 = vadd.f32 %v596, %v806
          %v871 = vadd.f32 %v597, %v807
          %v872 = vadd.f32 %v598, %v808
          %v873 = vadd.f32 %v599, %v809
          %v874 = vadd.f32 %v600, %v810
          %v875 = vadd.f32 %v601, %v811
          %v876 = vadd.f32 %v602, %v812
          %v877 = vadd.f32 %v603, %v813
          %v878 = vadd.f32 %v604, %v814
          %v879 = vadd.f32 %v605, %v815
          %v880 = vadd.f32 %v606, %v816
          %v881 = vadd.f32 %v607, %v817
          %v882 = vadd.f32 %v608, %v818
          %v883 = vadd.f32 %v609, %v819
          %v884 = vadd.f32 %v610, %v820
          %v885 = vadd.f32 %v611, %v821
          %v886 = vadd.f32 %v612, %v822
          %v887 = vadd.f32 %v613, %v823
          %v888 = vadd.f32 %v614, %v824
          %v889 = vadd.f32 %v615, %v825
          %v890 = vadd.f32 %v616, %v826
          %v891 = vadd.f32 %v617, %v827
          %v892 = vadd.f32 %v618, %v828
          %v893 = vadd.f32 %v619, %v829
          %v894 = vadd.f32 %v620, %v830
          %v895 = vadd.f32 %v621, %v831
          %v896 = vadd.f32 %v622, %v832
          %v897 = vadd.f32 %v623, %v833
          %v898 = vadd.f32 %v624, %v834
          %v899 = vadd.f32 %v625, %v835
          %v900 = vadd.f32 %v626, %v836
          %v901 = vadd.f32 %v627, %v837
          %v902 = vadd.f32 %v628, %v838
          %903 = vset.pattern.permute.xlu0 2
          %904 = vperm.xlu0 %903, %v354
          %v905 = vpop.permute.xlu0 %904
          %907 = vset.pattern.permute.xlu0 2
          %908 = vperm.xlu0 %907, %v355
          %v909 = vpop.permute.xlu0 %908
          %911 = vset.pattern.permute.xlu0 2
          %912 = vperm.xlu0 %911, %v356
          %v913 = vpop.permute.xlu0 %912
          %915 = vset.pattern.permute.xlu0 2
          %916 = vperm.xlu0 %915, %v357
          %v917 = vpop.permute.xlu0 %916
          %919 = vset.pattern.permute.xlu0 2
          %920 = vperm.xlu0 %919, %v358
          %v921 = vpop.permute.xlu0 %920
          %923 = vset.pattern.permute.xlu0 2
          %924 = vperm.xlu0 %923, %v359
          %v925 = vpop.permute.xlu0 %924
          %927 = vset.pattern.permute.xlu0 2
          %928 = vperm.xlu0 %927, %v360
          %v929 = vpop.permute.xlu0 %928
          %931 = vset.pattern.permute.xlu0 2
          %932 = vperm.xlu0 %931, %v361
          %v933 = vpop.permute.xlu0 %932
          %935 = vset.pattern.permute.xlu0 2
          %936 = vperm.xlu0 %935, %v362
          %v937 = vpop.permute.xlu0 %936
          %939 = vset.pattern.permute.xlu0 2
          %940 = vperm.xlu0 %939, %v363
          %v941 = vpop.permute.xlu0 %940
          %943 = vset.pattern.permute.xlu0 2
          %944 = vperm.xlu0 %943, %v364
          %v945 = vpop.permute.xlu0 %944
          %947 = vset.pattern.permute.xlu0 2
          %948 = vperm.xlu0 %947, %v365
          %v949 = vpop.permute.xlu0 %948
          %951 = vset.pattern.permute.xlu0 2
          %952 = vperm.xlu0 %951, %v366
          %v953 = vpop.permute.xlu0 %952
          %955 = vset.pattern.permute.xlu0 2
          %956 = vperm.xlu0 %955, %v367
          %v957 = vpop.permute.xlu0 %956
          %959 = vset.pattern.permute.xlu0 2
          %960 = vperm.xlu0 %959, %v368
          %v961 = vpop.permute.xlu0 %960
          %963 = vset.pattern.permute.xlu0 2
          %964 = vperm.xlu0 %963, %v369
          %v965 = vpop.permute.xlu0 %964
          %967 = vset.pattern.permute.xlu0 2
          %968 = vperm.xlu0 %967, %v370
          %v969 = vpop.permute.xlu0 %968
          %971 = vset.pattern.permute.xlu0 2
          %972 = vperm.xlu0 %971, %v371
          %v973 = vpop.permute.xlu0 %972
          %975 = vset.pattern.permute.xlu0 2
          %976 = vperm.xlu0 %975, %v372
          %v977 = vpop.permute.xlu0 %976
          %979 = vset.pattern.permute.xlu0 2
          %980 = vperm.xlu0 %979, %v373
          %v981 = vpop.permute.xlu0 %980
          %983 = vset.pattern.permute.xlu0 2
          %984 = vperm.xlu0 %983, %v374
          %v985 = vpop.permute.xlu0 %984
          %987 = vset.pattern.permute.xlu0 2
          %988 = vperm.xlu0 %987, %v375
          %v989 = vpop.permute.xlu0 %988
          %991 = vset.pattern.permute.xlu0 2
          %992 = vperm.xlu0 %991, %v376
          %v993 = vpop.permute.xlu0 %992
          %995 = vset.pattern.permute.xlu0 2
          %996 = vperm.xlu0 %995, %v377
          %v997 = vpop.permute.xlu0 %996
          %999 = vset.pattern.permute.xlu0 2
          %1000 = vperm.xlu0 %999, %v378
          %v1001 = vpop.permute.xlu0 %1000
          %1003 = vset.pattern.permute.xlu0 2
          %1004 = vperm.xlu0 %1003, %v379
          %v1005 = vpop.permute.xlu0 %1004
          %1007 = vset.pattern.permute.xlu0 2
          %1008 = vperm.xlu0 %1007, %v380
          %v1009 = vpop.permute.xlu0 %1008
          %1011 = vset.pattern.permute.xlu0 2
          %1012 = vperm.xlu0 %1011, %v381
          %v1013 = vpop.permute.xlu0 %1012
          %1015 = vset.pattern.permute.xlu0 2
          %1016 = vperm.xlu0 %1015, %v382
          %v1017 = vpop.permute.xlu0 %1016
          %1019 = vset.pattern.permute.xlu0 2
          %1020 = vperm.xlu0 %1019, %v383
          %v1021 = vpop.permute.xlu0 %1020
          %1023 = vset.pattern.permute.xlu0 2
          %1024 = vperm.xlu0 %1023, %v384
          %v1025 = vpop.permute.xlu0 %1024
          %1027 = vset.pattern.permute.xlu0 2
          %1028 = vperm.xlu0 %1027, %v385
          %v1029 = vpop.permute.xlu0 %1028
          %v1031 = vlaneseq
          %v1032 = vshrl.u32 %v1031, 7
          %v1033 = vsub.s32 2, %v1032
          %v1034 = vrot.slane %v353, %v1033
          %v1035 = vlaneseq
          %v1036 = vshrl.u32 %v1035, 7
          %v1037 = vsub.s32 6, %v1036
          %v1038 = vrot.slane %v353, %v1037
          %v1041 = vlaneseq
          %v1042 = vshrl.u32 %v1041, 7
          %v1043 = vsub.s32 2, %v1042
          %v1044 = vrot.slane %v1034, %v1043
          %v1045 = vlaneseq
          %v1046 = vshrl.u32 %v1045, 7
          %v1047 = vsub.s32 2, %v1046
          %v1048 = vrot.slane %v1038, %v1047
          %v1049 = vmul.f32 %v905, %v1044
          %v1050 = vmul.f32 %v905, %v1048
          %v1051 = vmul.f32 %v909, %v1044
          %v1052 = vmul.f32 %v909, %v1048
          %v1053 = vmul.f32 %v913, %v1044
          %v1054 = vmul.f32 %v913, %v1048
          %v1055 = vmul.f32 %v917, %v1044
          %v1056 = vmul.f32 %v917, %v1048
          %v1057 = vmul.f32 %v921, %v1044
          %v1058 = vmul.f32 %v921, %v1048
          %v1059 = vmul.f32 %v925, %v1044
          %v1060 = vmul.f32 %v925, %v1048
          %v1061 = vmul.f32 %v929, %v1044
          %v1062 = vmul.f32 %v929, %v1048
          %v1063 = vmul.f32 %v933, %v1044
          %v1064 = vmul.f32 %v933, %v1048
          %v1065 = vmul.f32 %v937, %v1044
          %v1066 = vmul.f32 %v937, %v1048
          %v1067 = vmul.f32 %v941, %v1044
          %v1068 = vmul.f32 %v941, %v1048
          %v1069 = vmul.f32 %v945, %v1044
          %v1070 = vmul.f32 %v945, %v1048
          %v1071 = vmul.f32 %v949, %v1044
          %v1072 = vmul.f32 %v949, %v1048
          %v1073 = vmul.f32 %v953, %v1044
          %v1074 = vmul.f32 %v953, %v1048
          %v1075 = vmul.f32 %v957, %v1044
          %v1076 = vmul.f32 %v957, %v1048
          %v1077 = vmul.f32 %v961, %v1044
          %v1078 = vmul.f32 %v961, %v1048
          %v1079 = vmul.f32 %v965, %v1044
          %v1080 = vmul.f32 %v965, %v1048
          %v1081 = vmul.f32 %v969, %v1044
          %v1082 = vmul.f32 %v969, %v1048
          %v1083 = vmul.f32 %v973, %v1044
          %v1084 = vmul.f32 %v973, %v1048
          %v1085 = vmul.f32 %v977, %v1044
          %v1086 = vmul.f32 %v977, %v1048
          %v1087 = vmul.f32 %v981, %v1044
          %v1088 = vmul.f32 %v981, %v1048
          %v1089 = vmul.f32 %v985, %v1044
          %v1090 = vmul.f32 %v985, %v1048
          %v1091 = vmul.f32 %v989, %v1044
          %v1092 = vmul.f32 %v989, %v1048
          %v1093 = vmul.f32 %v993, %v1044
          %v1094 = vmul.f32 %v993, %v1048
          %v1095 = vmul.f32 %v997, %v1044
          %v1096 = vmul.f32 %v997, %v1048
          %v1097 = vmul.f32 %v1001, %v1044
          %v1098 = vmul.f32 %v1001, %v1048
          %v1099 = vmul.f32 %v1005, %v1044
          %v1100 = vmul.f32 %v1005, %v1048
          %v1101 = vmul.f32 %v1009, %v1044
          %v1102 = vmul.f32 %v1009, %v1048
          %v1103 = vmul.f32 %v1013, %v1044
          %v1104 = vmul.f32 %v1013, %v1048
          %v1105 = vmul.f32 %v1017, %v1044
          %v1106 = vmul.f32 %v1017, %v1048
          %v1107 = vmul.f32 %v1021, %v1044
          %v1108 = vmul.f32 %v1021, %v1048
          %v1109 = vmul.f32 %v1025, %v1044
          %v1110 = vmul.f32 %v1025, %v1048
          %v1111 = vmul.f32 %v1029, %v1044
          %v1112 = vmul.f32 %v1029, %v1048
          %v1113 = vadd.f32 %v839, %v1049
          %v1114 = vadd.f32 %v840, %v1050
          %v1115 = vadd.f32 %v841, %v1051
          %v1116 = vadd.f32 %v842, %v1052
          %v1117 = vadd.f32 %v843, %v1053
          %v1118 = vadd.f32 %v844, %v1054
          %v1119 = vadd.f32 %v845, %v1055
          %v1120 = vadd.f32 %v846, %v1056
          %v1121 = vadd.f32 %v847, %v1057
          %v1122 = vadd.f32 %v848, %v1058
          %v1123 = vadd.f32 %v849, %v1059
          %v1124 = vadd.f32 %v850, %v1060
          %v1125 = vadd.f32 %v851, %v1061
          %v1126 = vadd.f32 %v852, %v1062
          %v1127 = vadd.f32 %v853, %v1063
          %v1128 = vadd.f32 %v854, %v1064
          %v1129 = vadd.f32 %v855, %v1065
          %v1130 = vadd.f32 %v856, %v1066
          %v1131 = vadd.f32 %v857, %v1067
          %v1132 = vadd.f32 %v858, %v1068
          %v1133 = vadd.f32 %v859, %v1069
          %v1134 = vadd.f32 %v860, %v1070
          %v1135 = vadd.f32 %v861, %v1071
          %v1136 = vadd.f32 %v862, %v1072
          %v1137 = vadd.f32 %v863, %v1073
          %v1138 = vadd.f32 %v864, %v1074
          %v1139 = vadd.f32 %v865, %v1075
          %v1140 = vadd.f32 %v866, %v1076
          %v1141 = vadd.f32 %v867, %v1077
          %v1142 = vadd.f32 %v868, %v1078
          %v1143 = vadd.f32 %v869, %v1079
          %v1144 = vadd.f32 %v870, %v1080
          %v1145 = vadd.f32 %v871, %v1081
          %v1146 = vadd.f32 %v872, %v1082
          %v1147 = vadd.f32 %v873, %v1083
          %v1148 = vadd.f32 %v874, %v1084
          %v1149 = vadd.f32 %v875, %v1085
          %v1150 = vadd.f32 %v876, %v1086
          %v1151 = vadd.f32 %v877, %v1087
          %v1152 = vadd.f32 %v878, %v1088
          %v1153 = vadd.f32 %v879, %v1089
          %v1154 = vadd.f32 %v880, %v1090
          %v1155 = vadd.f32 %v881, %v1091
          %v1156 = vadd.f32 %v882, %v1092
          %v1157 = vadd.f32 %v883, %v1093
          %v1158 = vadd.f32 %v884, %v1094
          %v1159 = vadd.f32 %v885, %v1095
          %v1160 = vadd.f32 %v886, %v1096
          %v1161 = vadd.f32 %v887, %v1097
          %v1162 = vadd.f32 %v888, %v1098
          %v1163 = vadd.f32 %v889, %v1099
          %v1164 = vadd.f32 %v890, %v1100
          %v1165 = vadd.f32 %v891, %v1101
          %v1166 = vadd.f32 %v892, %v1102
          %v1167 = vadd.f32 %v893, %v1103
          %v1168 = vadd.f32 %v894, %v1104
          %v1169 = vadd.f32 %v895, %v1105
          %v1170 = vadd.f32 %v896, %v1106
          %v1171 = vadd.f32 %v897, %v1107
          %v1172 = vadd.f32 %v898, %v1108
          %v1173 = vadd.f32 %v899, %v1109
          %v1174 = vadd.f32 %v900, %v1110
          %v1175 = vadd.f32 %v901, %v1111
          %v1176 = vadd.f32 %v902, %v1112
          %1177 = vset.pattern.permute.xlu0 3
          %1178 = vperm.xlu0 %1177, %v354
          %v1179 = vpop.permute.xlu0 %1178
          %1181 = vset.pattern.permute.xlu0 3
          %1182 = vperm.xlu0 %1181, %v355
          %v1183 = vpop.permute.xlu0 %1182
          %1185 = vset.pattern.permute.xlu0 3
          %1186 = vperm.xlu0 %1185, %v356
          %v1187 = vpop.permute.xlu0 %1186
          %1189 = vset.pattern.permute.xlu0 3
          %1190 = vperm.xlu0 %1189, %v357
          %v1191 = vpop.permute.xlu0 %1190
          %1193 = vset.pattern.permute.xlu0 3
          %1194 = vperm.xlu0 %1193, %v358
          %v1195 = vpop.permute.xlu0 %1194
          %1197 = vset.pattern.permute.xlu0 3
          %1198 = vperm.xlu0 %1197, %v359
          %v1199 = vpop.permute.xlu0 %1198
          %1201 = vset.pattern.permute.xlu0 3
          %1202 = vperm.xlu0 %1201, %v360
          %v1203 = vpop.permute.xlu0 %1202
          %1205 = vset.pattern.permute.xlu0 3
          %1206 = vperm.xlu0 %1205, %v361
          %v1207 = vpop.permute.xlu0 %1206
          %1209 = vset.pattern.permute.xlu0 3
          %1210 = vperm.xlu0 %1209, %v362
          %v1211 = vpop.permute.xlu0 %1210
          %1213 = vset.pattern.permute.xlu0 3
          %1214 = vperm.xlu0 %1213, %v363
          %v1215 = vpop.permute.xlu0 %1214
          %1217 = vset.pattern.permute.xlu0 3
          %1218 = vperm.xlu0 %1217, %v364
          %v1219 = vpop.permute.xlu0 %1218
          %1221 = vset.pattern.permute.xlu0 3
          %1222 = vperm.xlu0 %1221, %v365
          %v1223 = vpop.permute.xlu0 %1222
          %1225 = vset.pattern.permute.xlu0 3
          %1226 = vperm.xlu0 %1225, %v366
          %v1227 = vpop.permute.xlu0 %1226
          %1229 = vset.pattern.permute.xlu0 3
          %1230 = vperm.xlu0 %1229, %v367
          %v1231 = vpop.permute.xlu0 %1230
          %1233 = vset.pattern.permute.xlu0 3
          %1234 = vperm.xlu0 %1233, %v368
          %v1235 = vpop.permute.xlu0 %1234
          %1237 = vset.pattern.permute.xlu0 3
          %1238 = vperm.xlu0 %1237, %v369
          %v1239 = vpop.permute.xlu0 %1238
          %1241 = vset.pattern.permute.xlu0 3
          %1242 = vperm.xlu0 %1241, %v370
          %v1243 = vpop.permute.xlu0 %1242
          %1245 = vset.pattern.permute.xlu0 3
          %1246 = vperm.xlu0 %1245, %v371
          %v1247 = vpop.permute.xlu0 %1246
          %1249 = vset.pattern.permute.xlu0 3
          %1250 = vperm.xlu0 %1249, %v372
          %v1251 = vpop.permute.xlu0 %1250
          %1253 = vset.pattern.permute.xlu0 3
          %1254 = vperm.xlu0 %1253, %v373
          %v1255 = vpop.permute.xlu0 %1254
          %1257 = vset.pattern.permute.xlu0 3
          %1258 = vperm.xlu0 %1257, %v374
          %v1259 = vpop.permute.xlu0 %1258
          %1261 = vset.pattern.permute.xlu0 3
          %1262 = vperm.xlu0 %1261, %v375
          %v1263 = vpop.permute.xlu0 %1262
          %1265 = vset.pattern.permute.xlu0 3
          %1266 = vperm.xlu0 %1265, %v376
          %v1267 = vpop.permute.xlu0 %1266
          %1269 = vset.pattern.permute.xlu0 3
          %1270 = vperm.xlu0 %1269, %v377
          %v1271 = vpop.permute.xlu0 %1270
          %1273 = vset.pattern.permute.xlu0 3
          %1274 = vperm.xlu0 %1273, %v378
          %v1275 = vpop.permute.xlu0 %1274
          %1277 = vset.pattern.permute.xlu0 3
          %1278 = vperm.xlu0 %1277, %v379
          %v1279 = vpop.permute.xlu0 %1278
          %1281 = vset.pattern.permute.xlu0 3
          %1282 = vperm.xlu0 %1281, %v380
          %v1283 = vpop.permute.xlu0 %1282
          %1285 = vset.pattern.permute.xlu0 3
          %1286 = vperm.xlu0 %1285, %v381
          %v1287 = vpop.permute.xlu0 %1286
          %1289 = vset.pattern.permute.xlu0 3
          %1290 = vperm.xlu0 %1289, %v382
          %v1291 = vpop.permute.xlu0 %1290
          %1293 = vset.pattern.permute.xlu0 3
          %1294 = vperm.xlu0 %1293, %v383
          %v1295 = vpop.permute.xlu0 %1294
          %1297 = vset.pattern.permute.xlu0 3
          %1298 = vperm.xlu0 %1297, %v384
          %v1299 = vpop.permute.xlu0 %1298
          %1301 = vset.pattern.permute.xlu0 3
          %1302 = vperm.xlu0 %1301, %v385
          %v1303 = vpop.permute.xlu0 %1302
          %v1305 = vlaneseq
          %v1306 = vshrl.u32 %v1305, 7
          %v1307 = vsub.s32 3, %v1306
          %v1308 = vrot.slane %v353, %v1307
          %v1309 = vlaneseq
          %v1310 = vshrl.u32 %v1309, 7
          %v1311 = vsub.s32 7, %v1310
          %v1312 = vrot.slane %v353, %v1311
          %v1315 = vlaneseq
          %v1316 = vshrl.u32 %v1315, 7
          %v1317 = vsub.s32 3, %v1316
          %v1318 = vrot.slane %v1308, %v1317
          %v1319 = vlaneseq
          %v1320 = vshrl.u32 %v1319, 7
          %v1321 = vsub.s32 3, %v1320
          %v1322 = vrot.slane %v1312, %v1321
          %v1323 = vmul.f32 %v1179, %v1318
          %v1324 = vmul.f32 %v1179, %v1322
          %v1325 = vmul.f32 %v1183, %v1318
          %v1326 = vmul.f32 %v1183, %v1322
          %v1327 = vmul.f32 %v1187, %v1318
          %v1328 = vmul.f32 %v1187, %v1322
          %v1329 = vmul.f32 %v1191, %v1318
          %v1330 = vmul.f32 %v1191, %v1322
          %v1331 = vmul.f32 %v1195, %v1318
          %v1332 = vmul.f32 %v1195, %v1322
          %v1333 = vmul.f32 %v1199, %v1318
          %v1334 = vmul.f32 %v1199, %v1322
          %v1335 = vmul.f32 %v1203, %v1318
          %v1336 = vmul.f32 %v1203, %v1322
          %v1337 = vmul.f32 %v1207, %v1318
          %v1338 = vmul.f32 %v1207, %v1322
          %v1339 = vmul.f32 %v1211, %v1318
          %v1340 = vmul.f32 %v1211, %v1322
          %v1341 = vmul.f32 %v1215, %v1318
          %v1342 = vmul.f32 %v1215, %v1322
          %v1343 = vmul.f32 %v1219, %v1318
          %v1344 = vmul.f32 %v1219, %v1322
          %v1345 = vmul.f32 %v1223, %v1318
          %v1346 = vmul.f32 %v1223, %v1322
          %v1347 = vmul.f32 %v1227, %v1318
          %v1348 = vmul.f32 %v1227, %v1322
          %v1349 = vmul.f32 %v1231, %v1318
          %v1350 = vmul.f32 %v1231, %v1322
          %v1351 = vmul.f32 %v1235, %v1318
          %v1352 = vmul.f32 %v1235, %v1322
          %v1353 = vmul.f32 %v1239, %v1318
          %v1354 = vmul.f32 %v1239, %v1322
          %v1355 = vmul.f32 %v1243, %v1318
          %v1356 = vmul.f32 %v1243, %v1322
          %v1357 = vmul.f32 %v1247, %v1318
          %v1358 = vmul.f32 %v1247, %v1322
          %v1359 = vmul.f32 %v1251, %v1318
          %v1360 = vmul.f32 %v1251, %v1322
          %v1361 = vmul.f32 %v1255, %v1318
          %v1362 = vmul.f32 %v1255, %v1322
          %v1363 = vmul.f32 %v1259, %v1318
          %v1364 = vmul.f32 %v1259, %v1322
          %v1365 = vmul.f32 %v1263, %v1318
          %v1366 = vmul.f32 %v1263, %v1322
          %v1367 = vmul.f32 %v1267, %v1318
          %v1368 = vmul.f32 %v1267, %v1322
          %v1369 = vmul.f32 %v1271, %v1318
          %v1370 = vmul.f32 %v1271, %v1322
          %v1371 = vmul.f32 %v1275, %v1318
          %v1372 = vmul.f32 %v1275, %v1322
          %v1373 = vmul.f32 %v1279, %v1318
          %v1374 = vmul.f32 %v1279, %v1322
          %v1375 = vmul.f32 %v1283, %v1318
          %v1376 = vmul.f32 %v1283, %v1322
          %v1377 = vmul.f32 %v1287, %v1318
          %v1378 = vmul.f32 %v1287, %v1322
          %v1379 = vmul.f32 %v1291, %v1318
          %v1380 = vmul.f32 %v1291, %v1322
          %v1381 = vmul.f32 %v1295, %v1318
          %v1382 = vmul.f32 %v1295, %v1322
          %v1383 = vmul.f32 %v1299, %v1318
          %v1384 = vmul.f32 %v1299, %v1322
          %v1385 = vmul.f32 %v1303, %v1318
          %v1386 = vmul.f32 %v1303, %v1322
          %v1387 = vadd.f32 %v1113, %v1323
          %v1388 = vadd.f32 %v1114, %v1324
          %v1389 = vadd.f32 %v1115, %v1325
          %v1390 = vadd.f32 %v1116, %v1326
          %v1391 = vadd.f32 %v1117, %v1327
          %v1392 = vadd.f32 %v1118, %v1328
          %v1393 = vadd.f32 %v1119, %v1329
          %v1394 = vadd.f32 %v1120, %v1330
          %v1395 = vadd.f32 %v1121, %v1331
          %v1396 = vadd.f32 %v1122, %v1332
          %v1397 = vadd.f32 %v1123, %v1333
          %v1398 = vadd.f32 %v1124, %v1334
          %v1399 = vadd.f32 %v1125, %v1335
          %v1400 = vadd.f32 %v1126, %v1336
          %v1401 = vadd.f32 %v1127, %v1337
          %v1402 = vadd.f32 %v1128, %v1338
          %v1403 = vadd.f32 %v1129, %v1339
          %v1404 = vadd.f32 %v1130, %v1340
          %v1405 = vadd.f32 %v1131, %v1341
          %v1406 = vadd.f32 %v1132, %v1342
          %v1407 = vadd.f32 %v1133, %v1343
          %v1408 = vadd.f32 %v1134, %v1344
          %v1409 = vadd.f32 %v1135, %v1345
          %v1410 = vadd.f32 %v1136, %v1346
          %v1411 = vadd.f32 %v1137, %v1347
          %v1412 = vadd.f32 %v1138, %v1348
          %v1413 = vadd.f32 %v1139, %v1349
          %v1414 = vadd.f32 %v1140, %v1350
          %v1415 = vadd.f32 %v1141, %v1351
          %v1416 = vadd.f32 %v1142, %v1352
          %v1417 = vadd.f32 %v1143, %v1353
          %v1418 = vadd.f32 %v1144, %v1354
          %v1419 = vadd.f32 %v1145, %v1355
          %v1420 = vadd.f32 %v1146, %v1356
          %v1421 = vadd.f32 %v1147, %v1357
          %v1422 = vadd.f32 %v1148, %v1358
          %v1423 = vadd.f32 %v1149, %v1359
          %v1424 = vadd.f32 %v1150, %v1360
          %v1425 = vadd.f32 %v1151, %v1361
          %v1426 = vadd.f32 %v1152, %v1362
          %v1427 = vadd.f32 %v1153, %v1363
          %v1428 = vadd.f32 %v1154, %v1364
          %v1429 = vadd.f32 %v1155, %v1365
          %v1430 = vadd.f32 %v1156, %v1366
          %v1431 = vadd.f32 %v1157, %v1367
          %v1432 = vadd.f32 %v1158, %v1368
          %v1433 = vadd.f32 %v1159, %v1369
          %v1434 = vadd.f32 %v1160, %v1370
          %v1435 = vadd.f32 %v1161, %v1371
          %v1436 = vadd.f32 %v1162, %v1372
          %v1437 = vadd.f32 %v1163, %v1373
          %v1438 = vadd.f32 %v1164, %v1374
          %v1439 = vadd.f32 %v1165, %v1375
          %v1440 = vadd.f32 %v1166, %v1376
          %v1441 = vadd.f32 %v1167, %v1377
          %v1442 = vadd.f32 %v1168, %v1378
          %v1443 = vadd.f32 %v1169, %v1379
          %v1444 = vadd.f32 %v1170, %v1380
          %v1445 = vadd.f32 %v1171, %v1381
          %v1446 = vadd.f32 %v1172, %v1382
          %v1447 = vadd.f32 %v1173, %v1383
          %v1448 = vadd.f32 %v1174, %v1384
          %v1449 = vadd.f32 %v1175, %v1385
          %v1450 = vadd.f32 %v1176, %v1386
          %1451 = vst [vmem:[#allocation2] sm:$0xff] %v1387
          %1452 = vst [vmem:[#allocation2 + $0x8] sm:$0xff] %v1388
          %1453 = vst [vmem:[#allocation2 + $0x10] sm:$0xff] %v1389
          %1454 = vst [vmem:[#allocation2 + $0x18] sm:$0xff] %v1390
          %1455 = vst [vmem:[#allocation2 + $0x20] sm:$0xff] %v1391
          %1456 = vst [vmem:[#allocation2 + $0x28] sm:$0xff] %v1392
          %1457 = vst [vmem:[#allocation2 + $0x30] sm:$0xff] %v1393
          %1458 = vst [vmem:[#allocation2 + $0x38] sm:$0xff] %v1394
          %1459 = vst [vmem:[#allocation2 + $0x40] sm:$0xff] %v1395
          %1460 = vst [vmem:[#allocation2 + $0x48] sm:$0xff] %v1396
          %1461 = vst [vmem:[#allocation2 + $0x50] sm:$0xff] %v1397
          %1462 = vst [vmem:[#allocation2 + $0x58] sm:$0xff] %v1398
          %1463 = vst [vmem:[#allocation2 + $0x60] sm:$0xff] %v1399
          %1464 = vst [vmem:[#allocation2 + $0x68] sm:$0xff] %v1400
          %1465 = vst [vmem:[#allocation2 + $0x70] sm:$0xff] %v1401
          %1466 = vst [vmem:[#allocation2 + $0x78] sm:$0xff] %v1402
          %1467 = vst [vmem:[#allocation2 + $0x80] sm:$0xff] %v1403
          %1468 = vst [vmem:[#allocation2 + $0x88] sm:$0xff] %v1404
          %1469 = vst [vmem:[#allocation2 + $0x90] sm:$0xff] %v1405
          %1470 = vst [vmem:[#allocation2 + $0x98] sm:$0xff] %v1406
          %1471 = vst [vmem:[#allocation2 + $0xa0] sm:$0xff] %v1407
          %1472 = vst [vmem:[#allocation2 + $0xa8] sm:$0xff] %v1408
          %1473 = vst [vmem:[#allocation2 + $0xb0] sm:$0xff] %v1409
          %1474 = vst [vmem:[#allocation2 + $0xb8] sm:$0xff] %v1410
          %1475 = vst [vmem:[#allocation2 + $0xc0] sm:$0xff] %v1411
          %1476 = vst [vmem:[#allocation2 + $0xc8] sm:$0xff] %v1412
          %1477 = vst [vmem:[#allocation2 + $0xd0] sm:$0xff] %v1413
          %1478 = vst [vmem:[#allocation2 + $0xd8] sm:$0xff] %v1414
          %1479 = vst [vmem:[#allocation2 + $0xe0] sm:$0xff] %v1415
          %1480 = vst [vmem:[#allocation2 + $0xe8] sm:$0xff] %v1416
          %1481 = vst [vmem:[#allocation2 + $0xf0] sm:$0xff] %v1417
          %1482 = vst [vmem:[#allocation2 + $0xf8] sm:$0xff] %v1418
          %1483 = vst [vmem:[#allocation2 + $0x100] sm:$0xff] %v1419
          %1484 = vst [vmem:[#allocation2 + $0x108] sm:$0xff] %v1420
          %1485 = vst [vmem:[#allocation2 + $0x110] sm:$0xff] %v1421
          %1486 = vst [vmem:[#allocation2 + $0x118] sm:$0xff] %v1422
          %1487 = vst [vmem:[#allocation2 + $0x120] sm:$0xff] %v1423
          %1488 = vst [vmem:[#allocation2 + $0x128] sm:$0xff] %v1424
          %1489 = vst [vmem:[#allocation2 + $0x130] sm:$0xff] %v1425
          %1490 = vst [vmem:[#allocation2 + $0x138] sm:$0xff] %v1426
          %1491 = vst [vmem:[#allocation2 + $0x140] sm:$0xff] %v1427
          %1492 = vst [vmem:[#allocation2 + $0x148] sm:$0xff] %v1428
          %1493 = vst [vmem:[#allocation2 + $0x150] sm:$0xff] %v1429
          %1494 = vst [vmem:[#allocation2 + $0x158] sm:$0xff] %v1430
          %1495 = vst [vmem:[#allocation2 + $0x160] sm:$0xff] %v1431
          %1496 = vst [vmem:[#allocation2 + $0x168] sm:$0xff] %v1432
          %1497 = vst [vmem:[#allocation2 + $0x170] sm:$0xff] %v1433
          %1498 = vst [vmem:[#allocation2 + $0x178] sm:$0xff] %v1434
          %1499 = vst [vmem:[#allocation2 + $0x180] sm:$0xff] %v1435
          %1500 = vst [vmem:[#allocation2 + $0x188] sm:$0xff] %v1436
          %1501 = vst [vmem:[#allocation2 + $0x190] sm:$0xff] %v1437
          %1502 = vst [vmem:[#allocation2 + $0x198] sm:$0xff] %v1438
          %1503 = vst [vmem:[#allocation2 + $0x1a0] sm:$0xff] %v1439
          %1504 = vst [vmem:[#allocation2 + $0x1a8] sm:$0xff] %v1440
          %1505 = vst [vmem:[#allocation2 + $0x1b0] sm:$0xff] %v1441
          %1506 = vst [vmem:[#allocation2 + $0x1b8] sm:$0xff] %v1442
          %1507 = vst [vmem:[#allocation2 + $0x1c0] sm:$0xff] %v1443
          %1508 = vst [vmem:[#allocation2 + $0x1c8] sm:$0xff] %v1444
          %1509 = vst [vmem:[#allocation2 + $0x1d0] sm:$0xff] %v1445
          %1510 = vst [vmem:[#allocation2 + $0x1d8] sm:$0xff] %v1446
          %1511 = vst [vmem:[#allocation2 + $0x1e0] sm:$0xff] %v1447
          %1512 = vst [vmem:[#allocation2 + $0x1e8] sm:$0xff] %v1448
          %1513 = vst [vmem:[#allocation2 + $0x1f0] sm:$0xff] %v1449
          %1514 = vst [vmem:[#allocation2 + $0x1f8] sm:$0xff] %v1450
        $region52: #{tpu_custom_call.1} parent=47 // pred_fallthru
          _
        %v1515 = vld [vmem:[%s336] sm:$0xff]
        %v1516 = vmul.f32 %v1515, 0.5
        %v1517 = vld [vmem:[%s347] sm:$0xff]
        %v1518 = vld [vmem:[%s347 + $0x8] sm:$0xff]
        %v1519 = vld [vmem:[%s347 + $0x10] sm:$0xff]
        %v1520 = vld [vmem:[%s347 + $0x18] sm:$0xff]
        %v1521 = vld [vmem:[%s347 + $0x20] sm:$0xff]
        %v1522 = vld [vmem:[%s347 + $0x28] sm:$0xff]
        %v1523 = vld [vmem:[%s347 + $0x30] sm:$0xff]
        %v1524 = vld [vmem:[%s347 + $0x38] sm:$0xff]
        %v1525 = vld [vmem:[%s347 + $0x40] sm:$0xff]
        %v1526 = vld [vmem:[%s347 + $0x48] sm:$0xff]
        %v1527 = vld [vmem:[%s347 + $0x50] sm:$0xff]
        %v1528 = vld [vmem:[%s347 + $0x58] sm:$0xff]
        %v1529 = vld [vmem:[%s347 + $0x60] sm:$0xff]
        %v1530 = vld [vmem:[%s347 + $0x68] sm:$0xff]
        %v1531 = vld [vmem:[%s347 + $0x70] sm:$0xff]
        %v1532 = vld [vmem:[%s347 + $0x78] sm:$0xff]
        %v1533 = vld [vmem:[%s347 + $0x80] sm:$0xff]
        %v1534 = vld [vmem:[%s347 + $0x88] sm:$0xff]
        %v1535 = vld [vmem:[%s347 + $0x90] sm:$0xff]
        %v1536 = vld [vmem:[%s347 + $0x98] sm:$0xff]
        %v1537 = vld [vmem:[%s347 + $0xa0] sm:$0xff]
        %v1538 = vld [vmem:[%s347 + $0xa8] sm:$0xff]
        %v1539 = vld [vmem:[%s347 + $0xb0] sm:$0xff]
        %v1540 = vld [vmem:[%s347 + $0xb8] sm:$0xff]
        %v1541 = vld [vmem:[%s347 + $0xc0] sm:$0xff]
        %v1542 = vld [vmem:[%s347 + $0xc8] sm:$0xff]
        %v1543 = vld [vmem:[%s347 + $0xd0] sm:$0xff]
        %v1544 = vld [vmem:[%s347 + $0xd8] sm:$0xff]
        %v1545 = vld [vmem:[%s347 + $0xe0] sm:$0xff]
        %v1546 = vld [vmem:[%s347 + $0xe8] sm:$0xff]
        %v1547 = vld [vmem:[%s347 + $0xf0] sm:$0xff]
        %v1548 = vld [vmem:[%s347 + $0xf8] sm:$0xff]
        %1550 = vset.pattern.permute.xlu0 0
        %1551 = vperm.xlu0 %1550, %v1517
        %v1552 = vpop.permute.xlu0 %1551
        %1555 = vset.pattern.permute.xlu0 0
        %1556 = vperm.xlu0 %1555, %v1518
        %v1557 = vpop.permute.xlu0 %1556
        %1560 = vset.pattern.permute.xlu0 0
        %1561 = vperm.xlu0 %1560, %v1519
        %v1562 = vpop.permute.xlu0 %1561
        %1565 = vset.pattern.permute.xlu0 0
        %1566 = vperm.xlu0 %1565, %v1520
        %v1567 = vpop.permute.xlu0 %1566
        %1570 = vset.pattern.permute.xlu0 0
        %1571 = vperm.xlu0 %1570, %v1521
        %v1572 = vpop.permute.xlu0 %1571
        %1575 = vset.pattern.permute.xlu0 0
        %1576 = vperm.xlu0 %1575, %v1522
        %v1577 = vpop.permute.xlu0 %1576
        %1580 = vset.pattern.permute.xlu0 0
        %1581 = vperm.xlu0 %1580, %v1523
        %v1582 = vpop.permute.xlu0 %1581
        %1585 = vset.pattern.permute.xlu0 0
        %1586 = vperm.xlu0 %1585, %v1524
        %v1587 = vpop.permute.xlu0 %1586
        %1590 = vset.pattern.permute.xlu0 0
        %1591 = vperm.xlu0 %1590, %v1525
        %v1592 = vpop.permute.xlu0 %1591
        %1595 = vset.pattern.permute.xlu0 0
        %1596 = vperm.xlu0 %1595, %v1526
        %v1597 = vpop.permute.xlu0 %1596
        %1600 = vset.pattern.permute.xlu0 0
        %1601 = vperm.xlu0 %1600, %v1527
        %v1602 = vpop.permute.xlu0 %1601
        %1605 = vset.pattern.permute.xlu0 0
        %1606 = vperm.xlu0 %1605, %v1528
        %v1607 = vpop.permute.xlu0 %1606
        %1610 = vset.pattern.permute.xlu0 0
        %1611 = vperm.xlu0 %1610, %v1529
        %v1612 = vpop.permute.xlu0 %1611
        %1615 = vset.pattern.permute.xlu0 0
        %1616 = vperm.xlu0 %1615, %v1530
        %v1617 = vpop.permute.xlu0 %1616
        %1620 = vset.pattern.permute.xlu0 0
        %1621 = vperm.xlu0 %1620, %v1531
        %v1622 = vpop.permute.xlu0 %1621
        %1625 = vset.pattern.permute.xlu0 0
        %1626 = vperm.xlu0 %1625, %v1532
        %v1627 = vpop.permute.xlu0 %1626
        %1630 = vset.pattern.permute.xlu0 0
        %1631 = vperm.xlu0 %1630, %v1533
        %v1632 = vpop.permute.xlu0 %1631
        %1635 = vset.pattern.permute.xlu0 0
        %1636 = vperm.xlu0 %1635, %v1534
        %v1637 = vpop.permute.xlu0 %1636
        %1640 = vset.pattern.permute.xlu0 0
        %1641 = vperm.xlu0 %1640, %v1535
        %v1642 = vpop.permute.xlu0 %1641
        %1645 = vset.pattern.permute.xlu0 0
        %1646 = vperm.xlu0 %1645, %v1536
        %v1647 = vpop.permute.xlu0 %1646
        %1650 = vset.pattern.permute.xlu0 0
        %1651 = vperm.xlu0 %1650, %v1537
        %v1652 = vpop.permute.xlu0 %1651
        %1655 = vset.pattern.permute.xlu0 0
        %1656 = vperm.xlu0 %1655, %v1538
        %v1657 = vpop.permute.xlu0 %1656
        %1660 = vset.pattern.permute.xlu0 0
        %1661 = vperm.xlu0 %1660, %v1539
        %v1662 = vpop.permute.xlu0 %1661
        %1665 = vset.pattern.permute.xlu0 0
        %1666 = vperm.xlu0 %1665, %v1540
        %v1667 = vpop.permute.xlu0 %1666
        %1670 = vset.pattern.permute.xlu0 0
        %1671 = vperm.xlu0 %1670, %v1541
        %v1672 = vpop.permute.xlu0 %1671
        %1675 = vset.pattern.permute.xlu0 0
        %1676 = vperm.xlu0 %1675, %v1542
        %v1677 = vpop.permute.xlu0 %1676
        %1680 = vset.pattern.permute.xlu0 0
        %1681 = vperm.xlu0 %1680, %v1543
        %v1682 = vpop.permute.xlu0 %1681
        %1685 = vset.pattern.permute.xlu0 0
        %1686 = vperm.xlu0 %1685, %v1544
        %v1687 = vpop.permute.xlu0 %1686
        %1690 = vset.pattern.permute.xlu0 0
        %1691 = vperm.xlu0 %1690, %v1545
        %v1692 = vpop.permute.xlu0 %1691
        %1695 = vset.pattern.permute.xlu0 0
        %1696 = vperm.xlu0 %1695, %v1546
        %v1697 = vpop.permute.xlu0 %1696
        %1700 = vset.pattern.permute.xlu0 0
        %1701 = vperm.xlu0 %1700, %v1547
        %v1702 = vpop.permute.xlu0 %1701
        %1705 = vset.pattern.permute.xlu0 0
        %1706 = vperm.xlu0 %1705, %v1548
        %v1707 = vpop.permute.xlu0 %1706
        %v1710 = vlaneseq
        %v1711 = vshrl.u32 %v1710, 7
        %v1712 = vsub.s32 0, %v1711
        %v1713 = vrot.slane %v1516, %v1712
        %v1714 = vlaneseq
        %v1715 = vshrl.u32 %v1714, 7
        %v1716 = vsub.s32 4, %v1715
        %v1717 = vrot.slane %v1516, %v1716
        %v1720 = vlaneseq
        %v1721 = vshrl.u32 %v1720, 7
        %v1722 = vsub.s32 0, %v1721
        %v1723 = vrot.slane %v1713, %v1722
        %v1724 = vlaneseq
        %v1725 = vshrl.u32 %v1724, 7
        %v1726 = vsub.s32 0, %v1725
        %v1727 = vrot.slane %v1717, %v1726
        %v1728 = vmul.f32 %v1552, %v1723
        %v1729 = vmul.f32 %v1552, %v1727
        %v1730 = vmul.f32 %v1557, %v1723
        %v1731 = vmul.f32 %v1557, %v1727
        %v1732 = vmul.f32 %v1562, %v1723
        %v1733 = vmul.f32 %v1562, %v1727
        %v1734 = vmul.f32 %v1567, %v1723
        %v1735 = vmul.f32 %v1567, %v1727
        %v1736 = vmul.f32 %v1572, %v1723
        %v1737 = vmul.f32 %v1572, %v1727
        %v1738 = vmul.f32 %v1577, %v1723
        %v1739 = vmul.f32 %v1577, %v1727
        %v1740 = vmul.f32 %v1582, %v1723
        %v1741 = vmul.f32 %v1582, %v1727
        %v1742 = vmul.f32 %v1587, %v1723
        %v1743 = vmul.f32 %v1587, %v1727
        %v1744 = vmul.f32 %v1592, %v1723
        %v1745 = vmul.f32 %v1592, %v1727
        %v1746 = vmul.f32 %v1597, %v1723
        %v1747 = vmul.f32 %v1597, %v1727
        %v1748 = vmul.f32 %v1602, %v1723
        %v1749 = vmul.f32 %v1602, %v1727
        %v1750 = vmul.f32 %v1607, %v1723
        %v1751 = vmul.f32 %v1607, %v1727
        %v1752 = vmul.f32 %v1612, %v1723
        %v1753 = vmul.f32 %v1612, %v1727
        %v1754 = vmul.f32 %v1617, %v1723
        %v1755 = vmul.f32 %v1617, %v1727
        %v1756 = vmul.f32 %v1622, %v1723
        %v1757 = vmul.f32 %v1622, %v1727
        %v1758 = vmul.f32 %v1627, %v1723
        %v1759 = vmul.f32 %v1627, %v1727
        %v1760 = vmul.f32 %v1632, %v1723
        %v1761 = vmul.f32 %v1632, %v1727
        %v1762 = vmul.f32 %v1637, %v1723
        %v1763 = vmul.f32 %v1637, %v1727
        %v1764 = vmul.f32 %v1642, %v1723
        %v1765 = vmul.f32 %v1642, %v1727
        %v1766 = vmul.f32 %v1647, %v1723
        %v1767 = vmul.f32 %v1647, %v1727
        %v1768 = vmul.f32 %v1652, %v1723
        %v1769 = vmul.f32 %v1652, %v1727
        %v1770 = vmul.f32 %v1657, %v1723
        %v1771 = vmul.f32 %v1657, %v1727
        %v1772 = vmul.f32 %v1662, %v1723
        %v1773 = vmul.f32 %v1662, %v1727
        %v1774 = vmul.f32 %v1667, %v1723
        %v1775 = vmul.f32 %v1667, %v1727
        %v1776 = vmul.f32 %v1672, %v1723
        %v1777 = vmul.f32 %v1672, %v1727
        %v1778 = vmul.f32 %v1677, %v1723
        %v1779 = vmul.f32 %v1677, %v1727
        %v1780 = vmul.f32 %v1682, %v1723
        %v1781 = vmul.f32 %v1682, %v1727
        %v1782 = vmul.f32 %v1687, %v1723
        %v1783 = vmul.f32 %v1687, %v1727
        %v1784 = vmul.f32 %v1692, %v1723
        %v1785 = vmul.f32 %v1692, %v1727
        %v1786 = vmul.f32 %v1697, %v1723
        %v1787 = vmul.f32 %v1697, %v1727
        %v1788 = vmul.f32 %v1702, %v1723
        %v1789 = vmul.f32 %v1702, %v1727
        %v1790 = vmul.f32 %v1707, %v1723
        %v1791 = vmul.f32 %v1707, %v1727
        %1792 = vset.pattern.permute.xlu0 1
        %1793 = vperm.xlu0 %1792, %v1517
        %v1794 = vpop.permute.xlu0 %1793
        %1796 = vset.pattern.permute.xlu0 1
        %1797 = vperm.xlu0 %1796, %v1518
        %v1798 = vpop.permute.xlu0 %1797
        %1800 = vset.pattern.permute.xlu0 1
        %1801 = vperm.xlu0 %1800, %v1519
        %v1802 = vpop.permute.xlu0 %1801
        %1804 = vset.pattern.permute.xlu0 1
        %1805 = vperm.xlu0 %1804, %v1520
        %v1806 = vpop.permute.xlu0 %1805
        %1808 = vset.pattern.permute.xlu0 1
        %1809 = vperm.xlu0 %1808, %v1521
        %v1810 = vpop.permute.xlu0 %1809
        %1812 = vset.pattern.permute.xlu0 1
        %1813 = vperm.xlu0 %1812, %v1522
        %v1814 = vpop.permute.xlu0 %1813
        %1816 = vset.pattern.permute.xlu0 1
        %1817 = vperm.xlu0 %1816, %v1523
        %v1818 = vpop.permute.xlu0 %1817
        %1820 = vset.pattern.permute.xlu0 1
        %1821 = vperm.xlu0 %1820, %v1524
        %v1822 = vpop.permute.xlu0 %1821
        %1824 = vset.pattern.permute.xlu0 1
        %1825 = vperm.xlu0 %1824, %v1525
        %v1826 = vpop.permute.xlu0 %1825
        %1828 = vset.pattern.permute.xlu0 1
        %1829 = vperm.xlu0 %1828, %v1526
        %v1830 = vpop.permute.xlu0 %1829
        %1832 = vset.pattern.permute.xlu0 1
        %1833 = vperm.xlu0 %1832, %v1527
        %v1834 = vpop.permute.xlu0 %1833
        %1836 = vset.pattern.permute.xlu0 1
        %1837 = vperm.xlu0 %1836, %v1528
        %v1838 = vpop.permute.xlu0 %1837
        %1840 = vset.pattern.permute.xlu0 1
        %1841 = vperm.xlu0 %1840, %v1529
        %v1842 = vpop.permute.xlu0 %1841
        %1844 = vset.pattern.permute.xlu0 1
        %1845 = vperm.xlu0 %1844, %v1530
        %v1846 = vpop.permute.xlu0 %1845
        %1848 = vset.pattern.permute.xlu0 1
        %1849 = vperm.xlu0 %1848, %v1531
        %v1850 = vpop.permute.xlu0 %1849
        %1852 = vset.pattern.permute.xlu0 1
        %1853 = vperm.xlu0 %1852, %v1532
        %v1854 = vpop.permute.xlu0 %1853
        %1856 = vset.pattern.permute.xlu0 1
        %1857 = vperm.xlu0 %1856, %v1533
        %v1858 = vpop.permute.xlu0 %1857
        %1860 = vset.pattern.permute.xlu0 1
        %1861 = vperm.xlu0 %1860, %v1534
        %v1862 = vpop.permute.xlu0 %1861
        %1864 = vset.pattern.permute.xlu0 1
        %1865 = vperm.xlu0 %1864, %v1535
        %v1866 = vpop.permute.xlu0 %1865
        %1868 = vset.pattern.permute.xlu0 1
        %1869 = vperm.xlu0 %1868, %v1536
        %v1870 = vpop.permute.xlu0 %1869
        %1872 = vset.pattern.permute.xlu0 1
        %1873 = vperm.xlu0 %1872, %v1537
        %v1874 = vpop.permute.xlu0 %1873
        %1876 = vset.pattern.permute.xlu0 1
        %1877 = vperm.xlu0 %1876, %v1538
        %v1878 = vpop.permute.xlu0 %1877
        %1880 = vset.pattern.permute.xlu0 1
        %1881 = vperm.xlu0 %1880, %v1539
        %v1882 = vpop.permute.xlu0 %1881
        %1884 = vset.pattern.permute.xlu0 1
        %1885 = vperm.xlu0 %1884, %v1540
        %v1886 = vpop.permute.xlu0 %1885
        %1888 = vset.pattern.permute.xlu0 1
        %1889 = vperm.xlu0 %1888, %v1541
        %v1890 = vpop.permute.xlu0 %1889
        %1892 = vset.pattern.permute.xlu0 1
        %1893 = vperm.xlu0 %1892, %v1542
        %v1894 = vpop.permute.xlu0 %1893
        %1896 = vset.pattern.permute.xlu0 1
        %1897 = vperm.xlu0 %1896, %v1543
        %v1898 = vpop.permute.xlu0 %1897
        %1900 = vset.pattern.permute.xlu0 1
        %1901 = vperm.xlu0 %1900, %v1544
        %v1902 = vpop.permute.xlu0 %1901
        %1904 = vset.pattern.permute.xlu0 1
        %1905 = vperm.xlu0 %1904, %v1545
        %v1906 = vpop.permute.xlu0 %1905
        %1908 = vset.pattern.permute.xlu0 1
        %1909 = vperm.xlu0 %1908, %v1546
        %v1910 = vpop.permute.xlu0 %1909
        %1912 = vset.pattern.permute.xlu0 1
        %1913 = vperm.xlu0 %1912, %v1547
        %v1914 = vpop.permute.xlu0 %1913
        %1916 = vset.pattern.permute.xlu0 1
        %1917 = vperm.xlu0 %1916, %v1548
        %v1918 = vpop.permute.xlu0 %1917
        %v1920 = vlaneseq
        %v1921 = vshrl.u32 %v1920, 7
        %v1922 = vsub.s32 1, %v1921
        %v1923 = vrot.slane %v1516, %v1922
        %v1924 = vlaneseq
        %v1925 = vshrl.u32 %v1924, 7
        %v1926 = vsub.s32 5, %v1925
        %v1927 = vrot.slane %v1516, %v1926
        %v1930 = vlaneseq
        %v1931 = vshrl.u32 %v1930, 7
        %v1932 = vsub.s32 1, %v1931
        %v1933 = vrot.slane %v1923, %v1932
        %v1934 = vlaneseq
        %v1935 = vshrl.u32 %v1934, 7
        %v1936 = vsub.s32 1, %v1935
        %v1937 = vrot.slane %v1927, %v1936
        %v1938 = vmul.f32 %v1794, %v1933
        %v1939 = vmul.f32 %v1794, %v1937
        %v1940 = vmul.f32 %v1798, %v1933
        %v1941 = vmul.f32 %v1798, %v1937
        %v1942 = vmul.f32 %v1802, %v1933
        %v1943 = vmul.f32 %v1802, %v1937
        %v1944 = vmul.f32 %v1806, %v1933
        %v1945 = vmul.f32 %v1806, %v1937
        %v1946 = vmul.f32 %v1810, %v1933
        %v1947 = vmul.f32 %v1810, %v1937
        %v1948 = vmul.f32 %v1814, %v1933
        %v1949 = vmul.f32 %v1814, %v1937
        %v1950 = vmul.f32 %v1818, %v1933
        %v1951 = vmul.f32 %v1818, %v1937
        %v1952 = vmul.f32 %v1822, %v1933
        %v1953 = vmul.f32 %v1822, %v1937
        %v1954 = vmul.f32 %v1826, %v1933
        %v1955 = vmul.f32 %v1826, %v1937
        %v1956 = vmul.f32 %v1830, %v1933
        %v1957 = vmul.f32 %v1830, %v1937
        %v1958 = vmul.f32 %v1834, %v1933
        %v1959 = vmul.f32 %v1834, %v1937
        %v1960 = vmul.f32 %v1838, %v1933
        %v1961 = vmul.f32 %v1838, %v1937
        %v1962 = vmul.f32 %v1842, %v1933
        %v1963 = vmul.f32 %v1842, %v1937
        %v1964 = vmul.f32 %v1846, %v1933
        %v1965 = vmul.f32 %v1846, %v1937
        %v1966 = vmul.f32 %v1850, %v1933
        %v1967 = vmul.f32 %v1850, %v1937
        %v1968 = vmul.f32 %v1854, %v1933
        %v1969 = vmul.f32 %v1854, %v1937
        %v1970 = vmul.f32 %v1858, %v1933
        %v1971 = vmul.f32 %v1858, %v1937
        %v1972 = vmul.f32 %v1862, %v1933
        %v1973 = vmul.f32 %v1862, %v1937
        %v1974 = vmul.f32 %v1866, %v1933
        %v1975 = vmul.f32 %v1866, %v1937
        %v1976 = vmul.f32 %v1870, %v1933
        %v1977 = vmul.f32 %v1870, %v1937
        %v1978 = vmul.f32 %v1874, %v1933
        %v1979 = vmul.f32 %v1874, %v1937
        %v1980 = vmul.f32 %v1878, %v1933
        %v1981 = vmul.f32 %v1878, %v1937
        %v1982 = vmul.f32 %v1882, %v1933
        %v1983 = vmul.f32 %v1882, %v1937
        %v1984 = vmul.f32 %v1886, %v1933
        %v1985 = vmul.f32 %v1886, %v1937
        %v1986 = vmul.f32 %v1890, %v1933
        %v1987 = vmul.f32 %v1890, %v1937
        %v1988 = vmul.f32 %v1894, %v1933
        %v1989 = vmul.f32 %v1894, %v1937
        %v1990 = vmul.f32 %v1898, %v1933
        %v1991 = vmul.f32 %v1898, %v1937
        %v1992 = vmul.f32 %v1902, %v1933
        %v1993 = vmul.f32 %v1902, %v1937
        %v1994 = vmul.f32 %v1906, %v1933
        %v1995 = vmul.f32 %v1906, %v1937
        %v1996 = vmul.f32 %v1910, %v1933
        %v1997 = vmul.f32 %v1910, %v1937
        %v1998 = vmul.f32 %v1914, %v1933
        %v1999 = vmul.f32 %v1914, %v1937
        %v2000 = vmul.f32 %v1918, %v1933
        %v2001 = vmul.f32 %v1918, %v1937
        %v2002 = vadd.f32 %v1728, %v1938
        %v2003 = vadd.f32 %v1729, %v1939
        %v2004 = vadd.f32 %v1730, %v1940
        %v2005 = vadd.f32 %v1731, %v1941
        %v2006 = vadd.f32 %v1732, %v1942
        %v2007 = vadd.f32 %v1733, %v1943
        %v2008 = vadd.f32 %v1734, %v1944
        %v2009 = vadd.f32 %v1735, %v1945
        %v2010 = vadd.f32 %v1736, %v1946
        %v2011 = vadd.f32 %v1737, %v1947
        %v2012 = vadd.f32 %v1738, %v1948
        %v2013 = vadd.f32 %v1739, %v1949
        %v2014 = vadd.f32 %v1740, %v1950
        %v2015 = vadd.f32 %v1741, %v1951
        %v2016 = vadd.f32 %v1742, %v1952
        %v2017 = vadd.f32 %v1743, %v1953
        %v2018 = vadd.f32 %v1744, %v1954
        %v2019 = vadd.f32 %v1745, %v1955
        %v2020 = vadd.f32 %v1746, %v1956
        %v2021 = vadd.f32 %v1747, %v1957
        %v2022 = vadd.f32 %v1748, %v1958
        %v2023 = vadd.f32 %v1749, %v1959
        %v2024 = vadd.f32 %v1750, %v1960
        %v2025 = vadd.f32 %v1751, %v1961
        %v2026 = vadd.f32 %v1752, %v1962
        %v2027 = vadd.f32 %v1753, %v1963
        %v2028 = vadd.f32 %v1754, %v1964
        %v2029 = vadd.f32 %v1755, %v1965
        %v2030 = vadd.f32 %v1756, %v1966
        %v2031 = vadd.f32 %v1757, %v1967
        %v2032 = vadd.f32 %v1758, %v1968
        %v2033 = vadd.f32 %v1759, %v1969
        %v2034 = vadd.f32 %v1760, %v1970
        %v2035 = vadd.f32 %v1761, %v1971
        %v2036 = vadd.f32 %v1762, %v1972
        %v2037 = vadd.f32 %v1763, %v1973
        %v2038 = vadd.f32 %v1764, %v1974
        %v2039 = vadd.f32 %v1765, %v1975
        %v2040 = vadd.f32 %v1766, %v1976
        %v2041 = vadd.f32 %v1767, %v1977
        %v2042 = vadd.f32 %v1768, %v1978
        %v2043 = vadd.f32 %v1769, %v1979
        %v2044 = vadd.f32 %v1770, %v1980
        %v2045 = vadd.f32 %v1771, %v1981
        %v2046 = vadd.f32 %v1772, %v1982
        %v2047 = vadd.f32 %v1773, %v1983
        %v2048 = vadd.f32 %v1774, %v1984
        %v2049 = vadd.f32 %v1775, %v1985
        %v2050 = vadd.f32 %v1776, %v1986
        %v2051 = vadd.f32 %v1777, %v1987
        %v2052 = vadd.f32 %v1778, %v1988
        %v2053 = vadd.f32 %v1779, %v1989
        %v2054 = vadd.f32 %v1780, %v1990
        %v2055 = vadd.f32 %v1781, %v1991
        %v2056 = vadd.f32 %v1782, %v1992
        %v2057 = vadd.f32 %v1783, %v1993
        %v2058 = vadd.f32 %v1784, %v1994
        %v2059 = vadd.f32 %v1785, %v1995
        %v2060 = vadd.f32 %v1786, %v1996
        %v2061 = vadd.f32 %v1787, %v1997
        %v2062 = vadd.f32 %v1788, %v1998
        %v2063 = vadd.f32 %v1789, %v1999
        %v2064 = vadd.f32 %v1790, %v2000
        %v2065 = vadd.f32 %v1791, %v2001
        %2066 = vset.pattern.permute.xlu0 2
        %2067 = vperm.xlu0 %2066, %v1517
        %v2068 = vpop.permute.xlu0 %2067
        %2070 = vset.pattern.permute.xlu0 2
        %2071 = vperm.xlu0 %2070, %v1518
        %v2072 = vpop.permute.xlu0 %2071
        %2074 = vset.pattern.permute.xlu0 2
        %2075 = vperm.xlu0 %2074, %v1519
        %v2076 = vpop.permute.xlu0 %2075
        %2078 = vset.pattern.permute.xlu0 2
        %2079 = vperm.xlu0 %2078, %v1520
        %v2080 = vpop.permute.xlu0 %2079
        %2082 = vset.pattern.permute.xlu0 2
        %2083 = vperm.xlu0 %2082, %v1521
        %v2084 = vpop.permute.xlu0 %2083
        %2086 = vset.pattern.permute.xlu0 2
        %2087 = vperm.xlu0 %2086, %v1522
        %v2088 = vpop.permute.xlu0 %2087
        %2090 = vset.pattern.permute.xlu0 2
        %2091 = vperm.xlu0 %2090, %v1523
        %v2092 = vpop.permute.xlu0 %2091
        %2094 = vset.pattern.permute.xlu0 2
        %2095 = vperm.xlu0 %2094, %v1524
        %v2096 = vpop.permute.xlu0 %2095
        %2098 = vset.pattern.permute.xlu0 2
        %2099 = vperm.xlu0 %2098, %v1525
        %v2100 = vpop.permute.xlu0 %2099
        %2102 = vset.pattern.permute.xlu0 2
        %2103 = vperm.xlu0 %2102, %v1526
        %v2104 = vpop.permute.xlu0 %2103
        %2106 = vset.pattern.permute.xlu0 2
        %2107 = vperm.xlu0 %2106, %v1527
        %v2108 = vpop.permute.xlu0 %2107
        %2110 = vset.pattern.permute.xlu0 2
        %2111 = vperm.xlu0 %2110, %v1528
        %v2112 = vpop.permute.xlu0 %2111
        %2114 = vset.pattern.permute.xlu0 2
        %2115 = vperm.xlu0 %2114, %v1529
        %v2116 = vpop.permute.xlu0 %2115
        %2118 = vset.pattern.permute.xlu0 2
        %2119 = vperm.xlu0 %2118, %v1530
        %v2120 = vpop.permute.xlu0 %2119
        %2122 = vset.pattern.permute.xlu0 2
        %2123 = vperm.xlu0 %2122, %v1531
        %v2124 = vpop.permute.xlu0 %2123
        %2126 = vset.pattern.permute.xlu0 2
        %2127 = vperm.xlu0 %2126, %v1532
        %v2128 = vpop.permute.xlu0 %2127
        %2130 = vset.pattern.permute.xlu0 2
        %2131 = vperm.xlu0 %2130, %v1533
        %v2132 = vpop.permute.xlu0 %2131
        %2134 = vset.pattern.permute.xlu0 2
        %2135 = vperm.xlu0 %2134, %v1534
        %v2136 = vpop.permute.xlu0 %2135
        %2138 = vset.pattern.permute.xlu0 2
        %2139 = vperm.xlu0 %2138, %v1535
        %v2140 = vpop.permute.xlu0 %2139
        %2142 = vset.pattern.permute.xlu0 2
        %2143 = vperm.xlu0 %2142, %v1536
        %v2144 = vpop.permute.xlu0 %2143
        %2146 = vset.pattern.permute.xlu0 2
        %2147 = vperm.xlu0 %2146, %v1537
        %v2148 = vpop.permute.xlu0 %2147
        %2150 = vset.pattern.permute.xlu0 2
        %2151 = vperm.xlu0 %2150, %v1538
        %v2152 = vpop.permute.xlu0 %2151
        %2154 = vset.pattern.permute.xlu0 2
        %2155 = vperm.xlu0 %2154, %v1539
        %v2156 = vpop.permute.xlu0 %2155
        %2158 = vset.pattern.permute.xlu0 2
        %2159 = vperm.xlu0 %2158, %v1540
        %v2160 = vpop.permute.xlu0 %2159
        %2162 = vset.pattern.permute.xlu0 2
        %2163 = vperm.xlu0 %2162, %v1541
        %v2164 = vpop.permute.xlu0 %2163
        %2166 = vset.pattern.permute.xlu0 2
        %2167 = vperm.xlu0 %2166, %v1542
        %v2168 = vpop.permute.xlu0 %2167
        %2170 = vset.pattern.permute.xlu0 2
        %2171 = vperm.xlu0 %2170, %v1543
        %v2172 = vpop.permute.xlu0 %2171
        %2174 = vset.pattern.permute.xlu0 2
        %2175 = vperm.xlu0 %2174, %v1544
        %v2176 = vpop.permute.xlu0 %2175
        %2178 = vset.pattern.permute.xlu0 2
        %2179 = vperm.xlu0 %2178, %v1545
        %v2180 = vpop.permute.xlu0 %2179
        %2182 = vset.pattern.permute.xlu0 2
        %2183 = vperm.xlu0 %2182, %v1546
        %v2184 = vpop.permute.xlu0 %2183
        %2186 = vset.pattern.permute.xlu0 2
        %2187 = vperm.xlu0 %2186, %v1547
        %v2188 = vpop.permute.xlu0 %2187
        %2190 = vset.pattern.permute.xlu0 2
        %2191 = vperm.xlu0 %2190, %v1548
        %v2192 = vpop.permute.xlu0 %2191
        %v2194 = vlaneseq
        %v2195 = vshrl.u32 %v2194, 7
        %v2196 = vsub.s32 2, %v2195
        %v2197 = vrot.slane %v1516, %v2196
        %v2198 = vlaneseq
        %v2199 = vshrl.u32 %v2198, 7
        %v2200 = vsub.s32 6, %v2199
        %v2201 = vrot.slane %v1516, %v2200
        %v2204 = vlaneseq
        %v2205 = vshrl.u32 %v2204, 7
        %v2206 = vsub.s32 2, %v2205
        %v2207 = vrot.slane %v2197, %v2206
        %v2208 = vlaneseq
        %v2209 = vshrl.u32 %v2208, 7
        %v2210 = vsub.s32 2, %v2209
        %v2211 = vrot.slane %v2201, %v2210
        %v2212 = vmul.f32 %v2068, %v2207
        %v2213 = vmul.f32 %v2068, %v2211
        %v2214 = vmul.f32 %v2072, %v2207
        %v2215 = vmul.f32 %v2072, %v2211
        %v2216 = vmul.f32 %v2076, %v2207
        %v2217 = vmul.f32 %v2076, %v2211
        %v2218 = vmul.f32 %v2080, %v2207
        %v2219 = vmul.f32 %v2080, %v2211
        %v2220 = vmul.f32 %v2084, %v2207
        %v2221 = vmul.f32 %v2084, %v2211
        %v2222 = vmul.f32 %v2088, %v2207
        %v2223 = vmul.f32 %v2088, %v2211
        %v2224 = vmul.f32 %v2092, %v2207
        %v2225 = vmul.f32 %v2092, %v2211
        %v2226 = vmul.f32 %v2096, %v2207
        %v2227 = vmul.f32 %v2096, %v2211
        %v2228 = vmul.f32 %v2100, %v2207
        %v2229 = vmul.f32 %v2100, %v2211
        %v2230 = vmul.f32 %v2104, %v2207
        %v2231 = vmul.f32 %v2104, %v2211
        %v2232 = vmul.f32 %v2108, %v2207
        %v2233 = vmul.f32 %v2108, %v2211
        %v2234 = vmul.f32 %v2112, %v2207
        %v2235 = vmul.f32 %v2112, %v2211
        %v2236 = vmul.f32 %v2116, %v2207
        %v2237 = vmul.f32 %v2116, %v2211
        %v2238 = vmul.f32 %v2120, %v2207
        %v2239 = vmul.f32 %v2120, %v2211
        %v2240 = vmul.f32 %v2124, %v2207
        %v2241 = vmul.f32 %v2124, %v2211
        %v2242 = vmul.f32 %v2128, %v2207
        %v2243 = vmul.f32 %v2128, %v2211
        %v2244 = vmul.f32 %v2132, %v2207
        %v2245 = vmul.f32 %v2132, %v2211
        %v2246 = vmul.f32 %v2136, %v2207
        %v2247 = vmul.f32 %v2136, %v2211
        %v2248 = vmul.f32 %v2140, %v2207
        %v2249 = vmul.f32 %v2140, %v2211
        %v2250 = vmul.f32 %v2144, %v2207
        %v2251 = vmul.f32 %v2144, %v2211
        %v2252 = vmul.f32 %v2148, %v2207
        %v2253 = vmul.f32 %v2148, %v2211
        %v2254 = vmul.f32 %v2152, %v2207
        %v2255 = vmul.f32 %v2152, %v2211
        %v2256 = vmul.f32 %v2156, %v2207
        %v2257 = vmul.f32 %v2156, %v2211
        %v2258 = vmul.f32 %v2160, %v2207
        %v2259 = vmul.f32 %v2160, %v2211
        %v2260 = vmul.f32 %v2164, %v2207
        %v2261 = vmul.f32 %v2164, %v2211
        %v2262 = vmul.f32 %v2168, %v2207
        %v2263 = vmul.f32 %v2168, %v2211
        %v2264 = vmul.f32 %v2172, %v2207
        %v2265 = vmul.f32 %v2172, %v2211
        %v2266 = vmul.f32 %v2176, %v2207
        %v2267 = vmul.f32 %v2176, %v2211
        %v2268 = vmul.f32 %v2180, %v2207
        %v2269 = vmul.f32 %v2180, %v2211
        %v2270 = vmul.f32 %v2184, %v2207
        %v2271 = vmul.f32 %v2184, %v2211
        %v2272 = vmul.f32 %v2188, %v2207
        %v2273 = vmul.f32 %v2188, %v2211
        %v2274 = vmul.f32 %v2192, %v2207
        %v2275 = vmul.f32 %v2192, %v2211
        %v2276 = vadd.f32 %v2002, %v2212
        %v2277 = vadd.f32 %v2003, %v2213
        %v2278 = vadd.f32 %v2004, %v2214
        %v2279 = vadd.f32 %v2005, %v2215
        %v2280 = vadd.f32 %v2006, %v2216
        %v2281 = vadd.f32 %v2007, %v2217
        %v2282 = vadd.f32 %v2008, %v2218
        %v2283 = vadd.f32 %v2009, %v2219
        %v2284 = vadd.f32 %v2010, %v2220
        %v2285 = vadd.f32 %v2011, %v2221
        %v2286 = vadd.f32 %v2012, %v2222
        %v2287 = vadd.f32 %v2013, %v2223
        %v2288 = vadd.f32 %v2014, %v2224
        %v2289 = vadd.f32 %v2015, %v2225
        %v2290 = vadd.f32 %v2016, %v2226
        %v2291 = vadd.f32 %v2017, %v2227
        %v2292 = vadd.f32 %v2018, %v2228
        %v2293 = vadd.f32 %v2019, %v2229
        %v2294 = vadd.f32 %v2020, %v2230
        %v2295 = vadd.f32 %v2021, %v2231
        %v2296 = vadd.f32 %v2022, %v2232
        %v2297 = vadd.f32 %v2023, %v2233
        %v2298 = vadd.f32 %v2024, %v2234
        %v2299 = vadd.f32 %v2025, %v2235
        %v2300 = vadd.f32 %v2026, %v2236
        %v2301 = vadd.f32 %v2027, %v2237
        %v2302 = vadd.f32 %v2028, %v2238
        %v2303 = vadd.f32 %v2029, %v2239
        %v2304 = vadd.f32 %v2030, %v2240
        %v2305 = vadd.f32 %v2031, %v2241
        %v2306 = vadd.f32 %v2032, %v2242
        %v2307 = vadd.f32 %v2033, %v2243
        %v2308 = vadd.f32 %v2034, %v2244
        %v2309 = vadd.f32 %v2035, %v2245
        %v2310 = vadd.f32 %v2036, %v2246
        %v2311 = vadd.f32 %v2037, %v2247
        %v2312 = vadd.f32 %v2038, %v2248
        %v2313 = vadd.f32 %v2039, %v2249
        %v2314 = vadd.f32 %v2040, %v2250
        %v2315 = vadd.f32 %v2041, %v2251
        %v2316 = vadd.f32 %v2042, %v2252
        %v2317 = vadd.f32 %v2043, %v2253
        %v2318 = vadd.f32 %v2044, %v2254
        %v2319 = vadd.f32 %v2045, %v2255
        %v2320 = vadd.f32 %v2046, %v2256
        %v2321 = vadd.f32 %v2047, %v2257
        %v2322 = vadd.f32 %v2048, %v2258
        %v2323 = vadd.f32 %v2049, %v2259
        %v2324 = vadd.f32 %v2050, %v2260
        %v2325 = vadd.f32 %v2051, %v2261
        %v2326 = vadd.f32 %v2052, %v2262
        %v2327 = vadd.f32 %v2053, %v2263
        %v2328 = vadd.f32 %v2054, %v2264
        %v2329 = vadd.f32 %v2055, %v2265
        %v2330 = vadd.f32 %v2056, %v2266
        %v2331 = vadd.f32 %v2057, %v2267
        %v2332 = vadd.f32 %v2058, %v2268
        %v2333 = vadd.f32 %v2059, %v2269
        %v2334 = vadd.f32 %v2060, %v2270
        %v2335 = vadd.f32 %v2061, %v2271
        %v2336 = vadd.f32 %v2062, %v2272
        %v2337 = vadd.f32 %v2063, %v2273
        %v2338 = vadd.f32 %v2064, %v2274
        %v2339 = vadd.f32 %v2065, %v2275
        %2340 = vset.pattern.permute.xlu0 3
        %2341 = vperm.xlu0 %2340, %v1517
        %v2342 = vpop.permute.xlu0 %2341
        %2344 = vset.pattern.permute.xlu0 3
        %2345 = vperm.xlu0 %2344, %v1518
        %v2346 = vpop.permute.xlu0 %2345
        %2348 = vset.pattern.permute.xlu0 3
        %2349 = vperm.xlu0 %2348, %v1519
        %v2350 = vpop.permute.xlu0 %2349
        %2352 = vset.pattern.permute.xlu0 3
        %2353 = vperm.xlu0 %2352, %v1520
        %v2354 = vpop.permute.xlu0 %2353
        %2356 = vset.pattern.permute.xlu0 3
        %2357 = vperm.xlu0 %2356, %v1521
        %v2358 = vpop.permute.xlu0 %2357
        %2360 = vset.pattern.permute.xlu0 3
        %2361 = vperm.xlu0 %2360, %v1522
        %v2362 = vpop.permute.xlu0 %2361
        %2364 = vset.pattern.permute.xlu0 3
        %2365 = vperm.xlu0 %2364, %v1523
        %v2366 = vpop.permute.xlu0 %2365
        %2368 = vset.pattern.permute.xlu0 3
        %2369 = vperm.xlu0 %2368, %v1524
        %v2370 = vpop.permute.xlu0 %2369
        %2372 = vset.pattern.permute.xlu0 3
        %2373 = vperm.xlu0 %2372, %v1525
        %v2374 = vpop.permute.xlu0 %2373
        %2376 = vset.pattern.permute.xlu0 3
        %2377 = vperm.xlu0 %2376, %v1526
        %v2378 = vpop.permute.xlu0 %2377
        %2380 = vset.pattern.permute.xlu0 3
        %2381 = vperm.xlu0 %2380, %v1527
        %v2382 = vpop.permute.xlu0 %2381
        %2384 = vset.pattern.permute.xlu0 3
        %2385 = vperm.xlu0 %2384, %v1528
        %v2386 = vpop.permute.xlu0 %2385
        %2388 = vset.pattern.permute.xlu0 3
        %2389 = vperm.xlu0 %2388, %v1529
        %v2390 = vpop.permute.xlu0 %2389
        %2392 = vset.pattern.permute.xlu0 3
        %2393 = vperm.xlu0 %2392, %v1530
        %v2394 = vpop.permute.xlu0 %2393
        %2396 = vset.pattern.permute.xlu0 3
        %2397 = vperm.xlu0 %2396, %v1531
        %v2398 = vpop.permute.xlu0 %2397
        %2400 = vset.pattern.permute.xlu0 3
        %2401 = vperm.xlu0 %2400, %v1532
        %v2402 = vpop.permute.xlu0 %2401
        %2404 = vset.pattern.permute.xlu0 3
        %2405 = vperm.xlu0 %2404, %v1533
        %v2406 = vpop.permute.xlu0 %2405
        %2408 = vset.pattern.permute.xlu0 3
        %2409 = vperm.xlu0 %2408, %v1534
        %v2410 = vpop.permute.xlu0 %2409
        %2412 = vset.pattern.permute.xlu0 3
        %2413 = vperm.xlu0 %2412, %v1535
        %v2414 = vpop.permute.xlu0 %2413
        %2416 = vset.pattern.permute.xlu0 3
        %2417 = vperm.xlu0 %2416, %v1536
        %v2418 = vpop.permute.xlu0 %2417
        %2420 = vset.pattern.permute.xlu0 3
        %2421 = vperm.xlu0 %2420, %v1537
        %v2422 = vpop.permute.xlu0 %2421
        %2424 = vset.pattern.permute.xlu0 3
        %2425 = vperm.xlu0 %2424, %v1538
        %v2426 = vpop.permute.xlu0 %2425
        %2428 = vset.pattern.permute.xlu0 3
        %2429 = vperm.xlu0 %2428, %v1539
        %v2430 = vpop.permute.xlu0 %2429
        %2432 = vset.pattern.permute.xlu0 3
        %2433 = vperm.xlu0 %2432, %v1540
        %v2434 = vpop.permute.xlu0 %2433
        %2436 = vset.pattern.permute.xlu0 3
        %2437 = vperm.xlu0 %2436, %v1541
        %v2438 = vpop.permute.xlu0 %2437
        %2440 = vset.pattern.permute.xlu0 3
        %2441 = vperm.xlu0 %2440, %v1542
        %v2442 = vpop.permute.xlu0 %2441
        %2444 = vset.pattern.permute.xlu0 3
        %2445 = vperm.xlu0 %2444, %v1543
        %v2446 = vpop.permute.xlu0 %2445
        %2448 = vset.pattern.permute.xlu0 3
        %2449 = vperm.xlu0 %2448, %v1544
        %v2450 = vpop.permute.xlu0 %2449
        %2452 = vset.pattern.permute.xlu0 3
        %2453 = vperm.xlu0 %2452, %v1545
        %v2454 = vpop.permute.xlu0 %2453
        %2456 = vset.pattern.permute.xlu0 3
        %2457 = vperm.xlu0 %2456, %v1546
        %v2458 = vpop.permute.xlu0 %2457
        %2460 = vset.pattern.permute.xlu0 3
        %2461 = vperm.xlu0 %2460, %v1547
        %v2462 = vpop.permute.xlu0 %2461
        %2464 = vset.pattern.permute.xlu0 3
        %2465 = vperm.xlu0 %2464, %v1548
        %v2466 = vpop.permute.xlu0 %2465
        %v2468 = vlaneseq
        %v2469 = vshrl.u32 %v2468, 7
        %v2470 = vsub.s32 3, %v2469
        %v2471 = vrot.slane %v1516, %v2470
        %v2472 = vlaneseq
        %v2473 = vshrl.u32 %v2472, 7
        %v2474 = vsub.s32 7, %v2473
        %v2475 = vrot.slane %v1516, %v2474
        %v2478 = vlaneseq
        %v2479 = vshrl.u32 %v2478, 7
        %v2480 = vsub.s32 3, %v2479
        %v2481 = vrot.slane %v2471, %v2480
        %v2482 = vlaneseq
        %v2483 = vshrl.u32 %v2482, 7
        %v2484 = vsub.s32 3, %v2483
        %v2485 = vrot.slane %v2475, %v2484
        %v2486 = vmul.f32 %v2342, %v2481
        %v2487 = vmul.f32 %v2342, %v2485
        %v2488 = vmul.f32 %v2346, %v2481
        %v2489 = vmul.f32 %v2346, %v2485
        %v2490 = vmul.f32 %v2350, %v2481
        %v2491 = vmul.f32 %v2350, %v2485
        %v2492 = vmul.f32 %v2354, %v2481
        %v2493 = vmul.f32 %v2354, %v2485
        %v2494 = vmul.f32 %v2358, %v2481
        %v2495 = vmul.f32 %v2358, %v2485
        %v2496 = vmul.f32 %v2362, %v2481
        %v2497 = vmul.f32 %v2362, %v2485
        %v2498 = vmul.f32 %v2366, %v2481
        %v2499 = vmul.f32 %v2366, %v2485
        %v2500 = vmul.f32 %v2370, %v2481
        %v2501 = vmul.f32 %v2370, %v2485
        %v2502 = vmul.f32 %v2374, %v2481
        %v2503 = vmul.f32 %v2374, %v2485
        %v2504 = vmul.f32 %v2378, %v2481
        %v2505 = vmul.f32 %v2378, %v2485
        %v2506 = vmul.f32 %v2382, %v2481
        %v2507 = vmul.f32 %v2382, %v2485
        %v2508 = vmul.f32 %v2386, %v2481
        %v2509 = vmul.f32 %v2386, %v2485
        %v2510 = vmul.f32 %v2390, %v2481
        %v2511 = vmul.f32 %v2390, %v2485
        %v2512 = vmul.f32 %v2394, %v2481
        %v2513 = vmul.f32 %v2394, %v2485
        %v2514 = vmul.f32 %v2398, %v2481
        %v2515 = vmul.f32 %v2398, %v2485
        %v2516 = vmul.f32 %v2402, %v2481
        %v2517 = vmul.f32 %v2402, %v2485
        %v2518 = vmul.f32 %v2406, %v2481
        %v2519 = vmul.f32 %v2406, %v2485
        %v2520 = vmul.f32 %v2410, %v2481
        %v2521 = vmul.f32 %v2410, %v2485
        %v2522 = vmul.f32 %v2414, %v2481
        %v2523 = vmul.f32 %v2414, %v2485
        %v2524 = vmul.f32 %v2418, %v2481
        %v2525 = vmul.f32 %v2418, %v2485
        %v2526 = vmul.f32 %v2422, %v2481
        %v2527 = vmul.f32 %v2422, %v2485
        %v2528 = vmul.f32 %v2426, %v2481
        %v2529 = vmul.f32 %v2426, %v2485
        %v2530 = vmul.f32 %v2430, %v2481
        %v2531 = vmul.f32 %v2430, %v2485
        %v2532 = vmul.f32 %v2434, %v2481
        %v2533 = vmul.f32 %v2434, %v2485
        %v2534 = vmul.f32 %v2438, %v2481
        %v2535 = vmul.f32 %v2438, %v2485
        %v2536 = vmul.f32 %v2442, %v2481
        %v2537 = vmul.f32 %v2442, %v2485
        %v2538 = vmul.f32 %v2446, %v2481
        %v2539 = vmul.f32 %v2446, %v2485
        %v2540 = vmul.f32 %v2450, %v2481
        %v2541 = vmul.f32 %v2450, %v2485
        %v2542 = vmul.f32 %v2454, %v2481
        %v2543 = vmul.f32 %v2454, %v2485
        %v2544 = vmul.f32 %v2458, %v2481
        %v2545 = vmul.f32 %v2458, %v2485
        %v2546 = vmul.f32 %v2462, %v2481
        %v2547 = vmul.f32 %v2462, %v2485
        %v2548 = vmul.f32 %v2466, %v2481
        %v2549 = vmul.f32 %v2466, %v2485
        %v2550 = vadd.f32 %v2276, %v2486
        %v2551 = vadd.f32 %v2277, %v2487
        %v2552 = vadd.f32 %v2278, %v2488
        %v2553 = vadd.f32 %v2279, %v2489
        %v2554 = vadd.f32 %v2280, %v2490
        %v2555 = vadd.f32 %v2281, %v2491
        %v2556 = vadd.f32 %v2282, %v2492
        %v2557 = vadd.f32 %v2283, %v2493
        %v2558 = vadd.f32 %v2284, %v2494
        %v2559 = vadd.f32 %v2285, %v2495
        %v2560 = vadd.f32 %v2286, %v2496
        %v2561 = vadd.f32 %v2287, %v2497
        %v2562 = vadd.f32 %v2288, %v2498
        %v2563 = vadd.f32 %v2289, %v2499
        %v2564 = vadd.f32 %v2290, %v2500
        %v2565 = vadd.f32 %v2291, %v2501
        %v2566 = vadd.f32 %v2292, %v2502
        %v2567 = vadd.f32 %v2293, %v2503
        %v2568 = vadd.f32 %v2294, %v2504
        %v2569 = vadd.f32 %v2295, %v2505
        %v2570 = vadd.f32 %v2296, %v2506
        %v2571 = vadd.f32 %v2297, %v2507
        %v2572 = vadd.f32 %v2298, %v2508
        %v2573 = vadd.f32 %v2299, %v2509
        %v2574 = vadd.f32 %v2300, %v2510
        %v2575 = vadd.f32 %v2301, %v2511
        %v2576 = vadd.f32 %v2302, %v2512
        %v2577 = vadd.f32 %v2303, %v2513
        %v2578 = vadd.f32 %v2304, %v2514
        %v2579 = vadd.f32 %v2305, %v2515
        %v2580 = vadd.f32 %v2306, %v2516
        %v2581 = vadd.f32 %v2307, %v2517
        %v2582 = vadd.f32 %v2308, %v2518
        %v2583 = vadd.f32 %v2309, %v2519
        %v2584 = vadd.f32 %v2310, %v2520
        %v2585 = vadd.f32 %v2311, %v2521
        %v2586 = vadd.f32 %v2312, %v2522
        %v2587 = vadd.f32 %v2313, %v2523
        %v2588 = vadd.f32 %v2314, %v2524
        %v2589 = vadd.f32 %v2315, %v2525
        %v2590 = vadd.f32 %v2316, %v2526
        %v2591 = vadd.f32 %v2317, %v2527
        %v2592 = vadd.f32 %v2318, %v2528
        %v2593 = vadd.f32 %v2319, %v2529
        %v2594 = vadd.f32 %v2320, %v2530
        %v2595 = vadd.f32 %v2321, %v2531
        %v2596 = vadd.f32 %v2322, %v2532
        %v2597 = vadd.f32 %v2323, %v2533
        %v2598 = vadd.f32 %v2324, %v2534
        %v2599 = vadd.f32 %v2325, %v2535
        %v2600 = vadd.f32 %v2326, %v2536
        %v2601 = vadd.f32 %v2327, %v2537
        %v2602 = vadd.f32 %v2328, %v2538
        %v2603 = vadd.f32 %v2329, %v2539
        %v2604 = vadd.f32 %v2330, %v2540
        %v2605 = vadd.f32 %v2331, %v2541
        %v2606 = vadd.f32 %v2332, %v2542
        %v2607 = vadd.f32 %v2333, %v2543
        %v2608 = vadd.f32 %v2334, %v2544
        %v2609 = vadd.f32 %v2335, %v2545
        %v2610 = vadd.f32 %v2336, %v2546
        %v2611 = vadd.f32 %v2337, %v2547
        %v2612 = vadd.f32 %v2338, %v2548
        %v2613 = vadd.f32 %v2339, %v2549
        %v2614 = vmax.f32 %v2550, %v2554
        %v2615 = vmax.f32 %v2552, %v2556
        %v2616 = vmax.f32 %v2614, %v2558
        %v2617 = vmax.f32 %v2615, %v2560
        %v2618 = vmax.f32 %v2616, %v2562
        %v2619 = vmax.f32 %v2617, %v2564
        %v2620 = vmax.f32 %v2618, %v2566
        %v2621 = vmax.f32 %v2619, %v2568
        %v2622 = vmax.f32 %v2620, %v2570
        %v2623 = vmax.f32 %v2621, %v2572
        %v2624 = vmax.f32 %v2622, %v2574
        %v2625 = vmax.f32 %v2623, %v2576
        %v2626 = vmax.f32 %v2624, %v2578
        %v2627 = vmax.f32 %v2625, %v2580
        %v2628 = vmax.f32 %v2626, %v2582
        %v2629 = vmax.f32 %v2627, %v2584
        %v2630 = vmax.f32 %v2628, %v2586
        %v2631 = vmax.f32 %v2629, %v2588
        %v2632 = vmax.f32 %v2630, %v2590
        %v2633 = vmax.f32 %v2631, %v2592
        %v2634 = vmax.f32 %v2632, %v2594
        %v2635 = vmax.f32 %v2633, %v2596
        %v2636 = vmax.f32 %v2634, %v2598
        %v2637 = vmax.f32 %v2635, %v2600
        %v2638 = vmax.f32 %v2636, %v2602
        %v2639 = vmax.f32 %v2637, %v2604
        %v2640 = vmax.f32 %v2638, %v2606
        %v2641 = vmax.f32 %v2639, %v2608
        %v2642 = vmax.f32 %v2640, %v2610
        %v2643 = vmax.f32 %v2641, %v2612
        %v2644 = vmax.f32 %v2642, %v2643
        %v2645 = vrot.slane %v2644, 4
        %v2646 = vmax.f32 %v2644, %v2645
        %v2647 = vrot.slane %v2646, 2
        %v2648 = vmax.f32 %v2646, %v2647
        %v2649 = vrot.slane %v2648, 1
        %v2650 = vmax.f32 %v2648, %v2649
        %v2651 = vmax.f32 %v2551, %v2555
        %v2652 = vmax.f32 %v2553, %v2557
        %v2653 = vmax.f32 %v2651, %v2559
        %v2654 = vmax.f32 %v2652, %v2561
        %v2655 = vmax.f32 %v2653, %v2563
        %v2656 = vmax.f32 %v2654, %v2565
        %v2657 = vmax.f32 %v2655, %v2567
        %v2658 = vmax.f32 %v2656, %v2569
        %v2659 = vmax.f32 %v2657, %v2571
        %v2660 = vmax.f32 %v2658, %v2573
        %v2661 = vmax.f32 %v2659, %v2575
        %v2662 = vmax.f32 %v2660, %v2577
        %v2663 = vmax.f32 %v2661, %v2579
        %v2664 = vmax.f32 %v2662, %v2581
        %v2665 = vmax.f32 %v2663, %v2583
        %v2666 = vmax.f32 %v2664, %v2585
        %v2667 = vmax.f32 %v2665, %v2587
        %v2668 = vmax.f32 %v2666, %v2589
        %v2669 = vmax.f32 %v2667, %v2591
        %v2670 = vmax.f32 %v2668, %v2593
        %v2671 = vmax.f32 %v2669, %v2595
        %v2672 = vmax.f32 %v2670, %v2597
        %v2673 = vmax.f32 %v2671, %v2599
        %v2674 = vmax.f32 %v2672, %v2601
        %v2675 = vmax.f32 %v2673, %v2603
        %v2676 = vmax.f32 %v2674, %v2605
        %v2677 = vmax.f32 %v2675, %v2607
        %v2678 = vmax.f32 %v2676, %v2609
        %v2679 = vmax.f32 %v2677, %v2611
        %v2680 = vmax.f32 %v2678, %v2613
        %v2681 = vmax.f32 %v2679, %v2680
        %v2682 = vrot.slane %v2681, 4
        %v2683 = vmax.f32 %v2681, %v2682
        %v2684 = vrot.slane %v2683, 2
        %v2685 = vmax.f32 %v2683, %v2684
        %v2686 = vrot.slane %v2685, 1
        %v2687 = vmax.f32 %v2685, %v2686
        %v2688 = vsub.f32 %v2550, %v2650
        %v2689 = vsub.f32 %v2551, %v2687
        %v2690 = vsub.f32 %v2552, %v2650
        %v2691 = vsub.f32 %v2553, %v2687
        %v2692 = vsub.f32 %v2554, %v2650
        %v2693 = vsub.f32 %v2555, %v2687
        %v2694 = vsub.f32 %v2556, %v2650
        %v2695 = vsub.f32 %v2557, %v2687
        %v2696 = vsub.f32 %v2558, %v2650
        %v2697 = vsub.f32 %v2559, %v2687
        %v2698 = vsub.f32 %v2560, %v2650
        %v2699 = vsub.f32 %v2561, %v2687
        %v2700 = vsub.f32 %v2562, %v2650
        %v2701 = vsub.f32 %v2563, %v2687
        %v2702 = vsub.f32 %v2564, %v2650
        %v2703 = vsub.f32 %v2565, %v2687
        %v2704 = vsub.f32 %v2566, %v2650
        %v2705 = vsub.f32 %v2567, %v2687
        %v2706 = vsub.f32 %v2568, %v2650
        %v2707 = vsub.f32 %v2569, %v2687
        %v2708 = vsub.f32 %v2570, %v2650
        %v2709 = vsub.f32 %v2571, %v2687
        %v2710 = vsub.f32 %v2572, %v2650
        %v2711 = vsub.f32 %v2573, %v2687
        %v2712 = vsub.f32 %v2574, %v2650
        %v2713 = vsub.f32 %v2575, %v2687
        %v2714 = vsub.f32 %v2576, %v2650
        %v2715 = vsub.f32 %v2577, %v2687
        %v2716 = vsub.f32 %v2578, %v2650
        %v2717 = vsub.f32 %v2579, %v2687
        %v2718 = vsub.f32 %v2580, %v2650
        %v2719 = vsub.f32 %v2581, %v2687
        %v2720 = vsub.f32 %v2582, %v2650
        %v2721 = vsub.f32 %v2583, %v2687
        %v2722 = vsub.f32 %v2584, %v2650
        %v2723 = vsub.f32 %v2585, %v2687
        %v2724 = vsub.f32 %v2586, %v2650
        %v2725 = vsub.f32 %v2587, %v2687
        %v2726 = vsub.f32 %v2588, %v2650
        %v2727 = vsub.f32 %v2589, %v2687
        %v2728 = vsub.f32 %v2590, %v2650
        %v2729 = vsub.f32 %v2591, %v2687
        %v2730 = vsub.f32 %v2592, %v2650
        %v2731 = vsub.f32 %v2593, %v2687
        %v2732 = vsub.f32 %v2594, %v2650
        %v2733 = vsub.f32 %v2595, %v2687
        %v2734 = vsub.f32 %v2596, %v2650
        %v2735 = vsub.f32 %v2597, %v2687
        %v2736 = vsub.f32 %v2598, %v2650
        %v2737 = vsub.f32 %v2599, %v2687
        %v2738 = vsub.f32 %v2600, %v2650
        %v2739 = vsub.f32 %v2601, %v2687
        %v2740 = vsub.f32 %v2602, %v2650
        %v2741 = vsub.f32 %v2603, %v2687
        %v2742 = vsub.f32 %v2604, %v2650
        %v2743 = vsub.f32 %v2605, %v2687
        %v2744 = vsub.f32 %v2606, %v2650
        %v2745 = vsub.f32 %v2607, %v2687
        %v2746 = vsub.f32 %v2608, %v2650
        %v2747 = vsub.f32 %v2609, %v2687
        %v2748 = vsub.f32 %v2610, %v2650
        %v2749 = vsub.f32 %v2611, %v2687
        %v2750 = vsub.f32 %v2612, %v2650
        %v2751 = vsub.f32 %v2613, %v2687
        %v2752 = vmul.f32 %v2688, 1.442695
        %v2753 = vpow.pop %v2752
        %v2754 = vmul.f32 %v2689, 1.442695
        %v2755 = vpow.pop %v2754
        %v2756 = vmul.f32 %v2690, 1.442695
        %v2757 = vpow.pop %v2756
        %v2758 = vmul.f32 %v2691, 1.442695
        %v2759 = vpow.pop %v2758
        %v2760 = vmul.f32 %v2692, 1.442695
        %v2761 = vpow.pop %v2760
        %v2762 = vmul.f32 %v2693, 1.442695
        %v2763 = vpow.pop %v2762
        %v2764 = vmul.f32 %v2694, 1.442695
        %v2765 = vpow.pop %v2764
        %v2766 = vmul.f32 %v2695, 1.442695
        %v2767 = vpow.pop %v2766
        %v2768 = vmul.f32 %v2696, 1.442695
        %v2769 = vpow.pop %v2768
        %v2770 = vmul.f32 %v2697, 1.442695
        %v2771 = vpow.pop %v2770
        %v2772 = vmul.f32 %v2698, 1.442695
        %v2773 = vpow.pop %v2772
        %v2774 = vmul.f32 %v2699, 1.442695
        %v2775 = vpow.pop %v2774
        %v2776 = vmul.f32 %v2700, 1.442695
        %v2777 = vpow.pop %v2776
        %v2778 = vmul.f32 %v2701, 1.442695
        %v2779 = vpow.pop %v2778
        %v2780 = vmul.f32 %v2702, 1.442695
        %v2781 = vpow.pop %v2780
        %v2782 = vmul.f32 %v2703, 1.442695
        %v2783 = vpow.pop %v2782
        %v2784 = vmul.f32 %v2704, 1.442695
        %v2785 = vpow.pop %v2784
        %v2786 = vmul.f32 %v2705, 1.442695
        %v2787 = vpow.pop %v2786
        %v2788 = vmul.f32 %v2706, 1.442695
        %v2789 = vpow.pop %v2788
        %v2790 = vmul.f32 %v2707, 1.442695
        %v2791 = vpow.pop %v2790
        %v2792 = vmul.f32 %v2708, 1.442695
        %v2793 = vpow.pop %v2792
        %v2794 = vmul.f32 %v2709, 1.442695
        %v2795 = vpow.pop %v2794
        %v2796 = vmul.f32 %v2710, 1.442695
        %v2797 = vpow.pop %v2796
        %v2798 = vmul.f32 %v2711, 1.442695
        %v2799 = vpow.pop %v2798
        %v2800 = vmul.f32 %v2712, 1.442695
        %v2801 = vpow.pop %v2800
        %v2802 = vmul.f32 %v2713, 1.442695
        %v2803 = vpow.pop %v2802
        %v2804 = vmul.f32 %v2714, 1.442695
        %v2805 = vpow.pop %v2804
        %v2806 = vmul.f32 %v2715, 1.442695
        %v2807 = vpow.pop %v2806
        %v2808 = vmul.f32 %v2716, 1.442695
        %v2809 = vpow.pop %v2808
        %v2810 = vmul.f32 %v2717, 1.442695
        %v2811 = vpow.pop %v2810
        %v2812 = vmul.f32 %v2718, 1.442695
        %v2813 = vpow.pop %v2812
        %v2814 = vmul.f32 %v2719, 1.442695
        %v2815 = vpow.pop %v2814
        %v2816 = vmul.f32 %v2720, 1.442695
        %v2817 = vpow.pop %v2816
        %v2818 = vmul.f32 %v2721, 1.442695
        %v2819 = vpow.pop %v2818
        %v2820 = vmul.f32 %v2722, 1.442695
        %v2821 = vpow.pop %v2820
        %v2822 = vmul.f32 %v2723, 1.442695
        %v2823 = vpow.pop %v2822
        %v2824 = vmul.f32 %v2724, 1.442695
        %v2825 = vpow.pop %v2824
        %v2826 = vmul.f32 %v2725, 1.442695
        %v2827 = vpow.pop %v2826
        %v2828 = vmul.f32 %v2726, 1.442695
        %v2829 = vpow.pop %v2828
        %v2830 = vmul.f32 %v2727, 1.442695
        %v2831 = vpow.pop %v2830
        %v2832 = vmul.f32 %v2728, 1.442695
        %v2833 = vpow.pop %v2832
        %v2834 = vmul.f32 %v2729, 1.442695
        %v2835 = vpow.pop %v2834
        %v2836 = vmul.f32 %v2730, 1.442695
        %v2837 = vpow.pop %v2836
        %v2838 = vmul.f32 %v2731, 1.442695
        %v2839 = vpow.pop %v2838
        %v2840 = vmul.f32 %v2732, 1.442695
        %v2841 = vpow.pop %v2840
        %v2842 = vmul.f32 %v2733, 1.442695
        %v2843 = vpow.pop %v2842
        %v2844 = vmul.f32 %v2734, 1.442695
        %v2845 = vpow.pop %v2844
        %v2846 = vmul.f32 %v2735, 1.442695
        %v2847 = vpow.pop %v2846
        %v2848 = vmul.f32 %v2736, 1.442695
        %v2849 = vpow.pop %v2848
        %v2850 = vmul.f32 %v2737, 1.442695
        %v2851 = vpow.pop %v2850
        %v2852 = vmul.f32 %v2738, 1.442695
        %v2853 = vpow.pop %v2852
        %v2854 = vmul.f32 %v2739, 1.442695
        %v2855 = vpow.pop %v2854
        %v2856 = vmul.f32 %v2740, 1.442695
        %v2857 = vpow.pop %v2856
        %v2858 = vmul.f32 %v2741, 1.442695
        %v2859 = vpow.pop %v2858
        %v2860 = vmul.f32 %v2742, 1.442695
        %v2861 = vpow.pop %v2860
        %v2862 = vmul.f32 %v2743, 1.442695
        %v2863 = vpow.pop %v2862
        %v2864 = vmul.f32 %v2744, 1.442695
        %v2865 = vpow.pop %v2864
        %v2866 = vmul.f32 %v2745, 1.442695
        %v2867 = vpow.pop %v2866
        %v2868 = vmul.f32 %v2746, 1.442695
        %v2869 = vpow.pop %v2868
        %v2870 = vmul.f32 %v2747, 1.442695
        %v2871 = vpow.pop %v2870
        %v2872 = vmul.f32 %v2748, 1.442695
        %v2873 = vpow.pop %v2872
        %v2874 = vmul.f32 %v2749, 1.442695
        %v2875 = vpow.pop %v2874
        %v2876 = vmul.f32 %v2750, 1.442695
        %v2877 = vpow.pop %v2876
        %v2878 = vmul.f32 %v2751, 1.442695
        %v2879 = vpow.pop %v2878
        %v2880 = vadd.f32 %v2753, %v2757
        %v2881 = vadd.f32 %v2880, %v2761
        %v2882 = vadd.f32 %v2881, %v2765
        %v2883 = vadd.f32 %v2882, %v2769
        %v2884 = vadd.f32 %v2883, %v2773
        %v2885 = vadd.f32 %v2884, %v2777
        %v2886 = vadd.f32 %v2885, %v2781
        %v2887 = vadd.f32 %v2886, %v2785
        %v2888 = vadd.f32 %v2887, %v2789
        %v2889 = vadd.f32 %v2888, %v2793
        %v2890 = vadd.f32 %v2889, %v2797
        %v2891 = vadd.f32 %v2890, %v2801
        %v2892 = vadd.f32 %v2891, %v2805
        %v2893 = vadd.f32 %v2892, %v2809
        %v2894 = vadd.f32 %v2893, %v2813
        %v2895 = vadd.f32 %v2894, %v2817
        %v2896 = vadd.f32 %v2895, %v2821
        %v2897 = vadd.f32 %v2896, %v2825
        %v2898 = vadd.f32 %v2897, %v2829
        %v2899 = vadd.f32 %v2898, %v2833
        %v2900 = vadd.f32 %v2899, %v2837
        %v2901 = vadd.f32 %v2900, %v2841
        %v2902 = vadd.f32 %v2901, %v2845
        %v2903 = vadd.f32 %v2902, %v2849
        %v2904 = vadd.f32 %v2903, %v2853
        %v2905 = vadd.f32 %v2904, %v2857
        %v2906 = vadd.f32 %v2905, %v2861
        %v2907 = vadd.f32 %v2906, %v2865
        %v2908 = vadd.f32 %v2907, %v2869
        %v2909 = vadd.f32 %v2908, %v2873
        %v2910 = vadd.f32 %v2909, %v2877
        %v2911 = vrot.slane %v2910, 4
        %v2912 = vadd.f32 %v2910, %v2911
        %v2913 = vrot.slane %v2912, 2
        %v2914 = vadd.f32 %v2912, %v2913
        %v2915 = vrot.slane %v2914, 1
        %v2916 = vadd.f32 %v2914, %v2915
        %v2917 = vadd.f32 %v2755, %v2759
        %v2918 = vadd.f32 %v2917, %v2763
        %v2919 = vadd.f32 %v2918, %v2767
        %v2920 = vadd.f32 %v2919, %v2771
        %v2921 = vadd.f32 %v2920, %v2775
        %v2922 = vadd.f32 %v2921, %v2779
        %v2923 = vadd.f32 %v2922, %v2783
        %v2924 = vadd.f32 %v2923, %v2787
        %v2925 = vadd.f32 %v2924, %v2791
        %v2926 = vadd.f32 %v2925, %v2795
        %v2927 = vadd.f32 %v2926, %v2799
        %v2928 = vadd.f32 %v2927, %v2803
        %v2929 = vadd.f32 %v2928, %v2807
        %v2930 = vadd.f32 %v2929, %v2811
        %v2931 = vadd.f32 %v2930, %v2815
        %v2932 = vadd.f32 %v2931, %v2819
        %v2933 = vadd.f32 %v2932, %v2823
        %v2934 = vadd.f32 %v2933, %v2827
        %v2935 = vadd.f32 %v2934, %v2831
        %v2936 = vadd.f32 %v2935, %v2835
        %v2937 = vadd.f32 %v2936, %v2839
        %v2938 = vadd.f32 %v2937, %v2843
        %v2939 = vadd.f32 %v2938, %v2847
        %v2940 = vadd.f32 %v2939, %v2851
        %v2941 = vadd.f32 %v2940, %v2855
        %v2942 = vadd.f32 %v2941, %v2859
        %v2943 = vadd.f32 %v2942, %v2863
        %v2944 = vadd.f32 %v2943, %v2867
        %v2945 = vadd.f32 %v2944, %v2871
        %v2946 = vadd.f32 %v2945, %v2875
        %v2947 = vadd.f32 %v2946, %v2879
        %v2948 = vrot.slane %v2947, 4
        %v2949 = vadd.f32 %v2947, %v2948
        %v2950 = vrot.slane %v2949, 2
        %v2951 = vadd.f32 %v2949, %v2950
        %v2952 = vrot.slane %v2951, 1
        %v2953 = vadd.f32 %v2951, %v2952
        %v2954 = vld [vmem:[#allocation2] sm:$0xff]
        %v2955 = vld [vmem:[#allocation2 + $0x8] sm:$0xff]
        %v2956 = vld [vmem:[#allocation2 + $0x10] sm:$0xff]
        %v2957 = vld [vmem:[#allocation2 + $0x18] sm:$0xff]
        %v2958 = vld [vmem:[#allocation2 + $0x20] sm:$0xff]
        %v2959 = vld [vmem:[#allocation2 + $0x28] sm:$0xff]
        %v2960 = vld [vmem:[#allocation2 + $0x30] sm:$0xff]
        %v2961 = vld [vmem:[#allocation2 + $0x38] sm:$0xff]
        %v2962 = vld [vmem:[#allocation2 + $0x40] sm:$0xff]
        %v2963 = vld [vmem:[#allocation2 + $0x48] sm:$0xff]
        %v2964 = vld [vmem:[#allocation2 + $0x50] sm:$0xff]
        %v2965 = vld [vmem:[#allocation2 + $0x58] sm:$0xff]
        %v2966 = vld [vmem:[#allocation2 + $0x60] sm:$0xff]
        %v2967 = vld [vmem:[#allocation2 + $0x68] sm:$0xff]
        %v2968 = vld [vmem:[#allocation2 + $0x70] sm:$0xff]
        %v2969 = vld [vmem:[#allocation2 + $0x78] sm:$0xff]
        %v2970 = vld [vmem:[#allocation2 + $0x80] sm:$0xff]
        %v2971 = vld [vmem:[#allocation2 + $0x88] sm:$0xff]
        %v2972 = vld [vmem:[#allocation2 + $0x90] sm:$0xff]
        %v2973 = vld [vmem:[#allocation2 + $0x98] sm:$0xff]
        %v2974 = vld [vmem:[#allocation2 + $0xa0] sm:$0xff]
        %v2975 = vld [vmem:[#allocation2 + $0xa8] sm:$0xff]
        %v2976 = vld [vmem:[#allocation2 + $0xb0] sm:$0xff]
        %v2977 = vld [vmem:[#allocation2 + $0xb8] sm:$0xff]
        %v2978 = vld [vmem:[#allocation2 + $0xc0] sm:$0xff]
        %v2979 = vld [vmem:[#allocation2 + $0xc8] sm:$0xff]
        %v2980 = vld [vmem:[#allocation2 + $0xd0] sm:$0xff]
        %v2981 = vld [vmem:[#allocation2 + $0xd8] sm:$0xff]
        %v2982 = vld [vmem:[#allocation2 + $0xe0] sm:$0xff]
        %v2983 = vld [vmem:[#allocation2 + $0xe8] sm:$0xff]
        %v2984 = vld [vmem:[#allocation2 + $0xf0] sm:$0xff]
        %v2985 = vld [vmem:[#allocation2 + $0xf8] sm:$0xff]
        %v2986 = vld [vmem:[#allocation2 + $0x100] sm:$0xff]
        %v2987 = vld [vmem:[#allocation2 + $0x108] sm:$0xff]
        %v2988 = vld [vmem:[#allocation2 + $0x110] sm:$0xff]
        %v2989 = vld [vmem:[#allocation2 + $0x118] sm:$0xff]
        %v2990 = vld [vmem:[#allocation2 + $0x120] sm:$0xff]
        %v2991 = vld [vmem:[#allocation2 + $0x128] sm:$0xff]
        %v2992 = vld [vmem:[#allocation2 + $0x130] sm:$0xff]
        %v2993 = vld [vmem:[#allocation2 + $0x138] sm:$0xff]
        %v2994 = vld [vmem:[#allocation2 + $0x140] sm:$0xff]
        %v2995 = vld [vmem:[#allocation2 + $0x148] sm:$0xff]
        %v2996 = vld [vmem:[#allocation2 + $0x150] sm:$0xff]
        %v2997 = vld [vmem:[#allocation2 + $0x158] sm:$0xff]
        %v2998 = vld [vmem:[#allocation2 + $0x160] sm:$0xff]
        %v2999 = vld [vmem:[#allocation2 + $0x168] sm:$0xff]
        %v3000 = vld [vmem:[#allocation2 + $0x170] sm:$0xff]
        %v3001 = vld [vmem:[#allocation2 + $0x178] sm:$0xff]
        %v3002 = vld [vmem:[#allocation2 + $0x180] sm:$0xff]
        %v3003 = vld [vmem:[#allocation2 + $0x188] sm:$0xff]
        %v3004 = vld [vmem:[#allocation2 + $0x190] sm:$0xff]
        %v3005 = vld [vmem:[#allocation2 + $0x198] sm:$0xff]
        %v3006 = vld [vmem:[#allocation2 + $0x1a0] sm:$0xff]
        %v3007 = vld [vmem:[#allocation2 + $0x1a8] sm:$0xff]
        %v3008 = vld [vmem:[#allocation2 + $0x1b0] sm:$0xff]
        %v3009 = vld [vmem:[#allocation2 + $0x1b8] sm:$0xff]
        %v3010 = vld [vmem:[#allocation2 + $0x1c0] sm:$0xff]
        %v3011 = vld [vmem:[#allocation2 + $0x1c8] sm:$0xff]
        %v3012 = vld [vmem:[#allocation2 + $0x1d0] sm:$0xff]
        %v3013 = vld [vmem:[#allocation2 + $0x1d8] sm:$0xff]
        %v3014 = vld [vmem:[#allocation2 + $0x1e0] sm:$0xff]
        %v3015 = vld [vmem:[#allocation2 + $0x1e8] sm:$0xff]
        %v3016 = vld [vmem:[#allocation2 + $0x1f0] sm:$0xff]
        %v3017 = vld [vmem:[#allocation2 + $0x1f8] sm:$0xff]
        %3018 = vmatprep.subr.mxu0 %v2815
        %3019 = vmatpush1.msra.mxu0 %v2813
        %3020 = vmatprep.subr.mxu0 %v2811
        %3021 = vmatpush1.msra.mxu0 %v2809
        %3022 = vmatprep.subr.mxu0 %v2807
        %3023 = vmatpush1.msra.mxu0 %v2805
        %3024 = vmatprep.subr.mxu0 %v2803
        %3025 = vmatpush1.msra.mxu0 %v2801
        %3026 = vmatprep.subr.mxu0 %v2799
        %3027 = vmatpush1.msra.mxu0 %v2797
        %3028 = vmatprep.subr.mxu0 %v2795
        %3029 = vmatpush1.msra.mxu0 %v2793
        %3030 = vmatprep.subr.mxu0 %v2791
        %3031 = vmatpush1.msra.mxu0 %v2789
        %3032 = vmatprep.subr.mxu0 %v2787
        %3033 = vmatpush1.msra.mxu0 %v2785
        %3034 = vmatprep.subr.mxu0 %v2783
        %3035 = vmatpush1.msra.mxu0 %v2781
        %3036 = vmatprep.subr.mxu0 %v2779
        %3037 = vmatpush1.msra.mxu0 %v2777
        %3038 = vmatprep.subr.mxu0 %v2775
        %3039 = vmatpush1.msra.mxu0 %v2773
        %3040 = vmatprep.subr.mxu0 %v2771
        %3041 = vmatpush1.msra.mxu0 %v2769
        %3042 = vmatprep.subr.mxu0 %v2767
        %3043 = vmatpush1.msra.mxu0 %v2765
        %3044 = vmatprep.subr.mxu0 %v2763
        %3045 = vmatpush1.msra.mxu0 %v2761
        %3046 = vmatprep.subr.mxu0 %v2759
        %3047 = vmatpush1.msra.mxu0 %v2757
        %3048 = vmatprep.subr.mxu0 %v2755
        %3049 = vmatpush1.msra.mxu0 %v2753
        %3050 = vmatprep.subr.mxu0 %v2879
        %3051 = vmatpush2.msra.mxu0 %v2877
        %3052 = vmatprep.subr.mxu0 %v2875
        %3053 = vmatpush2.msra.mxu0 %v2873
        %3054 = vmatprep.subr.mxu0 %v2871
        %3055 = vmatpush2.msra.mxu0 %v2869
        %3056 = vmatprep.subr.mxu0 %v2867
        %3057 = vmatpush2.msra.mxu0 %v2865
        %3058 = vmatprep.subr.mxu0 %v2863
        %3059 = vmatpush2.msra.mxu0 %v2861
        %3060 = vmatprep.subr.mxu0 %v2859
        %3061 = vmatpush2.msra.mxu0 %v2857
        %3062 = vmatprep.subr.mxu0 %v2855
        %3063 = vmatpush2.msra.mxu0 %v2853
        %3064 = vmatprep.subr.mxu0 %v2851
        %3065 = vmatpush2.msra.mxu0 %v2849
        %3066 = vmatprep.subr.mxu0 %v2847
        %3067 = vmatpush2.msra.mxu0 %v2845
        %3068 = vmatprep.subr.mxu0 %v2843
        %3069 = vmatpush2.msra.mxu0 %v2841
        %3070 = vmatprep.subr.mxu0 %v2839
        %3071 = vmatpush2.msra.mxu0 %v2837
        %3072 = vmatprep.subr.mxu0 %v2835
        %3073 = vmatpush2.msra.mxu0 %v2833
        %3074 = vmatprep.subr.mxu0 %v2831
        %3075 = vmatpush2.msra.mxu0 %v2829
        %3076 = vmatprep.subr.mxu0 %v2827
        %3077 = vmatpush2.msra.mxu0 %v2825
        %3078 = vmatprep.subr.mxu0 %v2823
        %3079 = vmatpush2.msra.mxu0 %v2821
        %3080 = vmatprep.subr.mxu0 %v2819
        %3081 = vmatpush2.msra.mxu0 %v2817
        %3082 = vmatprep.mubr.f32.mxu0 %v2955
        %3083 = vmatmul.mubr.f32.gmra.mxu0 %v2954
        %v3084 = vpop.f32.mrf.mxu0
        %v3085 = vadd.f32 0.0, %v3084
        %v3086 = vpop.f32.mrf.mxu0
        %v3087 = vadd.f32 0.0, %v3086
        %3088 = vmatprep.mubr.f32.mxu0 %v2957
        %3089 = vmatmul.mubr.f32.gmra.mxu0 %v2956
        %v3090 = vpop.f32.mrf.mxu0
        %v3091 = vadd.f32 0.0, %v3090
        %v3092 = vpop.f32.mrf.mxu0
        %v3093 = vadd.f32 0.0, %v3092
        %3094 = vmatprep.mubr.f32.mxu0 %v2959
        %3095 = vmatmul.mubr.f32.gmra.mxu0 %v2958
        %v3096 = vpop.f32.mrf.mxu0
        %v3097 = vadd.f32 0.0, %v3096
        %v3098 = vpop.f32.mrf.mxu0
        %v3099 = vadd.f32 0.0, %v3098
        %3100 = vmatprep.mubr.f32.mxu0 %v2961
        %3101 = vmatmul.mubr.f32.gmra.mxu0 %v2960
        %v3102 = vpop.f32.mrf.mxu0
        %v3103 = vadd.f32 0.0, %v3102
        %v3104 = vpop.f32.mrf.mxu0
        %v3105 = vadd.f32 0.0, %v3104
        %3106 = vmatprep.mubr.f32.mxu0 %v2963
        %3107 = vmatmul.mubr.f32.gmra.mxu0 %v2962
        %v3108 = vpop.f32.mrf.mxu0
        %v3109 = vadd.f32 0.0, %v3108
        %v3110 = vpop.f32.mrf.mxu0
        %v3111 = vadd.f32 0.0, %v3110
        %3112 = vmatprep.mubr.f32.mxu0 %v2965
        %3113 = vmatmul.mubr.f32.gmra.mxu0 %v2964
        %v3114 = vpop.f32.mrf.mxu0
        %v3115 = vadd.f32 0.0, %v3114
        %v3116 = vpop.f32.mrf.mxu0
        %v3117 = vadd.f32 0.0, %v3116
        %3118 = vmatprep.mubr.f32.mxu0 %v2967
        %3119 = vmatmul.mubr.f32.gmra.mxu0 %v2966
        %v3120 = vpop.f32.mrf.mxu0
        %v3121 = vadd.f32 0.0, %v3120
        %v3122 = vpop.f32.mrf.mxu0
        %v3123 = vadd.f32 0.0, %v3122
        %3124 = vmatprep.mubr.f32.mxu0 %v2969
        %3125 = vmatmul.mubr.f32.gmra.mxu0 %v2968
        %v3126 = vpop.f32.mrf.mxu0
        %v3127 = vadd.f32 0.0, %v3126
        %v3128 = vpop.f32.mrf.mxu0
        %v3129 = vadd.f32 0.0, %v3128
        %3130 = vmatprep.mubr.f32.mxu0 %v2971
        %3131 = vmatmul.mubr.f32.gmra.mxu0 %v2970
        %v3132 = vpop.f32.mrf.mxu0
        %v3133 = vadd.f32 0.0, %v3132
        %v3134 = vpop.f32.mrf.mxu0
        %v3135 = vadd.f32 0.0, %v3134
        %3136 = vmatprep.mubr.f32.mxu0 %v2973
        %3137 = vmatmul.mubr.f32.gmra.mxu0 %v2972
        %v3138 = vpop.f32.mrf.mxu0
        %v3139 = vadd.f32 0.0, %v3138
        %v3140 = vpop.f32.mrf.mxu0
        %v3141 = vadd.f32 0.0, %v3140
        %3142 = vmatprep.mubr.f32.mxu0 %v2975
        %3143 = vmatmul.mubr.f32.gmra.mxu0 %v2974
        %v3144 = vpop.f32.mrf.mxu0
        %v3145 = vadd.f32 0.0, %v3144
        %v3146 = vpop.f32.mrf.mxu0
        %v3147 = vadd.f32 0.0, %v3146
        %3148 = vmatprep.mubr.f32.mxu0 %v2977
        %3149 = vmatmul.mubr.f32.gmra.mxu0 %v2976
        %v3150 = vpop.f32.mrf.mxu0
        %v3151 = vadd.f32 0.0, %v3150
        %v3152 = vpop.f32.mrf.mxu0
        %v3153 = vadd.f32 0.0, %v3152
        %3154 = vmatprep.mubr.f32.mxu0 %v2979
        %3155 = vmatmul.mubr.f32.gmra.mxu0 %v2978
        %v3156 = vpop.f32.mrf.mxu0
        %v3157 = vadd.f32 0.0, %v3156
        %v3158 = vpop.f32.mrf.mxu0
        %v3159 = vadd.f32 0.0, %v3158
        %3160 = vmatprep.mubr.f32.mxu0 %v2981
        %3161 = vmatmul.mubr.f32.gmra.mxu0 %v2980
        %v3162 = vpop.f32.mrf.mxu0
        %v3163 = vadd.f32 0.0, %v3162
        %v3164 = vpop.f32.mrf.mxu0
        %v3165 = vadd.f32 0.0, %v3164
        %3166 = vmatprep.mubr.f32.mxu0 %v2983
        %3167 = vmatmul.mubr.f32.gmra.mxu0 %v2982
        %v3168 = vpop.f32.mrf.mxu0
        %v3169 = vadd.f32 0.0, %v3168
        %v3170 = vpop.f32.mrf.mxu0
        %v3171 = vadd.f32 0.0, %v3170
        %3172 = vmatprep.mubr.f32.mxu0 %v2985
        %3173 = vmatmul.mubr.f32.gmra.mxu0 %v2984
        %v3174 = vpop.f32.mrf.mxu0
        %v3175 = vadd.f32 0.0, %v3174
        %v3176 = vpop.f32.mrf.mxu0
        %v3177 = vadd.f32 0.0, %v3176
        %3178 = vmatprep.mubr.f32.mxu0 %v2987
        %3179 = vmatmul.mubr.f32.gmra.mxu0 %v2986
        %v3180 = vpop.f32.mrf.mxu0
        %v3181 = vadd.f32 0.0, %v3180
        %v3182 = vpop.f32.mrf.mxu0
        %v3183 = vadd.f32 0.0, %v3182
        %3184 = vmatprep.mubr.f32.mxu0 %v2989
        %3185 = vmatmul.mubr.f32.gmra.mxu0 %v2988
        %v3186 = vpop.f32.mrf.mxu0
        %v3187 = vadd.f32 0.0, %v3186
        %v3188 = vpop.f32.mrf.mxu0
        %v3189 = vadd.f32 0.0, %v3188
        %3190 = vmatprep.mubr.f32.mxu0 %v2991
        %3191 = vmatmul.mubr.f32.gmra.mxu0 %v2990
        %v3192 = vpop.f32.mrf.mxu0
        %v3193 = vadd.f32 0.0, %v3192
        %v3194 = vpop.f32.mrf.mxu0
        %v3195 = vadd.f32 0.0, %v3194
        %3196 = vmatprep.mubr.f32.mxu0 %v2993
        %3197 = vmatmul.mubr.f32.gmra.mxu0 %v2992
        %v3198 = vpop.f32.mrf.mxu0
        %v3199 = vadd.f32 0.0, %v3198
        %v3200 = vpop.f32.mrf.mxu0
        %v3201 = vadd.f32 0.0, %v3200
        %3202 = vmatprep.mubr.f32.mxu0 %v2995
        %3203 = vmatmul.mubr.f32.gmra.mxu0 %v2994
        %v3204 = vpop.f32.mrf.mxu0
        %v3205 = vadd.f32 0.0, %v3204
        %v3206 = vpop.f32.mrf.mxu0
        %v3207 = vadd.f32 0.0, %v3206
        %3208 = vmatprep.mubr.f32.mxu0 %v2997
        %3209 = vmatmul.mubr.f32.gmra.mxu0 %v2996
        %v3210 = vpop.f32.mrf.mxu0
        %v3211 = vadd.f32 0.0, %v3210
        %v3212 = vpop.f32.mrf.mxu0
        %v3213 = vadd.f32 0.0, %v3212
        %3214 = vmatprep.mubr.f32.mxu0 %v2999
        %3215 = vmatmul.mubr.f32.gmra.mxu0 %v2998
        %v3216 = vpop.f32.mrf.mxu0
        %v3217 = vadd.f32 0.0, %v3216
        %v3218 = vpop.f32.mrf.mxu0
        %v3219 = vadd.f32 0.0, %v3218
        %3220 = vmatprep.mubr.f32.mxu0 %v3001
        %3221 = vmatmul.mubr.f32.gmra.mxu0 %v3000
        %v3222 = vpop.f32.mrf.mxu0
        %v3223 = vadd.f32 0.0, %v3222
        %v3224 = vpop.f32.mrf.mxu0
        %v3225 = vadd.f32 0.0, %v3224
        %3226 = vmatprep.mubr.f32.mxu0 %v3003
        %3227 = vmatmul.mubr.f32.gmra.mxu0 %v3002
        %v3228 = vpop.f32.mrf.mxu0
        %v3229 = vadd.f32 0.0, %v3228
        %v3230 = vpop.f32.mrf.mxu0
        %v3231 = vadd.f32 0.0, %v3230
        %3232 = vmatprep.mubr.f32.mxu0 %v3005
        %3233 = vmatmul.mubr.f32.gmra.mxu0 %v3004
        %v3234 = vpop.f32.mrf.mxu0
        %v3235 = vadd.f32 0.0, %v3234
        %v3236 = vpop.f32.mrf.mxu0
        %v3237 = vadd.f32 0.0, %v3236
        %3238 = vmatprep.mubr.f32.mxu0 %v3007
        %3239 = vmatmul.mubr.f32.gmra.mxu0 %v3006
        %v3240 = vpop.f32.mrf.mxu0
        %v3241 = vadd.f32 0.0, %v3240
        %v3242 = vpop.f32.mrf.mxu0
        %v3243 = vadd.f32 0.0, %v3242
        %3244 = vmatprep.mubr.f32.mxu0 %v3009
        %3245 = vmatmul.mubr.f32.gmra.mxu0 %v3008
        %v3246 = vpop.f32.mrf.mxu0
        %v3247 = vadd.f32 0.0, %v3246
        %v3248 = vpop.f32.mrf.mxu0
        %v3249 = vadd.f32 0.0, %v3248
        %3250 = vmatprep.mubr.f32.mxu0 %v3011
        %3251 = vmatmul.mubr.f32.gmra.mxu0 %v3010
        %v3252 = vpop.f32.mrf.mxu0
        %v3253 = vadd.f32 0.0, %v3252
        %v3254 = vpop.f32.mrf.mxu0
        %v3255 = vadd.f32 0.0, %v3254
        %3256 = vmatprep.mubr.f32.mxu0 %v3013
        %3257 = vmatmul.mubr.f32.gmra.mxu0 %v3012
        %v3258 = vpop.f32.mrf.mxu0
        %v3259 = vadd.f32 0.0, %v3258
        %v3260 = vpop.f32.mrf.mxu0
        %v3261 = vadd.f32 0.0, %v3260
        %3262 = vmatprep.mubr.f32.mxu0 %v3015
        %3263 = vmatmul.mubr.f32.gmra.mxu0 %v3014
        %v3264 = vpop.f32.mrf.mxu0
        %v3265 = vadd.f32 0.0, %v3264
        %v3266 = vpop.f32.mrf.mxu0
        %v3267 = vadd.f32 0.0, %v3266
        %3268 = vmatprep.mubr.f32.mxu0 %v3017
        %3269 = vmatmul.mubr.f32.gmra.mxu0 %v3016
        %v3270 = vpop.f32.mrf.mxu0
        %v3271 = vadd.f32 0.0, %v3270
        %v3272 = vpop.f32.mrf.mxu0
        %v3273 = vadd.f32 0.0, %v3272
        %3274 = vdwg.mxu0
        %v3275 = vrcp.pop %v2916
        %v3276 = vmul.f32 1.0, %v3275
        %v3277 = vrcp.pop %v2953
        %v3278 = vmul.f32 1.0, %v3277
        %v3279 = vmul.f32 %v3085, %v3276
        %v3280 = vmul.f32 %v3087, %v3278
        %v3281 = vmul.f32 %v3091, %v3276
        %v3282 = vmul.f32 %v3093, %v3278
        %v3283 = vmul.f32 %v3097, %v3276
        %v3284 = vmul.f32 %v3099, %v3278
        %v3285 = vmul.f32 %v3103, %v3276
        %v3286 = vmul.f32 %v3105, %v3278
        %v3287 = vmul.f32 %v3109, %v3276
        %v3288 = vmul.f32 %v3111, %v3278
        %v3289 = vmul.f32 %v3115, %v3276
        %v3290 = vmul.f32 %v3117, %v3278
        %v3291 = vmul.f32 %v3121, %v3276
        %v3292 = vmul.f32 %v3123, %v3278
        %v3293 = vmul.f32 %v3127, %v3276
        %v3294 = vmul.f32 %v3129, %v3278
        %v3295 = vmul.f32 %v3133, %v3276
        %v3296 = vmul.f32 %v3135, %v3278
        %v3297 = vmul.f32 %v3139, %v3276
        %v3298 = vmul.f32 %v3141, %v3278
        %v3299 = vmul.f32 %v3145, %v3276
        %v3300 = vmul.f32 %v3147, %v3278
        %v3301 = vmul.f32 %v3151, %v3276
        %v3302 = vmul.f32 %v3153, %v3278
        %v3303 = vmul.f32 %v3157, %v3276
        %v3304 = vmul.f32 %v3159, %v3278
        %v3305 = vmul.f32 %v3163, %v3276
        %v3306 = vmul.f32 %v3165, %v3278
        %v3307 = vmul.f32 %v3169, %v3276
        %v3308 = vmul.f32 %v3171, %v3278
        %v3309 = vmul.f32 %v3175, %v3276
        %v3310 = vmul.f32 %v3177, %v3278
        %v3311 = vmul.f32 %v3181, %v3276
        %v3312 = vmul.f32 %v3183, %v3278
        %v3313 = vmul.f32 %v3187, %v3276
        %v3314 = vmul.f32 %v3189, %v3278
        %v3315 = vmul.f32 %v3193, %v3276
        %v3316 = vmul.f32 %v3195, %v3278
        %v3317 = vmul.f32 %v3199, %v3276
        %v3318 = vmul.f32 %v3201, %v3278
        %v3319 = vmul.f32 %v3205, %v3276
        %v3320 = vmul.f32 %v3207, %v3278
        %v3321 = vmul.f32 %v3211, %v3276
        %v3322 = vmul.f32 %v3213, %v3278
        %v3323 = vmul.f32 %v3217, %v3276
        %v3324 = vmul.f32 %v3219, %v3278
        %v3325 = vmul.f32 %v3223, %v3276
        %v3326 = vmul.f32 %v3225, %v3278
        %v3327 = vmul.f32 %v3229, %v3276
        %v3328 = vmul.f32 %v3231, %v3278
        %v3329 = vmul.f32 %v3235, %v3276
        %v3330 = vmul.f32 %v3237, %v3278
        %v3331 = vmul.f32 %v3241, %v3276
        %v3332 = vmul.f32 %v3243, %v3278
        %v3333 = vmul.f32 %v3247, %v3276
        %v3334 = vmul.f32 %v3249, %v3278
        %v3335 = vmul.f32 %v3253, %v3276
        %v3336 = vmul.f32 %v3255, %v3278
        %v3337 = vmul.f32 %v3259, %v3276
        %v3338 = vmul.f32 %v3261, %v3278
        %v3339 = vmul.f32 %v3265, %v3276
        %v3340 = vmul.f32 %v3267, %v3278
        %v3341 = vmul.f32 %v3271, %v3276
        %v3342 = vmul.f32 %v3273, %v3278
        %s3343 = smul.u32 %s27, 256
        %s3344 = sshra.s32 %s3343, 7
        %s3345 = sand.u32 %s3343, 127
        %s3346 = smul.addr %s3344, 4
        %s3347 = scalar_lea.vmem %s342, %s3346
        %v3348 = vld [vmem:[%s3347] sm:$0xff]
        %v3349 = vld [vmem:[%s4] sm:$0xff]
        %v3350 = vld [vmem:[%s4 + $0x8] sm:$0xff]
        %v3351 = vld [vmem:[%s4 + $0x10] sm:$0xff]
        %v3352 = vld [vmem:[%s4 + $0x18] sm:$0xff]
        %v3353 = vld [vmem:[%s4 + $0x20] sm:$0xff]
        %v3354 = vld [vmem:[%s4 + $0x28] sm:$0xff]
        %v3355 = vld [vmem:[%s4 + $0x30] sm:$0xff]
        %v3356 = vld [vmem:[%s4 + $0x38] sm:$0xff]
        %v3357 = vld [vmem:[%s4 + $0x40] sm:$0xff]
        %v3358 = vld [vmem:[%s4 + $0x48] sm:$0xff]
        %v3359 = vld [vmem:[%s4 + $0x50] sm:$0xff]
        %v3360 = vld [vmem:[%s4 + $0x58] sm:$0xff]
        %v3361 = vld [vmem:[%s4 + $0x60] sm:$0xff]
        %v3362 = vld [vmem:[%s4 + $0x68] sm:$0xff]
        %v3363 = vld [vmem:[%s4 + $0x70] sm:$0xff]
        %v3364 = vld [vmem:[%s4 + $0x78] sm:$0xff]
        %v3365 = vld [vmem:[%s4 + $0x80] sm:$0xff]
        %v3366 = vld [vmem:[%s4 + $0x88] sm:$0xff]
        %v3367 = vld [vmem:[%s4 + $0x90] sm:$0xff]
        %v3368 = vld [vmem:[%s4 + $0x98] sm:$0xff]
        %v3369 = vld [vmem:[%s4 + $0xa0] sm:$0xff]
        %v3370 = vld [vmem:[%s4 + $0xa8] sm:$0xff]
        %v3371 = vld [vmem:[%s4 + $0xb0] sm:$0xff]
        %v3372 = vld [vmem:[%s4 + $0xb8] sm:$0xff]
        %v3373 = vld [vmem:[%s4 + $0xc0] sm:$0xff]
        %v3374 = vld [vmem:[%s4 + $0xc8] sm:$0xff]
        %v3375 = vld [vmem:[%s4 + $0xd0] sm:$0xff]
        %v3376 = vld [vmem:[%s4 + $0xd8] sm:$0xff]
        %v3377 = vld [vmem:[%s4 + $0xe0] sm:$0xff]
        %v3378 = vld [vmem:[%s4 + $0xe8] sm:$0xff]
        %v3379 = vld [vmem:[%s4 + $0xf0] sm:$0xff]
        %v3380 = vld [vmem:[%s4 + $0xf8] sm:$0xff]
        %3382 = vset.pattern.permute.xlu0 0
        %3383 = vperm.xlu0 %3382, %v3349
        %v3384 = vpop.permute.xlu0 %3383
        %3387 = vset.pattern.permute.xlu0 0
        %3388 = vperm.xlu0 %3387, %v3350
        %v3389 = vpop.permute.xlu0 %3388
        %3392 = vset.pattern.permute.xlu0 0
        %3393 = vperm.xlu0 %3392, %v3351
        %v3394 = vpop.permute.xlu0 %3393
        %3397 = vset.pattern.permute.xlu0 0
        %3398 = vperm.xlu0 %3397, %v3352
        %v3399 = vpop.permute.xlu0 %3398
        %3402 = vset.pattern.permute.xlu0 0
        %3403 = vperm.xlu0 %3402, %v3353
        %v3404 = vpop.permute.xlu0 %3403
        %3407 = vset.pattern.permute.xlu0 0
        %3408 = vperm.xlu0 %3407, %v3354
        %v3409 = vpop.permute.xlu0 %3408
        %3412 = vset.pattern.permute.xlu0 0
        %3413 = vperm.xlu0 %3412, %v3355
        %v3414 = vpop.permute.xlu0 %3413
        %3417 = vset.pattern.permute.xlu0 0
        %3418 = vperm.xlu0 %3417, %v3356
        %v3419 = vpop.permute.xlu0 %3418
        %3422 = vset.pattern.permute.xlu0 0
        %3423 = vperm.xlu0 %3422, %v3357
        %v3424 = vpop.permute.xlu0 %3423
        %3427 = vset.pattern.permute.xlu0 0
        %3428 = vperm.xlu0 %3427, %v3358
        %v3429 = vpop.permute.xlu0 %3428
        %3432 = vset.pattern.permute.xlu0 0
        %3433 = vperm.xlu0 %3432, %v3359
        %v3434 = vpop.permute.xlu0 %3433
        %3437 = vset.pattern.permute.xlu0 0
        %3438 = vperm.xlu0 %3437, %v3360
        %v3439 = vpop.permute.xlu0 %3438
        %3442 = vset.pattern.permute.xlu0 0
        %3443 = vperm.xlu0 %3442, %v3361
        %v3444 = vpop.permute.xlu0 %3443
        %3447 = vset.pattern.permute.xlu0 0
        %3448 = vperm.xlu0 %3447, %v3362
        %v3449 = vpop.permute.xlu0 %3448
        %3452 = vset.pattern.permute.xlu0 0
        %3453 = vperm.xlu0 %3452, %v3363
        %v3454 = vpop.permute.xlu0 %3453
        %3457 = vset.pattern.permute.xlu0 0
        %3458 = vperm.xlu0 %3457, %v3364
        %v3459 = vpop.permute.xlu0 %3458
        %3462 = vset.pattern.permute.xlu0 0
        %3463 = vperm.xlu0 %3462, %v3365
        %v3464 = vpop.permute.xlu0 %3463
        %3467 = vset.pattern.permute.xlu0 0
        %3468 = vperm.xlu0 %3467, %v3366
        %v3469 = vpop.permute.xlu0 %3468
        %3472 = vset.pattern.permute.xlu0 0
        %3473 = vperm.xlu0 %3472, %v3367
        %v3474 = vpop.permute.xlu0 %3473
        %3477 = vset.pattern.permute.xlu0 0
        %3478 = vperm.xlu0 %3477, %v3368
        %v3479 = vpop.permute.xlu0 %3478
        %3482 = vset.pattern.permute.xlu0 0
        %3483 = vperm.xlu0 %3482, %v3369
        %v3484 = vpop.permute.xlu0 %3483
        %3487 = vset.pattern.permute.xlu0 0
        %3488 = vperm.xlu0 %3487, %v3370
        %v3489 = vpop.permute.xlu0 %3488
        %3492 = vset.pattern.permute.xlu0 0
        %3493 = vperm.xlu0 %3492, %v3371
        %v3494 = vpop.permute.xlu0 %3493
        %3497 = vset.pattern.permute.xlu0 0
        %3498 = vperm.xlu0 %3497, %v3372
        %v3499 = vpop.permute.xlu0 %3498
        %3502 = vset.pattern.permute.xlu0 0
        %3503 = vperm.xlu0 %3502, %v3373
        %v3504 = vpop.permute.xlu0 %3503
        %3507 = vset.pattern.permute.xlu0 0
        %3508 = vperm.xlu0 %3507, %v3374
        %v3509 = vpop.permute.xlu0 %3508
        %3512 = vset.pattern.permute.xlu0 0
        %3513 = vperm.xlu0 %3512, %v3375
        %v3514 = vpop.permute.xlu0 %3513
        %3517 = vset.pattern.permute.xlu0 0
        %3518 = vperm.xlu0 %3517, %v3376
        %v3519 = vpop.permute.xlu0 %3518
        %3522 = vset.pattern.permute.xlu0 0
        %3523 = vperm.xlu0 %3522, %v3377
        %v3524 = vpop.permute.xlu0 %3523
        %3527 = vset.pattern.permute.xlu0 0
        %3528 = vperm.xlu0 %3527, %v3378
        %v3529 = vpop.permute.xlu0 %3528
        %3532 = vset.pattern.permute.xlu0 0
        %3533 = vperm.xlu0 %3532, %v3379
        %v3534 = vpop.permute.xlu0 %3533
        %3537 = vset.pattern.permute.xlu0 0
        %3538 = vperm.xlu0 %3537, %v3380
        %v3539 = vpop.permute.xlu0 %3538
        %v3542 = vlaneseq
        %v3543 = vshrl.u32 %v3542, 7
        %v3544 = vsub.s32 0, %v3543
        %v3545 = vrot.slane %v3348, %v3544
        %v3546 = vlaneseq
        %v3547 = vshrl.u32 %v3546, 7
        %v3548 = vsub.s32 4, %v3547
        %v3549 = vrot.slane %v3348, %v3548
        %v3552 = vlaneseq
        %v3553 = vshrl.u32 %v3552, 7
        %v3554 = vsub.s32 0, %v3553
        %v3555 = vrot.slane %v3545, %v3554
        %v3556 = vlaneseq
        %v3557 = vshrl.u32 %v3556, 7
        %v3558 = vsub.s32 0, %v3557
        %v3559 = vrot.slane %v3549, %v3558
        %v3560 = vmul.f32 %v3384, %v3555
        %v3561 = vmul.f32 %v3384, %v3559
        %v3562 = vmul.f32 %v3389, %v3555
        %v3563 = vmul.f32 %v3389, %v3559
        %v3564 = vmul.f32 %v3394, %v3555
        %v3565 = vmul.f32 %v3394, %v3559
        %v3566 = vmul.f32 %v3399, %v3555
        %v3567 = vmul.f32 %v3399, %v3559
        %v3568 = vmul.f32 %v3404, %v3555
        %v3569 = vmul.f32 %v3404, %v3559
        %v3570 = vmul.f32 %v3409, %v3555
        %v3571 = vmul.f32 %v3409, %v3559
        %v3572 = vmul.f32 %v3414, %v3555
        %v3573 = vmul.f32 %v3414, %v3559
        %v3574 = vmul.f32 %v3419, %v3555
        %v3575 = vmul.f32 %v3419, %v3559
        %v3576 = vmul.f32 %v3424, %v3555
        %v3577 = vmul.f32 %v3424, %v3559
        %v3578 = vmul.f32 %v3429, %v3555
        %v3579 = vmul.f32 %v3429, %v3559
        %v3580 = vmul.f32 %v3434, %v3555
        %v3581 = vmul.f32 %v3434, %v3559
        %v3582 = vmul.f32 %v3439, %v3555
        %v3583 = vmul.f32 %v3439, %v3559
        %v3584 = vmul.f32 %v3444, %v3555
        %v3585 = vmul.f32 %v3444, %v3559
        %v3586 = vmul.f32 %v3449, %v3555
        %v3587 = vmul.f32 %v3449, %v3559
        %v3588 = vmul.f32 %v3454, %v3555
        %v3589 = vmul.f32 %v3454, %v3559
        %v3590 = vmul.f32 %v3459, %v3555
        %v3591 = vmul.f32 %v3459, %v3559
        %v3592 = vmul.f32 %v3464, %v3555
        %v3593 = vmul.f32 %v3464, %v3559
        %v3594 = vmul.f32 %v3469, %v3555
        %v3595 = vmul.f32 %v3469, %v3559
        %v3596 = vmul.f32 %v3474, %v3555
        %v3597 = vmul.f32 %v3474, %v3559
        %v3598 = vmul.f32 %v3479, %v3555
        %v3599 = vmul.f32 %v3479, %v3559
        %v3600 = vmul.f32 %v3484, %v3555
        %v3601 = vmul.f32 %v3484, %v3559
        %v3602 = vmul.f32 %v3489, %v3555
        %v3603 = vmul.f32 %v3489, %v3559
        %v3604 = vmul.f32 %v3494, %v3555
        %v3605 = vmul.f32 %v3494, %v3559
        %v3606 = vmul.f32 %v3499, %v3555
        %v3607 = vmul.f32 %v3499, %v3559
        %v3608 = vmul.f32 %v3504, %v3555
        %v3609 = vmul.f32 %v3504, %v3559
        %v3610 = vmul.f32 %v3509, %v3555
        %v3611 = vmul.f32 %v3509, %v3559
        %v3612 = vmul.f32 %v3514, %v3555
        %v3613 = vmul.f32 %v3514, %v3559
        %v3614 = vmul.f32 %v3519, %v3555
        %v3615 = vmul.f32 %v3519, %v3559
        %v3616 = vmul.f32 %v3524, %v3555
        %v3617 = vmul.f32 %v3524, %v3559
        %v3618 = vmul.f32 %v3529, %v3555
        %v3619 = vmul.f32 %v3529, %v3559
        %v3620 = vmul.f32 %v3534, %v3555
        %v3621 = vmul.f32 %v3534, %v3559
        %v3622 = vmul.f32 %v3539, %v3555
        %v3623 = vmul.f32 %v3539, %v3559
        %3624 = vset.pattern.permute.xlu0 1
        %3625 = vperm.xlu0 %3624, %v3349
        %v3626 = vpop.permute.xlu0 %3625
        %3628 = vset.pattern.permute.xlu0 1
        %3629 = vperm.xlu0 %3628, %v3350
        %v3630 = vpop.permute.xlu0 %3629
        %3632 = vset.pattern.permute.xlu0 1
        %3633 = vperm.xlu0 %3632, %v3351
        %v3634 = vpop.permute.xlu0 %3633
        %3636 = vset.pattern.permute.xlu0 1
        %3637 = vperm.xlu0 %3636, %v3352
        %v3638 = vpop.permute.xlu0 %3637
        %3640 = vset.pattern.permute.xlu0 1
        %3641 = vperm.xlu0 %3640, %v3353
        %v3642 = vpop.permute.xlu0 %3641
        %3644 = vset.pattern.permute.xlu0 1
        %3645 = vperm.xlu0 %3644, %v3354
        %v3646 = vpop.permute.xlu0 %3645
        %3648 = vset.pattern.permute.xlu0 1
        %3649 = vperm.xlu0 %3648, %v3355
        %v3650 = vpop.permute.xlu0 %3649
        %3652 = vset.pattern.permute.xlu0 1
        %3653 = vperm.xlu0 %3652, %v3356
        %v3654 = vpop.permute.xlu0 %3653
        %3656 = vset.pattern.permute.xlu0 1
        %3657 = vperm.xlu0 %3656, %v3357
        %v3658 = vpop.permute.xlu0 %3657
        %3660 = vset.pattern.permute.xlu0 1
        %3661 = vperm.xlu0 %3660, %v3358
        %v3662 = vpop.permute.xlu0 %3661
        %3664 = vset.pattern.permute.xlu0 1
        %3665 = vperm.xlu0 %3664, %v3359
        %v3666 = vpop.permute.xlu0 %3665
        %3668 = vset.pattern.permute.xlu0 1
        %3669 = vperm.xlu0 %3668, %v3360
        %v3670 = vpop.permute.xlu0 %3669
        %3672 = vset.pattern.permute.xlu0 1
        %3673 = vperm.xlu0 %3672, %v3361
        %v3674 = vpop.permute.xlu0 %3673
        %3676 = vset.pattern.permute.xlu0 1
        %3677 = vperm.xlu0 %3676, %v3362
        %v3678 = vpop.permute.xlu0 %3677
        %3680 = vset.pattern.permute.xlu0 1
        %3681 = vperm.xlu0 %3680, %v3363
        %v3682 = vpop.permute.xlu0 %3681
        %3684 = vset.pattern.permute.xlu0 1
        %3685 = vperm.xlu0 %3684, %v3364
        %v3686 = vpop.permute.xlu0 %3685
        %3688 = vset.pattern.permute.xlu0 1
        %3689 = vperm.xlu0 %3688, %v3365
        %v3690 = vpop.permute.xlu0 %3689
        %3692 = vset.pattern.permute.xlu0 1
        %3693 = vperm.xlu0 %3692, %v3366
        %v3694 = vpop.permute.xlu0 %3693
        %3696 = vset.pattern.permute.xlu0 1
        %3697 = vperm.xlu0 %3696, %v3367
        %v3698 = vpop.permute.xlu0 %3697
        %3700 = vset.pattern.permute.xlu0 1
        %3701 = vperm.xlu0 %3700, %v3368
        %v3702 = vpop.permute.xlu0 %3701
        %3704 = vset.pattern.permute.xlu0 1
        %3705 = vperm.xlu0 %3704, %v3369
        %v3706 = vpop.permute.xlu0 %3705
        %3708 = vset.pattern.permute.xlu0 1
        %3709 = vperm.xlu0 %3708, %v3370
        %v3710 = vpop.permute.xlu0 %3709
        %3712 = vset.pattern.permute.xlu0 1
        %3713 = vperm.xlu0 %3712, %v3371
        %v3714 = vpop.permute.xlu0 %3713
        %3716 = vset.pattern.permute.xlu0 1
        %3717 = vperm.xlu0 %3716, %v3372
        %v3718 = vpop.permute.xlu0 %3717
        %3720 = vset.pattern.permute.xlu0 1
        %3721 = vperm.xlu0 %3720, %v3373
        %v3722 = vpop.permute.xlu0 %3721
        %3724 = vset.pattern.permute.xlu0 1
        %3725 = vperm.xlu0 %3724, %v3374
        %v3726 = vpop.permute.xlu0 %3725
        %3728 = vset.pattern.permute.xlu0 1
        %3729 = vperm.xlu0 %3728, %v3375
        %v3730 = vpop.permute.xlu0 %3729
        %3732 = vset.pattern.permute.xlu0 1
        %3733 = vperm.xlu0 %3732, %v3376
        %v3734 = vpop.permute.xlu0 %3733
        %3736 = vset.pattern.permute.xlu0 1
        %3737 = vperm.xlu0 %3736, %v3377
        %v3738 = vpop.permute.xlu0 %3737
        %3740 = vset.pattern.permute.xlu0 1
        %3741 = vperm.xlu0 %3740, %v3378
        %v3742 = vpop.permute.xlu0 %3741
        %3744 = vset.pattern.permute.xlu0 1
        %3745 = vperm.xlu0 %3744, %v3379
        %v3746 = vpop.permute.xlu0 %3745
        %3748 = vset.pattern.permute.xlu0 1
        %3749 = vperm.xlu0 %3748, %v3380
        %v3750 = vpop.permute.xlu0 %3749
        %v3752 = vlaneseq
        %v3753 = vshrl.u32 %v3752, 7
        %v3754 = vsub.s32 1, %v3753
        %v3755 = vrot.slane %v3348, %v3754
        %v3756 = vlaneseq
        %v3757 = vshrl.u32 %v3756, 7
        %v3758 = vsub.s32 5, %v3757
        %v3759 = vrot.slane %v3348, %v3758
        %v3762 = vlaneseq
        %v3763 = vshrl.u32 %v3762, 7
        %v3764 = vsub.s32 1, %v3763
        %v3765 = vrot.slane %v3755, %v3764
        %v3766 = vlaneseq
        %v3767 = vshrl.u32 %v3766, 7
        %v3768 = vsub.s32 1, %v3767
        %v3769 = vrot.slane %v3759, %v3768
        %v3770 = vmul.f32 %v3626, %v3765
        %v3771 = vmul.f32 %v3626, %v3769
        %v3772 = vmul.f32 %v3630, %v3765
        %v3773 = vmul.f32 %v3630, %v3769
        %v3774 = vmul.f32 %v3634, %v3765
        %v3775 = vmul.f32 %v3634, %v3769
        %v3776 = vmul.f32 %v3638, %v3765
        %v3777 = vmul.f32 %v3638, %v3769
        %v3778 = vmul.f32 %v3642, %v3765
        %v3779 = vmul.f32 %v3642, %v3769
        %v3780 = vmul.f32 %v3646, %v3765
        %v3781 = vmul.f32 %v3646, %v3769
        %v3782 = vmul.f32 %v3650, %v3765
        %v3783 = vmul.f32 %v3650, %v3769
        %v3784 = vmul.f32 %v3654, %v3765
        %v3785 = vmul.f32 %v3654, %v3769
        %v3786 = vmul.f32 %v3658, %v3765
        %v3787 = vmul.f32 %v3658, %v3769
        %v3788 = vmul.f32 %v3662, %v3765
        %v3789 = vmul.f32 %v3662, %v3769
        %v3790 = vmul.f32 %v3666, %v3765
        %v3791 = vmul.f32 %v3666, %v3769
        %v3792 = vmul.f32 %v3670, %v3765
        %v3793 = vmul.f32 %v3670, %v3769
        %v3794 = vmul.f32 %v3674, %v3765
        %v3795 = vmul.f32 %v3674, %v3769
        %v3796 = vmul.f32 %v3678, %v3765
        %v3797 = vmul.f32 %v3678, %v3769
        %v3798 = vmul.f32 %v3682, %v3765
        %v3799 = vmul.f32 %v3682, %v3769
        %v3800 = vmul.f32 %v3686, %v3765
        %v3801 = vmul.f32 %v3686, %v3769
        %v3802 = vmul.f32 %v3690, %v3765
        %v3803 = vmul.f32 %v3690, %v3769
        %v3804 = vmul.f32 %v3694, %v3765
        %v3805 = vmul.f32 %v3694, %v3769
        %v3806 = vmul.f32 %v3698, %v3765
        %v3807 = vmul.f32 %v3698, %v3769
        %v3808 = vmul.f32 %v3702, %v3765
        %v3809 = vmul.f32 %v3702, %v3769
        %v3810 = vmul.f32 %v3706, %v3765
        %v3811 = vmul.f32 %v3706, %v3769
        %v3812 = vmul.f32 %v3710, %v3765
        %v3813 = vmul.f32 %v3710, %v3769
        %v3814 = vmul.f32 %v3714, %v3765
        %v3815 = vmul.f32 %v3714, %v3769
        %v3816 = vmul.f32 %v3718, %v3765
        %v3817 = vmul.f32 %v3718, %v3769
        %v3818 = vmul.f32 %v3722, %v3765
        %v3819 = vmul.f32 %v3722, %v3769
        %v3820 = vmul.f32 %v3726, %v3765
        %v3821 = vmul.f32 %v3726, %v3769
        %v3822 = vmul.f32 %v3730, %v3765
        %v3823 = vmul.f32 %v3730, %v3769
        %v3824 = vmul.f32 %v3734, %v3765
        %v3825 = vmul.f32 %v3734, %v3769
        %v3826 = vmul.f32 %v3738, %v3765
        %v3827 = vmul.f32 %v3738, %v3769
        %v3828 = vmul.f32 %v3742, %v3765
        %v3829 = vmul.f32 %v3742, %v3769
        %v3830 = vmul.f32 %v3746, %v3765
        %v3831 = vmul.f32 %v3746, %v3769
        %v3832 = vmul.f32 %v3750, %v3765
        %v3833 = vmul.f32 %v3750, %v3769
        %v3834 = vadd.f32 %v3560, %v3770
        %v3835 = vadd.f32 %v3561, %v3771
        %v3836 = vadd.f32 %v3562, %v3772
        %v3837 = vadd.f32 %v3563, %v3773
        %v3838 = vadd.f32 %v3564, %v3774
        %v3839 = vadd.f32 %v3565, %v3775
        %v3840 = vadd.f32 %v3566, %v3776
        %v3841 = vadd.f32 %v3567, %v3777
        %v3842 = vadd.f32 %v3568, %v3778
        %v3843 = vadd.f32 %v3569, %v3779
        %v3844 = vadd.f32 %v3570, %v3780
        %v3845 = vadd.f32 %v3571, %v3781
        %v3846 = vadd.f32 %v3572, %v3782
        %v3847 = vadd.f32 %v3573, %v3783
        %v3848 = vadd.f32 %v3574, %v3784
        %v3849 = vadd.f32 %v3575, %v3785
        %v3850 = vadd.f32 %v3576, %v3786
        %v3851 = vadd.f32 %v3577, %v3787
        %v3852 = vadd.f32 %v3578, %v3788
        %v3853 = vadd.f32 %v3579, %v3789
        %v3854 = vadd.f32 %v3580, %v3790
        %v3855 = vadd.f32 %v3581, %v3791
        %v3856 = vadd.f32 %v3582, %v3792
        %v3857 = vadd.f32 %v3583, %v3793
        %v3858 = vadd.f32 %v3584, %v3794
        %v3859 = vadd.f32 %v3585, %v3795
        %v3860 = vadd.f32 %v3586, %v3796
        %v3861 = vadd.f32 %v3587, %v3797
        %v3862 = vadd.f32 %v3588, %v3798
        %v3863 = vadd.f32 %v3589, %v3799
        %v3864 = vadd.f32 %v3590, %v3800
        %v3865 = vadd.f32 %v3591, %v3801
        %v3866 = vadd.f32 %v3592, %v3802
        %v3867 = vadd.f32 %v3593, %v3803
        %v3868 = vadd.f32 %v3594, %v3804
        %v3869 = vadd.f32 %v3595, %v3805
        %v3870 = vadd.f32 %v3596, %v3806
        %v3871 = vadd.f32 %v3597, %v3807
        %v3872 = vadd.f32 %v3598, %v3808
        %v3873 = vadd.f32 %v3599, %v3809
        %v3874 = vadd.f32 %v3600, %v3810
        %v3875 = vadd.f32 %v3601, %v3811
        %v3876 = vadd.f32 %v3602, %v3812
        %v3877 = vadd.f32 %v3603, %v3813
        %v3878 = vadd.f32 %v3604, %v3814
        %v3879 = vadd.f32 %v3605, %v3815
        %v3880 = vadd.f32 %v3606, %v3816
        %v3881 = vadd.f32 %v3607, %v3817
        %v3882 = vadd.f32 %v3608, %v3818
        %v3883 = vadd.f32 %v3609, %v3819
        %v3884 = vadd.f32 %v3610, %v3820
        %v3885 = vadd.f32 %v3611, %v3821
        %v3886 = vadd.f32 %v3612, %v3822
        %v3887 = vadd.f32 %v3613, %v3823
        %v3888 = vadd.f32 %v3614, %v3824
        %v3889 = vadd.f32 %v3615, %v3825
        %v3890 = vadd.f32 %v3616, %v3826
        %v3891 = vadd.f32 %v3617, %v3827
        %v3892 = vadd.f32 %v3618, %v3828
        %v3893 = vadd.f32 %v3619, %v3829
        %v3894 = vadd.f32 %v3620, %v3830
        %v3895 = vadd.f32 %v3621, %v3831
        %v3896 = vadd.f32 %v3622, %v3832
        %v3897 = vadd.f32 %v3623, %v3833
        %3898 = vset.pattern.permute.xlu0 2
        %3899 = vperm.xlu0 %3898, %v3349
        %v3900 = vpop.permute.xlu0 %3899
        %3902 = vset.pattern.permute.xlu0 2
        %3903 = vperm.xlu0 %3902, %v3350
        %v3904 = vpop.permute.xlu0 %3903
        %3906 = vset.pattern.permute.xlu0 2
        %3907 = vperm.xlu0 %3906, %v3351
        %v3908 = vpop.permute.xlu0 %3907
        %3910 = vset.pattern.permute.xlu0 2
        %3911 = vperm.xlu0 %3910, %v3352
        %v3912 = vpop.permute.xlu0 %3911
        %3914 = vset.pattern.permute.xlu0 2
        %3915 = vperm.xlu0 %3914, %v3353
        %v3916 = vpop.permute.xlu0 %3915
        %3918 = vset.pattern.permute.xlu0 2
        %3919 = vperm.xlu0 %3918, %v3354
        %v3920 = vpop.permute.xlu0 %3919
        %3922 = vset.pattern.permute.xlu0 2
        %3923 = vperm.xlu0 %3922, %v3355
        %v3924 = vpop.permute.xlu0 %3923
        %3926 = vset.pattern.permute.xlu0 2
        %3927 = vperm.xlu0 %3926, %v3356
        %v3928 = vpop.permute.xlu0 %3927
        %3930 = vset.pattern.permute.xlu0 2
        %3931 = vperm.xlu0 %3930, %v3357
        %v3932 = vpop.permute.xlu0 %3931
        %3934 = vset.pattern.permute.xlu0 2
        %3935 = vperm.xlu0 %3934, %v3358
        %v3936 = vpop.permute.xlu0 %3935
        %3938 = vset.pattern.permute.xlu0 2
        %3939 = vperm.xlu0 %3938, %v3359
        %v3940 = vpop.permute.xlu0 %3939
        %3942 = vset.pattern.permute.xlu0 2
        %3943 = vperm.xlu0 %3942, %v3360
        %v3944 = vpop.permute.xlu0 %3943
        %3946 = vset.pattern.permute.xlu0 2
        %3947 = vperm.xlu0 %3946, %v3361
        %v3948 = vpop.permute.xlu0 %3947
        %3950 = vset.pattern.permute.xlu0 2
        %3951 = vperm.xlu0 %3950, %v3362
        %v3952 = vpop.permute.xlu0 %3951
        %3954 = vset.pattern.permute.xlu0 2
        %3955 = vperm.xlu0 %3954, %v3363
        %v3956 = vpop.permute.xlu0 %3955
        %3958 = vset.pattern.permute.xlu0 2
        %3959 = vperm.xlu0 %3958, %v3364
        %v3960 = vpop.permute.xlu0 %3959
        %3962 = vset.pattern.permute.xlu0 2
        %3963 = vperm.xlu0 %3962, %v3365
        %v3964 = vpop.permute.xlu0 %3963
        %3966 = vset.pattern.permute.xlu0 2
        %3967 = vperm.xlu0 %3966, %v3366
        %v3968 = vpop.permute.xlu0 %3967
        %3970 = vset.pattern.permute.xlu0 2
        %3971 = vperm.xlu0 %3970, %v3367
        %v3972 = vpop.permute.xlu0 %3971
        %3974 = vset.pattern.permute.xlu0 2
        %3975 = vperm.xlu0 %3974, %v3368
        %v3976 = vpop.permute.xlu0 %3975
        %3978 = vset.pattern.permute.xlu0 2
        %3979 = vperm.xlu0 %3978, %v3369
        %v3980 = vpop.permute.xlu0 %3979
        %3982 = vset.pattern.permute.xlu0 2
        %3983 = vperm.xlu0 %3982, %v3370
        %v3984 = vpop.permute.xlu0 %3983
        %3986 = vset.pattern.permute.xlu0 2
        %3987 = vperm.xlu0 %3986, %v3371
        %v3988 = vpop.permute.xlu0 %3987
        %3990 = vset.pattern.permute.xlu0 2
        %3991 = vperm.xlu0 %3990, %v3372
        %v3992 = vpop.permute.xlu0 %3991
        %3994 = vset.pattern.permute.xlu0 2
        %3995 = vperm.xlu0 %3994, %v3373
        %v3996 = vpop.permute.xlu0 %3995
        %3998 = vset.pattern.permute.xlu0 2
        %3999 = vperm.xlu0 %3998, %v3374
        %v4000 = vpop.permute.xlu0 %3999
        %4002 = vset.pattern.permute.xlu0 2
        %4003 = vperm.xlu0 %4002, %v3375
        %v4004 = vpop.permute.xlu0 %4003
        %4006 = vset.pattern.permute.xlu0 2
        %4007 = vperm.xlu0 %4006, %v3376
        %v4008 = vpop.permute.xlu0 %4007
        %4010 = vset.pattern.permute.xlu0 2
        %4011 = vperm.xlu0 %4010, %v3377
        %v4012 = vpop.permute.xlu0 %4011
        %4014 = vset.pattern.permute.xlu0 2
        %4015 = vperm.xlu0 %4014, %v3378
        %v4016 = vpop.permute.xlu0 %4015
        %4018 = vset.pattern.permute.xlu0 2
        %4019 = vperm.xlu0 %4018, %v3379
        %v4020 = vpop.permute.xlu0 %4019
        %4022 = vset.pattern.permute.xlu0 2
        %4023 = vperm.xlu0 %4022, %v3380
        %v4024 = vpop.permute.xlu0 %4023
        %v4026 = vlaneseq
        %v4027 = vshrl.u32 %v4026, 7
        %v4028 = vsub.s32 2, %v4027
        %v4029 = vrot.slane %v3348, %v4028
        %v4030 = vlaneseq
        %v4031 = vshrl.u32 %v4030, 7
        %v4032 = vsub.s32 6, %v4031
        %v4033 = vrot.slane %v3348, %v4032
        %v4036 = vlaneseq
        %v4037 = vshrl.u32 %v4036, 7
        %v4038 = vsub.s32 2, %v4037
        %v4039 = vrot.slane %v4029, %v4038
        %v4040 = vlaneseq
        %v4041 = vshrl.u32 %v4040, 7
        %v4042 = vsub.s32 2, %v4041
        %v4043 = vrot.slane %v4033, %v4042
        %v4044 = vmul.f32 %v3900, %v4039
        %v4045 = vmul.f32 %v3900, %v4043
        %v4046 = vmul.f32 %v3904, %v4039
        %v4047 = vmul.f32 %v3904, %v4043
        %v4048 = vmul.f32 %v3908, %v4039
        %v4049 = vmul.f32 %v3908, %v4043
        %v4050 = vmul.f32 %v3912, %v4039
        %v4051 = vmul.f32 %v3912, %v4043
        %v4052 = vmul.f32 %v3916, %v4039
        %v4053 = vmul.f32 %v3916, %v4043
        %v4054 = vmul.f32 %v3920, %v4039
        %v4055 = vmul.f32 %v3920, %v4043
        %v4056 = vmul.f32 %v3924, %v4039
        %v4057 = vmul.f32 %v3924, %v4043
        %v4058 = vmul.f32 %v3928, %v4039
        %v4059 = vmul.f32 %v3928, %v4043
        %v4060 = vmul.f32 %v3932, %v4039
        %v4061 = vmul.f32 %v3932, %v4043
        %v4062 = vmul.f32 %v3936, %v4039
        %v4063 = vmul.f32 %v3936, %v4043
        %v4064 = vmul.f32 %v3940, %v4039
        %v4065 = vmul.f32 %v3940, %v4043
        %v4066 = vmul.f32 %v3944, %v4039
        %v4067 = vmul.f32 %v3944, %v4043
        %v4068 = vmul.f32 %v3948, %v4039
        %v4069 = vmul.f32 %v3948, %v4043
        %v4070 = vmul.f32 %v3952, %v4039
        %v4071 = vmul.f32 %v3952, %v4043
        %v4072 = vmul.f32 %v3956, %v4039
        %v4073 = vmul.f32 %v3956, %v4043
        %v4074 = vmul.f32 %v3960, %v4039
        %v4075 = vmul.f32 %v3960, %v4043
        %v4076 = vmul.f32 %v3964, %v4039
        %v4077 = vmul.f32 %v3964, %v4043
        %v4078 = vmul.f32 %v3968, %v4039
        %v4079 = vmul.f32 %v3968, %v4043
        %v4080 = vmul.f32 %v3972, %v4039
        %v4081 = vmul.f32 %v3972, %v4043
        %v4082 = vmul.f32 %v3976, %v4039
        %v4083 = vmul.f32 %v3976, %v4043
        %v4084 = vmul.f32 %v3980, %v4039
        %v4085 = vmul.f32 %v3980, %v4043
        %v4086 = vmul.f32 %v3984, %v4039
        %v4087 = vmul.f32 %v3984, %v4043
        %v4088 = vmul.f32 %v3988, %v4039
        %v4089 = vmul.f32 %v3988, %v4043
        %v4090 = vmul.f32 %v3992, %v4039
        %v4091 = vmul.f32 %v3992, %v4043
        %v4092 = vmul.f32 %v3996, %v4039
        %v4093 = vmul.f32 %v3996, %v4043
        %v4094 = vmul.f32 %v4000, %v4039
        %v4095 = vmul.f32 %v4000, %v4043
        %v4096 = vmul.f32 %v4004, %v4039
        %v4097 = vmul.f32 %v4004, %v4043
        %v4098 = vmul.f32 %v4008, %v4039
        %v4099 = vmul.f32 %v4008, %v4043
        %v4100 = vmul.f32 %v4012, %v4039
        %v4101 = vmul.f32 %v4012, %v4043
        %v4102 = vmul.f32 %v4016, %v4039
        %v4103 = vmul.f32 %v4016, %v4043
        %v4104 = vmul.f32 %v4020, %v4039
        %v4105 = vmul.f32 %v4020, %v4043
        %v4106 = vmul.f32 %v4024, %v4039
        %v4107 = vmul.f32 %v4024, %v4043
        %v4108 = vadd.f32 %v3834, %v4044
        %v4109 = vadd.f32 %v3835, %v4045
        %v4110 = vadd.f32 %v3836, %v4046
        %v4111 = vadd.f32 %v3837, %v4047
        %v4112 = vadd.f32 %v3838, %v4048
        %v4113 = vadd.f32 %v3839, %v4049
        %v4114 = vadd.f32 %v3840, %v4050
        %v4115 = vadd.f32 %v3841, %v4051
        %v4116 = vadd.f32 %v3842, %v4052
        %v4117 = vadd.f32 %v3843, %v4053
        %v4118 = vadd.f32 %v3844, %v4054
        %v4119 = vadd.f32 %v3845, %v4055
        %v4120 = vadd.f32 %v3846, %v4056
        %v4121 = vadd.f32 %v3847, %v4057
        %v4122 = vadd.f32 %v3848, %v4058
        %v4123 = vadd.f32 %v3849, %v4059
        %v4124 = vadd.f32 %v3850, %v4060
        %v4125 = vadd.f32 %v3851, %v4061
        %v4126 = vadd.f32 %v3852, %v4062
        %v4127 = vadd.f32 %v3853, %v4063
        %v4128 = vadd.f32 %v3854, %v4064
        %v4129 = vadd.f32 %v3855, %v4065
        %v4130 = vadd.f32 %v3856, %v4066
        %v4131 = vadd.f32 %v3857, %v4067
        %v4132 = vadd.f32 %v3858, %v4068
        %v4133 = vadd.f32 %v3859, %v4069
        %v4134 = vadd.f32 %v3860, %v4070
        %v4135 = vadd.f32 %v3861, %v4071
        %v4136 = vadd.f32 %v3862, %v4072
        %v4137 = vadd.f32 %v3863, %v4073
        %v4138 = vadd.f32 %v3864, %v4074
        %v4139 = vadd.f32 %v3865, %v4075
        %v4140 = vadd.f32 %v3866, %v4076
        %v4141 = vadd.f32 %v3867, %v4077
        %v4142 = vadd.f32 %v3868, %v4078
        %v4143 = vadd.f32 %v3869, %v4079
        %v4144 = vadd.f32 %v3870, %v4080
        %v4145 = vadd.f32 %v3871, %v4081
        %v4146 = vadd.f32 %v3872, %v4082
        %v4147 = vadd.f32 %v3873, %v4083
        %v4148 = vadd.f32 %v3874, %v4084
        %v4149 = vadd.f32 %v3875, %v4085
        %v4150 = vadd.f32 %v3876, %v4086
        %v4151 = vadd.f32 %v3877, %v4087
        %v4152 = vadd.f32 %v3878, %v4088
        %v4153 = vadd.f32 %v3879, %v4089
        %v4154 = vadd.f32 %v3880, %v4090
        %v4155 = vadd.f32 %v3881, %v4091
        %v4156 = vadd.f32 %v3882, %v4092
        %v4157 = vadd.f32 %v3883, %v4093
        %v4158 = vadd.f32 %v3884, %v4094
        %v4159 = vadd.f32 %v3885, %v4095
        %v4160 = vadd.f32 %v3886, %v4096
        %v4161 = vadd.f32 %v3887, %v4097
        %v4162 = vadd.f32 %v3888, %v4098
        %v4163 = vadd.f32 %v3889, %v4099
        %v4164 = vadd.f32 %v3890, %v4100
        %v4165 = vadd.f32 %v3891, %v4101
        %v4166 = vadd.f32 %v3892, %v4102
        %v4167 = vadd.f32 %v3893, %v4103
        %v4168 = vadd.f32 %v3894, %v4104
        %v4169 = vadd.f32 %v3895, %v4105
        %v4170 = vadd.f32 %v3896, %v4106
        %v4171 = vadd.f32 %v3897, %v4107
        %4172 = vset.pattern.permute.xlu0 3
        %4173 = vperm.xlu0 %4172, %v3349
        %v4174 = vpop.permute.xlu0 %4173
        %4176 = vset.pattern.permute.xlu0 3
        %4177 = vperm.xlu0 %4176, %v3350
        %v4178 = vpop.permute.xlu0 %4177
        %4180 = vset.pattern.permute.xlu0 3
        %4181 = vperm.xlu0 %4180, %v3351
        %v4182 = vpop.permute.xlu0 %4181
        %4184 = vset.pattern.permute.xlu0 3
        %4185 = vperm.xlu0 %4184, %v3352
        %v4186 = vpop.permute.xlu0 %4185
        %4188 = vset.pattern.permute.xlu0 3
        %4189 = vperm.xlu0 %4188, %v3353
        %v4190 = vpop.permute.xlu0 %4189
        %4192 = vset.pattern.permute.xlu0 3
        %4193 = vperm.xlu0 %4192, %v3354
        %v4194 = vpop.permute.xlu0 %4193
        %4196 = vset.pattern.permute.xlu0 3
        %4197 = vperm.xlu0 %4196, %v3355
        %v4198 = vpop.permute.xlu0 %4197
        %4200 = vset.pattern.permute.xlu0 3
        %4201 = vperm.xlu0 %4200, %v3356
        %v4202 = vpop.permute.xlu0 %4201
        %4204 = vset.pattern.permute.xlu0 3
        %4205 = vperm.xlu0 %4204, %v3357
        %v4206 = vpop.permute.xlu0 %4205
        %4208 = vset.pattern.permute.xlu0 3
        %4209 = vperm.xlu0 %4208, %v3358
        %v4210 = vpop.permute.xlu0 %4209
        %4212 = vset.pattern.permute.xlu0 3
        %4213 = vperm.xlu0 %4212, %v3359
        %v4214 = vpop.permute.xlu0 %4213
        %4216 = vset.pattern.permute.xlu0 3
        %4217 = vperm.xlu0 %4216, %v3360
        %v4218 = vpop.permute.xlu0 %4217
        %4220 = vset.pattern.permute.xlu0 3
        %4221 = vperm.xlu0 %4220, %v3361
        %v4222 = vpop.permute.xlu0 %4221
        %4224 = vset.pattern.permute.xlu0 3
        %4225 = vperm.xlu0 %4224, %v3362
        %v4226 = vpop.permute.xlu0 %4225
        %4228 = vset.pattern.permute.xlu0 3
        %4229 = vperm.xlu0 %4228, %v3363
        %v4230 = vpop.permute.xlu0 %4229
        %4232 = vset.pattern.permute.xlu0 3
        %4233 = vperm.xlu0 %4232, %v3364
        %v4234 = vpop.permute.xlu0 %4233
        %4236 = vset.pattern.permute.xlu0 3
        %4237 = vperm.xlu0 %4236, %v3365
        %v4238 = vpop.permute.xlu0 %4237
        %4240 = vset.pattern.permute.xlu0 3
        %4241 = vperm.xlu0 %4240, %v3366
        %v4242 = vpop.permute.xlu0 %4241
        %4244 = vset.pattern.permute.xlu0 3
        %4245 = vperm.xlu0 %4244, %v3367
        %v4246 = vpop.permute.xlu0 %4245
        %4248 = vset.pattern.permute.xlu0 3
        %4249 = vperm.xlu0 %4248, %v3368
        %v4250 = vpop.permute.xlu0 %4249
        %4252 = vset.pattern.permute.xlu0 3
        %4253 = vperm.xlu0 %4252, %v3369
        %v4254 = vpop.permute.xlu0 %4253
        %4256 = vset.pattern.permute.xlu0 3
        %4257 = vperm.xlu0 %4256, %v3370
        %v4258 = vpop.permute.xlu0 %4257
        %4260 = vset.pattern.permute.xlu0 3
        %4261 = vperm.xlu0 %4260, %v3371
        %v4262 = vpop.permute.xlu0 %4261
        %4264 = vset.pattern.permute.xlu0 3
        %4265 = vperm.xlu0 %4264, %v3372
        %v4266 = vpop.permute.xlu0 %4265
        %4268 = vset.pattern.permute.xlu0 3
        %4269 = vperm.xlu0 %4268, %v3373
        %v4270 = vpop.permute.xlu0 %4269
        %4272 = vset.pattern.permute.xlu0 3
        %4273 = vperm.xlu0 %4272, %v3374
        %v4274 = vpop.permute.xlu0 %4273
        %4276 = vset.pattern.permute.xlu0 3
        %4277 = vperm.xlu0 %4276, %v3375
        %v4278 = vpop.permute.xlu0 %4277
        %4280 = vset.pattern.permute.xlu0 3
        %4281 = vperm.xlu0 %4280, %v3376
        %v4282 = vpop.permute.xlu0 %4281
        %4284 = vset.pattern.permute.xlu0 3
        %4285 = vperm.xlu0 %4284, %v3377
        %v4286 = vpop.permute.xlu0 %4285
        %4288 = vset.pattern.permute.xlu0 3
        %4289 = vperm.xlu0 %4288, %v3378
        %v4290 = vpop.permute.xlu0 %4289
        %4292 = vset.pattern.permute.xlu0 3
        %4293 = vperm.xlu0 %4292, %v3379
        %v4294 = vpop.permute.xlu0 %4293
        %4296 = vset.pattern.permute.xlu0 3
        %4297 = vperm.xlu0 %4296, %v3380
        %v4298 = vpop.permute.xlu0 %4297
        %v4300 = vlaneseq
        %v4301 = vshrl.u32 %v4300, 7
        %v4302 = vsub.s32 3, %v4301
        %v4303 = vrot.slane %v3348, %v4302
        %v4304 = vlaneseq
        %v4305 = vshrl.u32 %v4304, 7
        %v4306 = vsub.s32 7, %v4305
        %v4307 = vrot.slane %v3348, %v4306
        %v4310 = vlaneseq
        %v4311 = vshrl.u32 %v4310, 7
        %v4312 = vsub.s32 3, %v4311
        %v4313 = vrot.slane %v4303, %v4312
        %v4314 = vlaneseq
        %v4315 = vshrl.u32 %v4314, 7
        %v4316 = vsub.s32 3, %v4315
        %v4317 = vrot.slane %v4307, %v4316
        %v4318 = vmul.f32 %v4174, %v4313
        %v4319 = vmul.f32 %v4174, %v4317
        %v4320 = vmul.f32 %v4178, %v4313
        %v4321 = vmul.f32 %v4178, %v4317
        %v4322 = vmul.f32 %v4182, %v4313
        %v4323 = vmul.f32 %v4182, %v4317
        %v4324 = vmul.f32 %v4186, %v4313
        %v4325 = vmul.f32 %v4186, %v4317
        %v4326 = vmul.f32 %v4190, %v4313
        %v4327 = vmul.f32 %v4190, %v4317
        %v4328 = vmul.f32 %v4194, %v4313
        %v4329 = vmul.f32 %v4194, %v4317
        %v4330 = vmul.f32 %v4198, %v4313
        %v4331 = vmul.f32 %v4198, %v4317
        %v4332 = vmul.f32 %v4202, %v4313
        %v4333 = vmul.f32 %v4202, %v4317
        %v4334 = vmul.f32 %v4206, %v4313
        %v4335 = vmul.f32 %v4206, %v4317
        %v4336 = vmul.f32 %v4210, %v4313
        %v4337 = vmul.f32 %v4210, %v4317
        %v4338 = vmul.f32 %v4214, %v4313
        %v4339 = vmul.f32 %v4214, %v4317
        %v4340 = vmul.f32 %v4218, %v4313
        %v4341 = vmul.f32 %v4218, %v4317
        %v4342 = vmul.f32 %v4222, %v4313
        %v4343 = vmul.f32 %v4222, %v4317
        %v4344 = vmul.f32 %v4226, %v4313
        %v4345 = vmul.f32 %v4226, %v4317
        %v4346 = vmul.f32 %v4230, %v4313
        %v4347 = vmul.f32 %v4230, %v4317
        %v4348 = vmul.f32 %v4234, %v4313
        %v4349 = vmul.f32 %v4234, %v4317
        %v4350 = vmul.f32 %v4238, %v4313
        %v4351 = vmul.f32 %v4238, %v4317
        %v4352 = vmul.f32 %v4242, %v4313
        %v4353 = vmul.f32 %v4242, %v4317
        %v4354 = vmul.f32 %v4246, %v4313
        %v4355 = vmul.f32 %v4246, %v4317
        %v4356 = vmul.f32 %v4250, %v4313
        %v4357 = vmul.f32 %v4250, %v4317
        %v4358 = vmul.f32 %v4254, %v4313
        %v4359 = vmul.f32 %v4254, %v4317
        %v4360 = vmul.f32 %v4258, %v4313
        %v4361 = vmul.f32 %v4258, %v4317
        %v4362 = vmul.f32 %v4262, %v4313
        %v4363 = vmul.f32 %v4262, %v4317
        %v4364 = vmul.f32 %v4266, %v4313
        %v4365 = vmul.f32 %v4266, %v4317
        %v4366 = vmul.f32 %v4270, %v4313
        %v4367 = vmul.f32 %v4270, %v4317
        %v4368 = vmul.f32 %v4274, %v4313
        %v4369 = vmul.f32 %v4274, %v4317
        %v4370 = vmul.f32 %v4278, %v4313
        %v4371 = vmul.f32 %v4278, %v4317
        %v4372 = vmul.f32 %v4282, %v4313
        %v4373 = vmul.f32 %v4282, %v4317
        %v4374 = vmul.f32 %v4286, %v4313
        %v4375 = vmul.f32 %v4286, %v4317
        %v4376 = vmul.f32 %v4290, %v4313
        %v4377 = vmul.f32 %v4290, %v4317
        %v4378 = vmul.f32 %v4294, %v4313
        %v4379 = vmul.f32 %v4294, %v4317
        %v4380 = vmul.f32 %v4298, %v4313
        %v4381 = vmul.f32 %v4298, %v4317
        %v4382 = vadd.f32 %v4108, %v4318
        %v4383 = vadd.f32 %v4109, %v4319
        %v4384 = vadd.f32 %v4110, %v4320
        %v4385 = vadd.f32 %v4111, %v4321
        %v4386 = vadd.f32 %v4112, %v4322
        %v4387 = vadd.f32 %v4113, %v4323
        %v4388 = vadd.f32 %v4114, %v4324
        %v4389 = vadd.f32 %v4115, %v4325
        %v4390 = vadd.f32 %v4116, %v4326
        %v4391 = vadd.f32 %v4117, %v4327
        %v4392 = vadd.f32 %v4118, %v4328
        %v4393 = vadd.f32 %v4119, %v4329
        %v4394 = vadd.f32 %v4120, %v4330
        %v4395 = vadd.f32 %v4121, %v4331
        %v4396 = vadd.f32 %v4122, %v4332
        %v4397 = vadd.f32 %v4123, %v4333
        %v4398 = vadd.f32 %v4124, %v4334
        %v4399 = vadd.f32 %v4125, %v4335
        %v4400 = vadd.f32 %v4126, %v4336
        %v4401 = vadd.f32 %v4127, %v4337
        %v4402 = vadd.f32 %v4128, %v4338
        %v4403 = vadd.f32 %v4129, %v4339
        %v4404 = vadd.f32 %v4130, %v4340
        %v4405 = vadd.f32 %v4131, %v4341
        %v4406 = vadd.f32 %v4132, %v4342
        %v4407 = vadd.f32 %v4133, %v4343
        %v4408 = vadd.f32 %v4134, %v4344
        %v4409 = vadd.f32 %v4135, %v4345
        %v4410 = vadd.f32 %v4136, %v4346
        %v4411 = vadd.f32 %v4137, %v4347
        %v4412 = vadd.f32 %v4138, %v4348
        %v4413 = vadd.f32 %v4139, %v4349
        %v4414 = vadd.f32 %v4140, %v4350
        %v4415 = vadd.f32 %v4141, %v4351
        %v4416 = vadd.f32 %v4142, %v4352
        %v4417 = vadd.f32 %v4143, %v4353
        %v4418 = vadd.f32 %v4144, %v4354
        %v4419 = vadd.f32 %v4145, %v4355
        %v4420 = vadd.f32 %v4146, %v4356
        %v4421 = vadd.f32 %v4147, %v4357
        %v4422 = vadd.f32 %v4148, %v4358
        %v4423 = vadd.f32 %v4149, %v4359
        %v4424 = vadd.f32 %v4150, %v4360
        %v4425 = vadd.f32 %v4151, %v4361
        %v4426 = vadd.f32 %v4152, %v4362
        %v4427 = vadd.f32 %v4153, %v4363
        %v4428 = vadd.f32 %v4154, %v4364
        %v4429 = vadd.f32 %v4155, %v4365
        %v4430 = vadd.f32 %v4156, %v4366
        %v4431 = vadd.f32 %v4157, %v4367
        %v4432 = vadd.f32 %v4158, %v4368
        %v4433 = vadd.f32 %v4159, %v4369
        %v4434 = vadd.f32 %v4160, %v4370
        %v4435 = vadd.f32 %v4161, %v4371
        %v4436 = vadd.f32 %v4162, %v4372
        %v4437 = vadd.f32 %v4163, %v4373
        %v4438 = vadd.f32 %v4164, %v4374
        %v4439 = vadd.f32 %v4165, %v4375
        %v4440 = vadd.f32 %v4166, %v4376
        %v4441 = vadd.f32 %v4167, %v4377
        %v4442 = vadd.f32 %v4168, %v4378
        %v4443 = vadd.f32 %v4169, %v4379
        %v4444 = vadd.f32 %v4170, %v4380
        %v4445 = vadd.f32 %v4171, %v4381
        %v4446 = vadd.f32 %v3279, %v4382
        %v4447 = vadd.f32 %v3280, %v4383
        %v4448 = vadd.f32 %v3281, %v4384
        %v4449 = vadd.f32 %v3282, %v4385
        %v4450 = vadd.f32 %v3283, %v4386
        %v4451 = vadd.f32 %v3284, %v4387
        %v4452 = vadd.f32 %v3285, %v4388
        %v4453 = vadd.f32 %v3286, %v4389
        %v4454 = vadd.f32 %v3287, %v4390
        %v4455 = vadd.f32 %v3288, %v4391
        %v4456 = vadd.f32 %v3289, %v4392
        %v4457 = vadd.f32 %v3290, %v4393
        %v4458 = vadd.f32 %v3291, %v4394
        %v4459 = vadd.f32 %v3292, %v4395
        %v4460 = vadd.f32 %v3293, %v4396
        %v4461 = vadd.f32 %v3294, %v4397
        %v4462 = vadd.f32 %v3295, %v4398
        %v4463 = vadd.f32 %v3296, %v4399
        %v4464 = vadd.f32 %v3297, %v4400
        %v4465 = vadd.f32 %v3298, %v4401
        %v4466 = vadd.f32 %v3299, %v4402
        %v4467 = vadd.f32 %v3300, %v4403
        %v4468 = vadd.f32 %v3301, %v4404
        %v4469 = vadd.f32 %v3302, %v4405
        %v4470 = vadd.f32 %v3303, %v4406
        %v4471 = vadd.f32 %v3304, %v4407
        %v4472 = vadd.f32 %v3305, %v4408
        %v4473 = vadd.f32 %v3306, %v4409
        %v4474 = vadd.f32 %v3307, %v4410
        %v4475 = vadd.f32 %v3308, %v4411
        %v4476 = vadd.f32 %v3309, %v4412
        %v4477 = vadd.f32 %v3310, %v4413
        %v4478 = vadd.f32 %v3311, %v4414
        %v4479 = vadd.f32 %v3312, %v4415
        %v4480 = vadd.f32 %v3313, %v4416
        %v4481 = vadd.f32 %v3314, %v4417
        %v4482 = vadd.f32 %v3315, %v4418
        %v4483 = vadd.f32 %v3316, %v4419
        %v4484 = vadd.f32 %v3317, %v4420
        %v4485 = vadd.f32 %v3318, %v4421
        %v4486 = vadd.f32 %v3319, %v4422
        %v4487 = vadd.f32 %v3320, %v4423
        %v4488 = vadd.f32 %v3321, %v4424
        %v4489 = vadd.f32 %v3322, %v4425
        %v4490 = vadd.f32 %v3323, %v4426
        %v4491 = vadd.f32 %v3324, %v4427
        %v4492 = vadd.f32 %v3325, %v4428
        %v4493 = vadd.f32 %v3326, %v4429
        %v4494 = vadd.f32 %v3327, %v4430
        %v4495 = vadd.f32 %v3328, %v4431
        %v4496 = vadd.f32 %v3329, %v4432
        %v4497 = vadd.f32 %v3330, %v4433
        %v4498 = vadd.f32 %v3331, %v4434
        %v4499 = vadd.f32 %v3332, %v4435
        %v4500 = vadd.f32 %v3333, %v4436
        %v4501 = vadd.f32 %v3334, %v4437
        %v4502 = vadd.f32 %v3335, %v4438
        %v4503 = vadd.f32 %v3336, %v4439
        %v4504 = vadd.f32 %v3337, %v4440
        %v4505 = vadd.f32 %v3338, %v4441
        %v4506 = vadd.f32 %v3339, %v4442
        %v4507 = vadd.f32 %v3340, %v4443
        %v4508 = vadd.f32 %v3341, %v4444
        %v4509 = vadd.f32 %v3342, %v4445
        %v4510 = vld [vmem:[%s5] sm:$0xff]
        %v4511 = vld [vmem:[%s5 + $0x8] sm:$0xff]
        %v4512 = vld [vmem:[%s5 + $0x10] sm:$0xff]
        %v4513 = vld [vmem:[%s5 + $0x18] sm:$0xff]
        %v4514 = vld [vmem:[%s5 + $0x20] sm:$0xff]
        %v4515 = vld [vmem:[%s5 + $0x28] sm:$0xff]
        %v4516 = vld [vmem:[%s5 + $0x30] sm:$0xff]
        %v4517 = vld [vmem:[%s5 + $0x38] sm:$0xff]
        %v4518 = vld [vmem:[%s5 + $0x40] sm:$0xff]
        %v4519 = vld [vmem:[%s5 + $0x48] sm:$0xff]
        %v4520 = vld [vmem:[%s5 + $0x50] sm:$0xff]
        %v4521 = vld [vmem:[%s5 + $0x58] sm:$0xff]
        %v4522 = vld [vmem:[%s5 + $0x60] sm:$0xff]
        %v4523 = vld [vmem:[%s5 + $0x68] sm:$0xff]
        %v4524 = vld [vmem:[%s5 + $0x70] sm:$0xff]
        %v4525 = vld [vmem:[%s5 + $0x78] sm:$0xff]
        %v4526 = vld [vmem:[%s5 + $0x80] sm:$0xff]
        %v4527 = vld [vmem:[%s5 + $0x88] sm:$0xff]
        %v4528 = vld [vmem:[%s5 + $0x90] sm:$0xff]
        %v4529 = vld [vmem:[%s5 + $0x98] sm:$0xff]
        %v4530 = vld [vmem:[%s5 + $0xa0] sm:$0xff]
        %v4531 = vld [vmem:[%s5 + $0xa8] sm:$0xff]
        %v4532 = vld [vmem:[%s5 + $0xb0] sm:$0xff]
        %v4533 = vld [vmem:[%s5 + $0xb8] sm:$0xff]
        %v4534 = vld [vmem:[%s5 + $0xc0] sm:$0xff]
        %v4535 = vld [vmem:[%s5 + $0xc8] sm:$0xff]
        %v4536 = vld [vmem:[%s5 + $0xd0] sm:$0xff]
        %v4537 = vld [vmem:[%s5 + $0xd8] sm:$0xff]
        %v4538 = vld [vmem:[%s5 + $0xe0] sm:$0xff]
        %v4539 = vld [vmem:[%s5 + $0xe8] sm:$0xff]
        %v4540 = vld [vmem:[%s5 + $0xf0] sm:$0xff]
        %v4541 = vld [vmem:[%s5 + $0xf8] sm:$0xff]
        %4543 = vset.pattern.permute.xlu0 0
        %4544 = vperm.xlu0 %4543, %v4510
        %v4545 = vpop.permute.xlu0 %4544
        %4548 = vset.pattern.permute.xlu0 0
        %4549 = vperm.xlu0 %4548, %v4511
        %v4550 = vpop.permute.xlu0 %4549
        %4553 = vset.pattern.permute.xlu0 0
        %4554 = vperm.xlu0 %4553, %v4512
        %v4555 = vpop.permute.xlu0 %4554
        %4558 = vset.pattern.permute.xlu0 0
        %4559 = vperm.xlu0 %4558, %v4513
        %v4560 = vpop.permute.xlu0 %4559
        %4563 = vset.pattern.permute.xlu0 0
        %4564 = vperm.xlu0 %4563, %v4514
        %v4565 = vpop.permute.xlu0 %4564
        %4568 = vset.pattern.permute.xlu0 0
        %4569 = vperm.xlu0 %4568, %v4515
        %v4570 = vpop.permute.xlu0 %4569
        %4573 = vset.pattern.permute.xlu0 0
        %4574 = vperm.xlu0 %4573, %v4516
        %v4575 = vpop.permute.xlu0 %4574
        %4578 = vset.pattern.permute.xlu0 0
        %4579 = vperm.xlu0 %4578, %v4517
        %v4580 = vpop.permute.xlu0 %4579
        %4583 = vset.pattern.permute.xlu0 0
        %4584 = vperm.xlu0 %4583, %v4518
        %v4585 = vpop.permute.xlu0 %4584
        %4588 = vset.pattern.permute.xlu0 0
        %4589 = vperm.xlu0 %4588, %v4519
        %v4590 = vpop.permute.xlu0 %4589
        %4593 = vset.pattern.permute.xlu0 0
        %4594 = vperm.xlu0 %4593, %v4520
        %v4595 = vpop.permute.xlu0 %4594
        %4598 = vset.pattern.permute.xlu0 0
        %4599 = vperm.xlu0 %4598, %v4521
        %v4600 = vpop.permute.xlu0 %4599
        %4603 = vset.pattern.permute.xlu0 0
        %4604 = vperm.xlu0 %4603, %v4522
        %v4605 = vpop.permute.xlu0 %4604
        %4608 = vset.pattern.permute.xlu0 0
        %4609 = vperm.xlu0 %4608, %v4523
        %v4610 = vpop.permute.xlu0 %4609
        %4613 = vset.pattern.permute.xlu0 0
        %4614 = vperm.xlu0 %4613, %v4524
        %v4615 = vpop.permute.xlu0 %4614
        %4618 = vset.pattern.permute.xlu0 0
        %4619 = vperm.xlu0 %4618, %v4525
        %v4620 = vpop.permute.xlu0 %4619
        %4623 = vset.pattern.permute.xlu0 0
        %4624 = vperm.xlu0 %4623, %v4526
        %v4625 = vpop.permute.xlu0 %4624
        %4628 = vset.pattern.permute.xlu0 0
        %4629 = vperm.xlu0 %4628, %v4527
        %v4630 = vpop.permute.xlu0 %4629
        %4633 = vset.pattern.permute.xlu0 0
        %4634 = vperm.xlu0 %4633, %v4528
        %v4635 = vpop.permute.xlu0 %4634
        %4638 = vset.pattern.permute.xlu0 0
        %4639 = vperm.xlu0 %4638, %v4529
        %v4640 = vpop.permute.xlu0 %4639
        %4643 = vset.pattern.permute.xlu0 0
        %4644 = vperm.xlu0 %4643, %v4530
        %v4645 = vpop.permute.xlu0 %4644
        %4648 = vset.pattern.permute.xlu0 0
        %4649 = vperm.xlu0 %4648, %v4531
        %v4650 = vpop.permute.xlu0 %4649
        %4653 = vset.pattern.permute.xlu0 0
        %4654 = vperm.xlu0 %4653, %v4532
        %v4655 = vpop.permute.xlu0 %4654
        %4658 = vset.pattern.permute.xlu0 0
        %4659 = vperm.xlu0 %4658, %v4533
        %v4660 = vpop.permute.xlu0 %4659
        %4663 = vset.pattern.permute.xlu0 0
        %4664 = vperm.xlu0 %4663, %v4534
        %v4665 = vpop.permute.xlu0 %4664
        %4668 = vset.pattern.permute.xlu0 0
        %4669 = vperm.xlu0 %4668, %v4535
        %v4670 = vpop.permute.xlu0 %4669
        %4673 = vset.pattern.permute.xlu0 0
        %4674 = vperm.xlu0 %4673, %v4536
        %v4675 = vpop.permute.xlu0 %4674
        %4678 = vset.pattern.permute.xlu0 0
        %4679 = vperm.xlu0 %4678, %v4537
        %v4680 = vpop.permute.xlu0 %4679
        %4683 = vset.pattern.permute.xlu0 0
        %4684 = vperm.xlu0 %4683, %v4538
        %v4685 = vpop.permute.xlu0 %4684
        %4688 = vset.pattern.permute.xlu0 0
        %4689 = vperm.xlu0 %4688, %v4539
        %v4690 = vpop.permute.xlu0 %4689
        %4693 = vset.pattern.permute.xlu0 0
        %4694 = vperm.xlu0 %4693, %v4540
        %v4695 = vpop.permute.xlu0 %4694
        %4698 = vset.pattern.permute.xlu0 0
        %4699 = vperm.xlu0 %4698, %v4541
        %v4700 = vpop.permute.xlu0 %4699
        %v4702 = vadd.f32 %v4446, %v4545
        %v4703 = vadd.f32 %v4447, %v4545
        %v4704 = vadd.f32 %v4448, %v4550
        %v4705 = vadd.f32 %v4449, %v4550
        %v4706 = vadd.f32 %v4450, %v4555
        %v4707 = vadd.f32 %v4451, %v4555
        %v4708 = vadd.f32 %v4452, %v4560
        %v4709 = vadd.f32 %v4453, %v4560
        %v4710 = vadd.f32 %v4454, %v4565
        %v4711 = vadd.f32 %v4455, %v4565
        %v4712 = vadd.f32 %v4456, %v4570
        %v4713 = vadd.f32 %v4457, %v4570
        %v4714 = vadd.f32 %v4458, %v4575
        %v4715 = vadd.f32 %v4459, %v4575
        %v4716 = vadd.f32 %v4460, %v4580
        %v4717 = vadd.f32 %v4461, %v4580
        %v4718 = vadd.f32 %v4462, %v4585
        %v4719 = vadd.f32 %v4463, %v4585
        %v4720 = vadd.f32 %v4464, %v4590
        %v4721 = vadd.f32 %v4465, %v4590
        %v4722 = vadd.f32 %v4466, %v4595
        %v4723 = vadd.f32 %v4467, %v4595
        %v4724 = vadd.f32 %v4468, %v4600
        %v4725 = vadd.f32 %v4469, %v4600
        %v4726 = vadd.f32 %v4470, %v4605
        %v4727 = vadd.f32 %v4471, %v4605
        %v4728 = vadd.f32 %v4472, %v4610
        %v4729 = vadd.f32 %v4473, %v4610
        %v4730 = vadd.f32 %v4474, %v4615
        %v4731 = vadd.f32 %v4475, %v4615
        %v4732 = vadd.f32 %v4476, %v4620
        %v4733 = vadd.f32 %v4477, %v4620
        %v4734 = vadd.f32 %v4478, %v4625
        %v4735 = vadd.f32 %v4479, %v4625
        %v4736 = vadd.f32 %v4480, %v4630
        %v4737 = vadd.f32 %v4481, %v4630
        %v4738 = vadd.f32 %v4482, %v4635
        %v4739 = vadd.f32 %v4483, %v4635
        %v4740 = vadd.f32 %v4484, %v4640
        %v4741 = vadd.f32 %v4485, %v4640
        %v4742 = vadd.f32 %v4486, %v4645
        %v4743 = vadd.f32 %v4487, %v4645
        %v4744 = vadd.f32 %v4488, %v4650
        %v4745 = vadd.f32 %v4489, %v4650
        %v4746 = vadd.f32 %v4490, %v4655
        %v4747 = vadd.f32 %v4491, %v4655
        %v4748 = vadd.f32 %v4492, %v4660
        %v4749 = vadd.f32 %v4493, %v4660
        %v4750 = vadd.f32 %v4494, %v4665
        %v4751 = vadd.f32 %v4495, %v4665
        %v4752 = vadd.f32 %v4496, %v4670
        %v4753 = vadd.f32 %v4497, %v4670
        %v4754 = vadd.f32 %v4498, %v4675
        %v4755 = vadd.f32 %v4499, %v4675
        %v4756 = vadd.f32 %v4500, %v4680
        %v4757 = vadd.f32 %v4501, %v4680
        %v4758 = vadd.f32 %v4502, %v4685
        %v4759 = vadd.f32 %v4503, %v4685
        %v4760 = vadd.f32 %v4504, %v4690
        %v4761 = vadd.f32 %v4505, %v4690
        %v4762 = vadd.f32 %v4506, %v4695
        %v4763 = vadd.f32 %v4507, %v4695
        %v4764 = vadd.f32 %v4508, %v4700
        %v4765 = vadd.f32 %v4509, %v4700
        %s4766 = sld [smem:[#allocation3]]
        %vm4767 = vcmp.gt.f32.partialorder %v4702, 0.0
        %vm4768 = vcmp.gt.f32.partialorder %v4703, 0.0
        %vm4769 = vcmp.gt.f32.partialorder %v4704, 0.0
        %vm4770 = vcmp.gt.f32.partialorder %v4705, 0.0
        %vm4771 = vcmp.gt.f32.partialorder %v4706, 0.0
        %vm4772 = vcmp.gt.f32.partialorder %v4707, 0.0
        %vm4773 = vcmp.gt.f32.partialorder %v4708, 0.0
        %vm4774 = vcmp.gt.f32.partialorder %v4709, 0.0
        %vm4775 = vcmp.gt.f32.partialorder %v4710, 0.0
        %vm4776 = vcmp.gt.f32.partialorder %v4711, 0.0
        %vm4777 = vcmp.gt.f32.partialorder %v4712, 0.0
        %vm4778 = vcmp.gt.f32.partialorder %v4713, 0.0
        %vm4779 = vcmp.gt.f32.partialorder %v4714, 0.0
        %vm4780 = vcmp.gt.f32.partialorder %v4715, 0.0
        %vm4781 = vcmp.gt.f32.partialorder %v4716, 0.0
        %vm4782 = vcmp.gt.f32.partialorder %v4717, 0.0
        %vm4783 = vcmp.gt.f32.partialorder %v4718, 0.0
        %vm4784 = vcmp.gt.f32.partialorder %v4719, 0.0
        %vm4785 = vcmp.gt.f32.partialorder %v4720, 0.0
        %vm4786 = vcmp.gt.f32.partialorder %v4721, 0.0
        %vm4787 = vcmp.gt.f32.partialorder %v4722, 0.0
        %vm4788 = vcmp.gt.f32.partialorder %v4723, 0.0
        %vm4789 = vcmp.gt.f32.partialorder %v4724, 0.0
        %vm4790 = vcmp.gt.f32.partialorder %v4725, 0.0
        %vm4791 = vcmp.gt.f32.partialorder %v4726, 0.0
        %vm4792 = vcmp.gt.f32.partialorder %v4727, 0.0
        %vm4793 = vcmp.gt.f32.partialorder %v4728, 0.0
        %vm4794 = vcmp.gt.f32.partialorder %v4729, 0.0
        %vm4795 = vcmp.gt.f32.partialorder %v4730, 0.0
        %vm4796 = vcmp.gt.f32.partialorder %v4731, 0.0
        %vm4797 = vcmp.gt.f32.partialorder %v4732, 0.0
        %vm4798 = vcmp.gt.f32.partialorder %v4733, 0.0
        %vm4799 = vcmp.gt.f32.partialorder %v4734, 0.0
        %vm4800 = vcmp.gt.f32.partialorder %v4735, 0.0
        %vm4801 = vcmp.gt.f32.partialorder %v4736, 0.0
        %vm4802 = vcmp.gt.f32.partialorder %v4737, 0.0
        %vm4803 = vcmp.gt.f32.partialorder %v4738, 0.0
        %vm4804 = vcmp.gt.f32.partialorder %v4739, 0.0
        %vm4805 = vcmp.gt.f32.partialorder %v4740, 0.0
        %vm4806 = vcmp.gt.f32.partialorder %v4741, 0.0
        %vm4807 = vcmp.gt.f32.partialorder %v4742, 0.0
        %vm4808 = vcmp.gt.f32.partialorder %v4743, 0.0
        %vm4809 = vcmp.gt.f32.partialorder %v4744, 0.0
        %vm4810 = vcmp.gt.f32.partialorder %v4745, 0.0
        %vm4811 = vcmp.gt.f32.partialorder %v4746, 0.0
        %vm4812 = vcmp.gt.f32.partialorder %v4747, 0.0
        %vm4813 = vcmp.gt.f32.partialorder %v4748, 0.0
        %vm4814 = vcmp.gt.f32.partialorder %v4749, 0.0
        %vm4815 = vcmp.gt.f32.partialorder %v4750, 0.0
        %vm4816 = vcmp.gt.f32.partialorder %v4751, 0.0
        %vm4817 = vcmp.gt.f32.partialorder %v4752, 0.0
        %vm4818 = vcmp.gt.f32.partialorder %v4753, 0.0
        %vm4819 = vcmp.gt.f32.partialorder %v4754, 0.0
        %vm4820 = vcmp.gt.f32.partialorder %v4755, 0.0
        %vm4821 = vcmp.gt.f32.partialorder %v4756, 0.0
        %vm4822 = vcmp.gt.f32.partialorder %v4757, 0.0
        %vm4823 = vcmp.gt.f32.partialorder %v4758, 0.0
        %vm4824 = vcmp.gt.f32.partialorder %v4759, 0.0
        %vm4825 = vcmp.gt.f32.partialorder %v4760, 0.0
        %vm4826 = vcmp.gt.f32.partialorder %v4761, 0.0
        %vm4827 = vcmp.gt.f32.partialorder %v4762, 0.0
        %vm4828 = vcmp.gt.f32.partialorder %v4763, 0.0
        %vm4829 = vcmp.gt.f32.partialorder %v4764, 0.0
        %vm4830 = vcmp.gt.f32.partialorder %v4765, 0.0
        %v4831 = vstv %s4766
        %v4832 = vmul.f32 %v4831, %v4702
        %v4833 = vmul.f32 %v4831, %v4703
        %v4834 = vmul.f32 %v4831, %v4704
        %v4835 = vmul.f32 %v4831, %v4705
        %v4836 = vmul.f32 %v4831, %v4706
        %v4837 = vmul.f32 %v4831, %v4707
        %v4838 = vmul.f32 %v4831, %v4708
        %v4839 = vmul.f32 %v4831, %v4709
        %v4840 = vmul.f32 %v4831, %v4710
        %v4841 = vmul.f32 %v4831, %v4711
        %v4842 = vmul.f32 %v4831, %v4712
        %v4843 = vmul.f32 %v4831, %v4713
        %v4844 = vmul.f32 %v4831, %v4714
        %v4845 = vmul.f32 %v4831, %v4715
        %v4846 = vmul.f32 %v4831, %v4716
        %v4847 = vmul.f32 %v4831, %v4717
        %v4848 = vmul.f32 %v4831, %v4718
        %v4849 = vmul.f32 %v4831, %v4719
        %v4850 = vmul.f32 %v4831, %v4720
        %v4851 = vmul.f32 %v4831, %v4721
        %v4852 = vmul.f32 %v4831, %v4722
        %v4853 = vmul.f32 %v4831, %v4723
        %v4854 = vmul.f32 %v4831, %v4724
        %v4855 = vmul.f32 %v4831, %v4725
        %v4856 = vmul.f32 %v4831, %v4726
        %v4857 = vmul.f32 %v4831, %v4727
        %v4858 = vmul.f32 %v4831, %v4728
        %v4859 = vmul.f32 %v4831, %v4729
        %v4860 = vmul.f32 %v4831, %v4730
        %v4861 = vmul.f32 %v4831, %v4731
        %v4862 = vmul.f32 %v4831, %v4732
        %v4863 = vmul.f32 %v4831, %v4733
        %v4864 = vmul.f32 %v4831, %v4734
        %v4865 = vmul.f32 %v4831, %v4735
        %v4866 = vmul.f32 %v4831, %v4736
        %v4867 = vmul.f32 %v4831, %v4737
        %v4868 = vmul.f32 %v4831, %v4738
        %v4869 = vmul.f32 %v4831, %v4739
        %v4870 = vmul.f32 %v4831, %v4740
        %v4871 = vmul.f32 %v4831, %v4741
        %v4872 = vmul.f32 %v4831, %v4742
        %v4873 = vmul.f32 %v4831, %v4743
        %v4874 = vmul.f32 %v4831, %v4744
        %v4875 = vmul.f32 %v4831, %v4745
        %v4876 = vmul.f32 %v4831, %v4746
        %v4877 = vmul.f32 %v4831, %v4747
        %v4878 = vmul.f32 %v4831, %v4748
        %v4879 = vmul.f32 %v4831, %v4749
        %v4880 = vmul.f32 %v4831, %v4750
        %v4881 = vmul.f32 %v4831, %v4751
        %v4882 = vmul.f32 %v4831, %v4752
        %v4883 = vmul.f32 %v4831, %v4753
        %v4884 = vmul.f32 %v4831, %v4754
        %v4885 = vmul.f32 %v4831, %v4755
        %v4886 = vmul.f32 %v4831, %v4756
        %v4887 = vmul.f32 %v4831, %v4757
        %v4888 = vmul.f32 %v4831, %v4758
        %v4889 = vmul.f32 %v4831, %v4759
        %v4890 = vmul.f32 %v4831, %v4760
        %v4891 = vmul.f32 %v4831, %v4761
        %v4892 = vmul.f32 %v4831, %v4762
        %v4893 = vmul.f32 %v4831, %v4763
        %v4894 = vmul.f32 %v4831, %v4764
        %v4895 = vmul.f32 %v4831, %v4765
        %v4896 = vsel %vm4767, %v4702, %v4832
        %v4897 = vsel %vm4768, %v4703, %v4833
        %v4898 = vsel %vm4769, %v4704, %v4834
        %v4899 = vsel %vm4770, %v4705, %v4835
        %v4900 = vsel %vm4771, %v4706, %v4836
        %v4901 = vsel %vm4772, %v4707, %v4837
        %v4902 = vsel %vm4773, %v4708, %v4838
        %v4903 = vsel %vm4774, %v4709, %v4839
        %v4904 = vsel %vm4775, %v4710, %v4840
        %v4905 = vsel %vm4776, %v4711, %v4841
        %v4906 = vsel %vm4777, %v4712, %v4842
        %v4907 = vsel %vm4778, %v4713, %v4843
        %v4908 = vsel %vm4779, %v4714, %v4844
        %v4909 = vsel %vm4780, %v4715, %v4845
        %v4910 = vsel %vm4781, %v4716, %v4846
        %v4911 = vsel %vm4782, %v4717, %v4847
        %v4912 = vsel %vm4783, %v4718, %v4848
        %v4913 = vsel %vm4784, %v4719, %v4849
        %v4914 = vsel %vm4785, %v4720, %v4850
        %v4915 = vsel %vm4786, %v4721, %v4851
        %v4916 = vsel %vm4787, %v4722, %v4852
        %v4917 = vsel %vm4788, %v4723, %v4853
        %v4918 = vsel %vm4789, %v4724, %v4854
        %v4919 = vsel %vm4790, %v4725, %v4855
        %v4920 = vsel %vm4791, %v4726, %v4856
        %v4921 = vsel %vm4792, %v4727, %v4857
        %v4922 = vsel %vm4793, %v4728, %v4858
        %v4923 = vsel %vm4794, %v4729, %v4859
        %v4924 = vsel %vm4795, %v4730, %v4860
        %v4925 = vsel %vm4796, %v4731, %v4861
        %v4926 = vsel %vm4797, %v4732, %v4862
        %v4927 = vsel %vm4798, %v4733, %v4863
        %v4928 = vsel %vm4799, %v4734, %v4864
        %v4929 = vsel %vm4800, %v4735, %v4865
        %v4930 = vsel %vm4801, %v4736, %v4866
        %v4931 = vsel %vm4802, %v4737, %v4867
        %v4932 = vsel %vm4803, %v4738, %v4868
        %v4933 = vsel %vm4804, %v4739, %v4869
        %v4934 = vsel %vm4805, %v4740, %v4870
        %v4935 = vsel %vm4806, %v4741, %v4871
        %v4936 = vsel %vm4807, %v4742, %v4872
        %v4937 = vsel %vm4808, %v4743, %v4873
        %v4938 = vsel %vm4809, %v4744, %v4874
        %v4939 = vsel %vm4810, %v4745, %v4875
        %v4940 = vsel %vm4811, %v4746, %v4876
        %v4941 = vsel %vm4812, %v4747, %v4877
        %v4942 = vsel %vm4813, %v4748, %v4878
        %v4943 = vsel %vm4814, %v4749, %v4879
        %v4944 = vsel %vm4815, %v4750, %v4880
        %v4945 = vsel %vm4816, %v4751, %v4881
        %v4946 = vsel %vm4817, %v4752, %v4882
        %v4947 = vsel %vm4818, %v4753, %v4883
        %v4948 = vsel %vm4819, %v4754, %v4884
        %v4949 = vsel %vm4820, %v4755, %v4885
        %v4950 = vsel %vm4821, %v4756, %v4886
        %v4951 = vsel %vm4822, %v4757, %v4887
        %v4952 = vsel %vm4823, %v4758, %v4888
        %v4953 = vsel %vm4824, %v4759, %v4889
        %v4954 = vsel %vm4825, %v4760, %v4890
        %v4955 = vsel %vm4826, %v4761, %v4891
        %v4956 = vsel %vm4827, %v4762, %v4892
        %v4957 = vsel %vm4828, %v4763, %v4893
        %v4958 = vsel %vm4829, %v4764, %v4894
        %v4959 = vsel %vm4830, %v4765, %v4895
        %4960 = vst [vmem:[%s327] sm:$0xff] %v4896
        %4961 = vst [vmem:[%s327 + $0x8] sm:$0xff] %v4897
        %4962 = vst [vmem:[%s327 + $0x10] sm:$0xff] %v4898
        %4963 = vst [vmem:[%s327 + $0x18] sm:$0xff] %v4899
        %4964 = vst [vmem:[%s327 + $0x20] sm:$0xff] %v4900
        %4965 = vst [vmem:[%s327 + $0x28] sm:$0xff] %v4901
        %4966 = vst [vmem:[%s327 + $0x30] sm:$0xff] %v4902
        %4967 = vst [vmem:[%s327 + $0x38] sm:$0xff] %v4903
        %4968 = vst [vmem:[%s327 + $0x40] sm:$0xff] %v4904
        %4969 = vst [vmem:[%s327 + $0x48] sm:$0xff] %v4905
        %4970 = vst [vmem:[%s327 + $0x50] sm:$0xff] %v4906
        %4971 = vst [vmem:[%s327 + $0x58] sm:$0xff] %v4907
        %4972 = vst [vmem:[%s327 + $0x60] sm:$0xff] %v4908
        %4973 = vst [vmem:[%s327 + $0x68] sm:$0xff] %v4909
        %4974 = vst [vmem:[%s327 + $0x70] sm:$0xff] %v4910
        %4975 = vst [vmem:[%s327 + $0x78] sm:$0xff] %v4911
        %4976 = vst [vmem:[%s327 + $0x80] sm:$0xff] %v4912
        %4977 = vst [vmem:[%s327 + $0x88] sm:$0xff] %v4913
        %4978 = vst [vmem:[%s327 + $0x90] sm:$0xff] %v4914
        %4979 = vst [vmem:[%s327 + $0x98] sm:$0xff] %v4915
        %4980 = vst [vmem:[%s327 + $0xa0] sm:$0xff] %v4916
        %4981 = vst [vmem:[%s327 + $0xa8] sm:$0xff] %v4917
        %4982 = vst [vmem:[%s327 + $0xb0] sm:$0xff] %v4918
        %4983 = vst [vmem:[%s327 + $0xb8] sm:$0xff] %v4919
        %4984 = vst [vmem:[%s327 + $0xc0] sm:$0xff] %v4920
        %4985 = vst [vmem:[%s327 + $0xc8] sm:$0xff] %v4921
        %4986 = vst [vmem:[%s327 + $0xd0] sm:$0xff] %v4922
        %4987 = vst [vmem:[%s327 + $0xd8] sm:$0xff] %v4923
        %4988 = vst [vmem:[%s327 + $0xe0] sm:$0xff] %v4924
        %4989 = vst [vmem:[%s327 + $0xe8] sm:$0xff] %v4925
        %4990 = vst [vmem:[%s327 + $0xf0] sm:$0xff] %v4926
        %4991 = vst [vmem:[%s327 + $0xf8] sm:$0xff] %v4927
        %4992 = vst [vmem:[%s327 + $0x100] sm:$0xff] %v4928
        %4993 = vst [vmem:[%s327 + $0x108] sm:$0xff] %v4929
        %4994 = vst [vmem:[%s327 + $0x110] sm:$0xff] %v4930
        %4995 = vst [vmem:[%s327 + $0x118] sm:$0xff] %v4931
        %4996 = vst [vmem:[%s327 + $0x120] sm:$0xff] %v4932
        %4997 = vst [vmem:[%s327 + $0x128] sm:$0xff] %v4933
        %4998 = vst [vmem:[%s327 + $0x130] sm:$0xff] %v4934
        %4999 = vst [vmem:[%s327 + $0x138] sm:$0xff] %v4935
        %5000 = vst [vmem:[%s327 + $0x140] sm:$0xff] %v4936
        %5001 = vst [vmem:[%s327 + $0x148] sm:$0xff] %v4937
        %5002 = vst [vmem:[%s327 + $0x150] sm:$0xff] %v4938
        %5003 = vst [vmem:[%s327 + $0x158] sm:$0xff] %v4939
        %5004 = vst [vmem:[%s327 + $0x160] sm:$0xff] %v4940
        %5005 = vst [vmem:[%s327 + $0x168] sm:$0xff] %v4941
        %5006 = vst [vmem:[%s327 + $0x170] sm:$0xff] %v4942
        %5007 = vst [vmem:[%s327 + $0x178] sm:$0xff] %v4943
        %5008 = vst [vmem:[%s327 + $0x180] sm:$0xff] %v4944
        %5009 = vst [vmem:[%s327 + $0x188] sm:$0xff] %v4945
        %5010 = vst [vmem:[%s327 + $0x190] sm:$0xff] %v4946
        %5011 = vst [vmem:[%s327 + $0x198] sm:$0xff] %v4947
        %5012 = vst [vmem:[%s327 + $0x1a0] sm:$0xff] %v4948
        %5013 = vst [vmem:[%s327 + $0x1a8] sm:$0xff] %v4949
        %5014 = vst [vmem:[%s327 + $0x1b0] sm:$0xff] %v4950
        %5015 = vst [vmem:[%s327 + $0x1b8] sm:$0xff] %v4951
        %5016 = vst [vmem:[%s327 + $0x1c0] sm:$0xff] %v4952
        %5017 = vst [vmem:[%s327 + $0x1c8] sm:$0xff] %v4953
        %5018 = vst [vmem:[%s327 + $0x1d0] sm:$0xff] %v4954
        %5019 = vst [vmem:[%s327 + $0x1d8] sm:$0xff] %v4955
        %5020 = vst [vmem:[%s327 + $0x1e0] sm:$0xff] %v4956
        %5021 = vst [vmem:[%s327 + $0x1e8] sm:$0xff] %v4957
        %5022 = vst [vmem:[%s327 + $0x1f0] sm:$0xff] %v4958
        %5023 = vst [vmem:[%s327 + $0x1f8] sm:$0xff] %v4959
        %s5024 = sand.u32 %s208, 1
        %s5025 = scalar_lea.sflag [#allocation5], %s5024
        %s5026 = sand.u32 %s208, 1
        %s5027 = smul.addr %s5026, 512
        %s5028 = scalar_lea.vmem [#allocation4], %s5027
        // Predicated region
        $region53: #{tpu_custom_call.1} parent=47 // pred_check
          %p5029 = pneg %p218
        $region54: #{tpu_custom_call.1} parent=47 // pred_check_branch
          %5031 = sbr.rel (%p5029) target = $region56
        $region55: #{tpu_custom_call.1} parent=47 // pred_region
          %s5032 = smul.u32 2, %s27
          %s5034 = ssub.s32 8192, 8192
          %5035 = vsyncadd %s5025, %s5034
          %s5036 = smul.addr %s26, 64
          %s5037 = sadd.s32 %s5032, %s5036
          %s5038 = smul.addr %s5037, 128
          %s5039 = scalar_lea.hbm %s7, %s5038
          %s5040 = sshll.u32 %s5028, 4
          %s5041 = int_to_ptr.vmem [resolvable:$true] %s5040
          %5046 = dma.vmem_to_hbm [thread:$0]  %s5041, 8192, %s5039, %s5025, 256, 256, 16
        $region56: #{tpu_custom_call.1} parent=47 // pred_fallthru
          _
      $region48: #{tpu_custom_call.1} parent=5 // pred_fallthru
        _
      %p5047 = scmp.le.s32.totalorder 2, %s17
      // Predicated region
      $region57: #{tpu_custom_call.1} parent=5 // pred_check
        %p5048 = pneg %p5047
      $region58: #{tpu_custom_call.1} parent=5 // pred_check_branch
        %5050 = sbr.rel (%p5048) target = $region60
      $region59: #{tpu_custom_call.1} parent=5 // pred_region
        %s5051 = ssub.s32 %s17, 2
        // Predicated region
        $region61: #{tpu_custom_call.1} parent=59 // pred_check
          %p5052 = pneg %p224
        $region62: #{tpu_custom_call.1} parent=59 // pred_check_branch
          %5054 = sbr.rel (%p5052) target = $region64
        $region63: #{tpu_custom_call.1} parent=59 // pred_region
          %s5055 = sand.u32 %s209, 1
          %s5056 = scalar_lea.sflag [#allocation5], %s5055
          %s5057 = sand.u32 %s209, 1
          %s5058 = smul.addr %s5057, 512
          %s5059 = scalar_lea.vmem [#allocation4], %s5058
          %5060 = dma.done %s5056, 8192
        $region64: #{tpu_custom_call.1} parent=59 // pred_fallthru
          _
      $region60: #{tpu_custom_call.1} parent=5 // pred_fallthru
        _
    $region6: #{tpu_custom_call.1} parent=1 // loop_footer
      %s21 = sadd.s32 1, %s17
    $region7: #{tpu_custom_call.1} parent=1 // loop_footer_branch
      %16 = sbr.rel target = $region3
    $region8: #{tpu_custom_call.1} parent=1 // loop_exit
      _
    %5061 = vsyncpa [#allocation5], 1
    %s5062 = scalar_lea.sflag [#allocation5], 1
    %5063 = vsyncpa %s5062, 1

</llo_original>
